<compile_context>
chip_gen: v6e
topology: v6e:2x2x1
jax: 0.10.0
libtpu: 0.0.40
codegen_flags: <defaults>
</compile_context>

<pallas_src>
import jax
import jax.numpy as jnp
from jax import lax
from jax.experimental import pallas as pl
from jax.experimental.pallas import tpu as pltpu

D = 1024            # hidden size fixed by the module (in_features=1024)
LN_EPS = 1e-5
MAX_ROW_TILE = 512  # rows of x per grid step when there is enough work
_INV_SQRT2 = 0.7071067811865476


def _mlp_head_kernel(x_ref, w1_ref, b1_ref, gw2_ref, c0_ref, o_ref):
    # x_ref : (T, D)  bf16      w1_ref : (D, D) bf16  (VMEM-resident across steps)
    # b1_ref, gw2_ref : (1, D) f32      c0_ref : (1, 1) f32 in SMEM
    # o_ref : (T, 1) f32

    # dense: bf16 operands, f32 accumulation on the MXU
    h = jnp.dot(x_ref[...], w1_ref[...], preferred_element_type=jnp.float32)
    h = h + b1_ref[...]

    # exact GELU: 0.5*h*(1+erf(h/sqrt(2)))  (matches torch.nn.functional.gelu), f32
    h = 0.5 * h * (1.0 + lax.erf(h * jnp.float32(_INV_SQRT2)))

    # LayerNorm statistics in f32 (affine is folded into the decoder below)
    mean = jnp.mean(h, axis=-1, keepdims=True)
    centered = h - mean
    var = jnp.mean(centered * centered, axis=-1, keepdims=True)
    rstd = lax.rsqrt(var + jnp.float32(LN_EPS))

    # fused LN-affine + decoder (VPU multiply + cross-lane reduce; MXU stays free):
    #   out = rstd * sum(centered * (gamma*w2)) + (beta.w2 + b2)
    dec = jnp.sum(centered * gw2_ref[...], axis=-1, keepdims=True)
    o_ref[...] = (dec * rstd + c0_ref[0, 0]).astype(o_ref.dtype)


def _pick_row_tile(n_rows):
    """Largest useful row tile: 512 when there is enough work; otherwise shrink in
    multiples of 128 so the grid still has >= 2 steps (keeps both v7x TCs busy)."""
    if n_rows >= 2 * MAX_ROW_TILE:
        return MAX_ROW_TILE
    for t in (256, 128):
        if n_rows >= 2 * t:
            return t
    return 128


def mlp_head2_forward(features, params):
    """features: (B, S, 1024) float32. Returns (B, S, 1) float32."""
    w1, b1, gamma, beta, w2, b2 = (
        params["w1"], params["b1"], params["gamma"],
        params["beta"], params["w2"], params["b2"],
    )
    B, S, d = features.shape
    assert d == D
    n = B * S

    # bf16 operands for the big matmul (accumulation is f32 in-kernel);
    # halves the streamed x DMA and the resident W1.
    x2d = features.reshape(n, D).astype(jnp.bfloat16)
    w1_bf16 = w1.astype(jnp.bfloat16)

    # fold the LayerNorm affine into the decoder: gamma*w2 and beta.w2 + b2
    gw2 = (gamma * w2).astype(jnp.float32)                                  # (1, D)
    c0 = (jnp.sum(beta * w2) + b2[0, 0]).reshape(1, 1).astype(jnp.float32)  # (1, 1)

    row_tile = _pick_row_tile(n)
    grid = (pl.cdiv(n, row_tile),)   # no jnp.pad: trailing partial block is fine

    out = pl.pallas_call(
        _mlp_head_kernel,
        out_shape=jax.ShapeDtypeStruct((n, 1), jnp.float32),
        grid_spec=pltpu.PrefetchScalarGridSpec(
            num_scalar_prefetch=0,
            grid=grid,
            in_specs=[
                pl.BlockSpec((row_tile, D), lambda i: (i, 0)),       # x tile (streamed)
                pl.BlockSpec((D, D), lambda i: (0, 0)),              # W1 (VMEM-resident)
                pl.BlockSpec((1, D), lambda i: (0, 0)),              # b1
                pl.BlockSpec((1, D), lambda i: (0, 0)),              # gamma * w2
                pl.BlockSpec(memory_space=pltpu.MemorySpace.SMEM),   # beta.w2 + b2 scalar
            ],
            out_specs=pl.BlockSpec((row_tile, 1), lambda i: (i, 0)),
        ),
        compiler_params=pltpu.CompilerParams(
            dimension_semantics=("parallel",),      # row axis shards across TCs on v7x
            vmem_limit_bytes=32 * 1024 * 1024,      # >v5e 16 MiB default, <=v7x scoped default
        ),
    )(x2d, w1_bf16, b1, gw2, c0)

    return out.reshape(B, S, 1)


def init_params(key):
    """Deterministic synthetic parameters matching MLP_head2's shapes.
    gamma/beta/b2 are given non-trivial values so the fused affine+decoder path is
    actually exercised (torch init would be gamma=1, beta=0, bias=0)."""
    k1, k2, k3, k4, k5, k6 = jax.random.split(key, 6)
    scale = 1.0 / jnp.sqrt(jnp.float32(D))
    return {
        # nn.Linear(1024,1024): torch weight is (out,in); stored transposed (in,out)
        "w1": jax.random.uniform(k1, (D, D), jnp.float32, -scale, scale),
        "b1": jax.random.uniform(k2, (1, D), jnp.float32, -scale, scale),
        # LayerNorm affine params
        "gamma": 1.0 + 0.1 * jax.random.normal(k3, (1, D), jnp.float32),
        "beta": 0.1 * jax.random.normal(k4, (1, D), jnp.float32),
        # nn.Linear(1024,1): weight (1,1024), kept lane-dense as (1, D)
        "w2": jax.random.uniform(k5, (1, D), jnp.float32, -scale, scale),
        # decoder.bias (tied to self.bias, shape (1,))
        "b2": 0.1 * jax.random.normal(k6, (1, 1), jnp.float32),
    }


def _reference(features, params, *, bf16_matmul=False):
    """Pure-JAX reference. bf16_matmul=True mirrors the kernel's bf16-operand /
    f32-accumulation dense layer; False is the full-f32 PyTorch-equivalent path."""
    x = features.astype(jnp.float32)
    B, S, _ = x.shape
    x2d = x.reshape(-1, D)
    if bf16_matmul:
        h = jnp.dot(x2d.astype(jnp.bfloat16), params["w1"].astype(jnp.bfloat16),
                    preferred_element_type=jnp.float32)
    else:
        h = jnp.dot(x2d, params["w1"], precision=lax.Precision.HIGHEST)
    h = h + params["b1"][0]
    h = 0.5 * h * (1.0 + lax.erf(h / jnp.sqrt(jnp.float32(2.0))))
    mean = jnp.mean(h, axis=-1, keepdims=True)
    var = jnp.mean((h - mean) ** 2, axis=-1, keepdims=True)
    h = (h - mean) / jnp.sqrt(var + LN_EPS)
    h = h * params["gamma"][0] + params["beta"][0]
    out = jnp.sum(h * params["w2"][0], axis=-1, keepdims=True) + params["b2"][0, 0]
    return out.reshape(B, S, 1)


if __name__ == "__main__":
    key = jax.random.PRNGKey(0)
    kp, kx = jax.random.split(key)
    params = init_params(kp)

    # small shapes: batch=2, seq=128, hidden=1024 (hidden is fixed by the module);
    # 256 rows -> a 2-step row grid, so the multi-step pipeline / resident-W1 path
    # and both v7x TensorCores are exercised.
    B, S = 2, 128
    features = jax.random.normal(kx, (B, S, D), jnp.float32)

    out = jax.block_until_ready(mlp_head2_forward(features, params))
    assert out.shape == (B, S, 1)

    # tight check against a reference using the same bf16-operand matmul
    ref_bf16 = _reference(features, params, bf16_matmul=True)
    assert jnp.allclose(out, ref_bf16, atol=1e-3, rtol=1e-3), "mismatch vs bf16-matmul reference"

    # looser check against the pure-f32 PyTorch-equivalent reference
    # (only the bf16 rounding of the 1024x1024 matmul operands differs)
    ref_f32 = _reference(features, params, bf16_matmul=False)
    assert jnp.allclose(out, ref_f32, atol=2e-2, rtol=2e-2), "mismatch vs f32 reference"

    print("KERNEL_OK")
</pallas_src>

<mosaic_0001>
module attributes {stable_mosaic.version = 11 : i64} {
  func.func @_mlp_head_kernel(%arg0: i32, %arg1: memref<128x1024xbf16, #tpu.memory_space<vmem>>, %arg2: memref<1024x1024xbf16, #tpu.memory_space<vmem>>, %arg3: memref<1x1024xf32, #tpu.memory_space<vmem>>, %arg4: memref<1x1024xf32, #tpu.memory_space<vmem>>, %arg5: memref<1x1xf32, #tpu.memory_space<smem>>, %arg6: memref<128x1xf32, #tpu.memory_space<vmem>>) attributes {dimension_semantics = [#tpu.dimension_semantics<parallel>], iteration_bounds = array<i64: 2>, scalar_prefetch = 0 : i64, scratch_operands = 0 : i64, tpu.core_type = #tpu.core_type<tc>, window_params = [{transform_indices = @transform_0, window_bounds = array<i64: 128, 1024>}, {pipeline_mode = #tpu.pipeline_mode<synchronous>, transform_indices = @transform_1, window_bounds = array<i64: 1024, 1024>}, {pipeline_mode = #tpu.pipeline_mode<synchronous>, transform_indices = @transform_2, window_bounds = array<i64: 1, 1024>}, {pipeline_mode = #tpu.pipeline_mode<synchronous>, transform_indices = @transform_3, window_bounds = array<i64: 1, 1024>}, {transform_indices = @transform_4, window_bounds = array<i64: 1, 1>}, {transform_indices = @transform_5, window_bounds = array<i64: 128, 1>}]} {
    %c0 = arith.constant 0 : index
    %c0_0 = arith.constant 0 : index
    %0 = vector.load %arg1[%c0, %c0_0] : memref<128x1024xbf16, #tpu.memory_space<vmem>>, vector<128x1024xbf16>
    %c0_1 = arith.constant 0 : index
    %c0_2 = arith.constant 0 : index
    %1 = vector.load %arg2[%c0_1, %c0_2] : memref<1024x1024xbf16, #tpu.memory_space<vmem>>, vector<1024x1024xbf16>
    %cst = arith.constant dense<0.000000e+00> : vector<128x1024xf32>
    %2 = tpu.matmul %0, %1, %cst {dimension_numbers = #tpu.dot_dimension_numbers<[1], [0], [0], [1], [0, 0, 1, 1], [], []>} : vector<128x1024xbf16>, vector<1024x1024xbf16>, vector<128x1024xf32> -> vector<128x1024xf32>
    %c0_3 = arith.constant 0 : index
    %c0_4 = arith.constant 0 : index
    %3 = vector.load %arg3[%c0_3, %c0_4] : memref<1x1024xf32, #tpu.memory_space<vmem>>, vector<1x1024xf32>
    %4 = vector.broadcast %3 : vector<1x1024xf32> to vector<128x1024xf32>
    %5 = arith.addf %2, %4 : vector<128x1024xf32>
    %cst_5 = arith.constant 5.000000e-01 : f32
    %6 = vector.broadcast %cst_5 : f32 to vector<128x1024xf32>
    %7 = arith.mulf %6, %5 : vector<128x1024xf32>
    %cst_6 = arith.constant 0.707106769 : f32
    %8 = vector.broadcast %cst_6 : f32 to vector<128x1024xf32>
    %9 = arith.mulf %5, %8 : vector<128x1024xf32>
    %10 = math.erf %9 : vector<128x1024xf32>
    %cst_7 = arith.constant 1.000000e+00 : f32
    %11 = vector.broadcast %cst_7 : f32 to vector<128x1024xf32>
    %12 = arith.addf %11, %10 : vector<128x1024xf32>
    %13 = arith.mulf %7, %12 : vector<128x1024xf32>
    %cst_8 = arith.constant dense<0.000000e+00> : vector<128xf32>
    %14 = vector.multi_reduction <add>, %13, %cst_8 [1] : vector<128x1024xf32> to vector<128xf32>
    %15 = vector.shape_cast %14 : vector<128xf32> to vector<128x1xf32>
    %cst_9 = arith.constant 1.024000e+03 : f32
    %16 = vector.broadcast %cst_9 : f32 to vector<128x1xf32>
    %17 = arith.divf %15, %16 : vector<128x1xf32>
    %18 = vector.broadcast %17 : vector<128x1xf32> to vector<128x1024xf32>
    %19 = arith.subf %13, %18 : vector<128x1024xf32>
    %20 = arith.mulf %19, %19 : vector<128x1024xf32>
    %cst_10 = arith.constant dense<0.000000e+00> : vector<128xf32>
    %21 = vector.multi_reduction <add>, %20, %cst_10 [1] : vector<128x1024xf32> to vector<128xf32>
    %22 = vector.shape_cast %21 : vector<128xf32> to vector<128x1xf32>
    %cst_11 = arith.constant 1.024000e+03 : f32
    %23 = vector.broadcast %cst_11 : f32 to vector<128x1xf32>
    %24 = arith.divf %22, %23 : vector<128x1xf32>
    %cst_12 = arith.constant 9.99999974E-6 : f32
    %25 = vector.broadcast %cst_12 : f32 to vector<128x1xf32>
    %26 = arith.addf %24, %25 : vector<128x1xf32>
    %27 = math.rsqrt %26 : vector<128x1xf32>
    %c0_13 = arith.constant 0 : index
    %c0_14 = arith.constant 0 : index
    %28 = vector.load %arg4[%c0_13, %c0_14] : memref<1x1024xf32, #tpu.memory_space<vmem>>, vector<1x1024xf32>
    %29 = vector.broadcast %28 : vector<1x1024xf32> to vector<128x1024xf32>
    %30 = arith.mulf %19, %29 : vector<128x1024xf32>
    %cst_15 = arith.constant dense<0.000000e+00> : vector<128xf32>
    %31 = vector.multi_reduction <add>, %30, %cst_15 [1] : vector<128x1024xf32> to vector<128xf32>
    %32 = vector.shape_cast %31 : vector<128xf32> to vector<128x1xf32>
    %33 = arith.mulf %32, %27 : vector<128x1xf32>
    %c0_16 = arith.constant 0 : index
    %c0_17 = arith.constant 0 : index
    %34 = memref.load %arg5[%c0_16, %c0_17] : memref<1x1xf32, #tpu.memory_space<smem>>
    %35 = vector.broadcast %34 : f32 to vector<128x1xf32>
    %36 = arith.addf %33, %35 : vector<128x1xf32>
    %c0_18 = arith.constant 0 : index
    %c0_19 = arith.constant 0 : index
    %37 = vector.load %arg6[%c0_18, %c0_19] : memref<128x1xf32, #tpu.memory_space<vmem>>, vector<128x1xf32>
    tpu.vector_store %arg6[%c0_18, %c0_19], %36 {strides = array<i32>} : memref<128x1xf32, #tpu.memory_space<vmem>>, vector<128x1xf32>,
    return
  }
  func.func @transform_0(%arg0: i32) -> (i32, i32) {
    %c0_i32 = arith.constant 0 : i32
    %c0_i32_0 = arith.constant 0 : i32
    return %arg0, %c0_i32 : i32, i32
  }
  func.func @transform_1(%arg0: i32) -> (i32, i32) {
    %c0_i32 = arith.constant 0 : i32
    %c0_i32_0 = arith.constant 0 : i32
    %c0_i32_1 = arith.constant 0 : i32
    return %c0_i32, %c0_i32_0 : i32, i32
  }
  func.func @transform_2(%arg0: i32) -> (i32, i32) {
    %c0_i32 = arith.constant 0 : i32
    %c0_i32_0 = arith.constant 0 : i32
    %c0_i32_1 = arith.constant 0 : i32
    return %c0_i32, %c0_i32_0 : i32, i32
  }
  func.func @transform_3(%arg0: i32) -> (i32, i32) {
    %c0_i32 = arith.constant 0 : i32
    %c0_i32_0 = arith.constant 0 : i32
    %c0_i32_1 = arith.constant 0 : i32
    return %c0_i32, %c0_i32_0 : i32, i32
  }
  func.func @transform_4(%arg0: i32) -> (i32, i32) {
    %c0_i32 = arith.constant 0 : i32
    %c0_i32_0 = arith.constant 0 : i32
    %c0_i32_1 = arith.constant 0 : i32
    return %c0_i32, %c0_i32_0 : i32, i32
  }
  func.func @transform_5(%arg0: i32) -> (i32, i32) {
    %c0_i32 = arith.constant 0 : i32
    %c0_i32_0 = arith.constant 0 : i32
    return %arg0, %c0_i32 : i32, i32
  }
}

</mosaic_0001>

<llo_original>
// kernel: tpu_custom_call.1
$region0: #{tpu_custom_call.1}
  #allocation0 [shape = 'u32[]', space=smem, size = 0x4, offset = 0x4, fixed_abs, tag = 'smem constant byte address 0x4 - core index']
  #allocation1 [shape = 'u32[144,128]{1,0:T(1,128)}', space=vmem, size = 0x12000, scoped, tag = 'internal scratch']
  #allocation2 [shape = 'f32[1,1]{1,0:T(1,128)S(6)}', space=smem, size = 0x200, scoped, tag = 'scoped memory for tpu_custom_call.1']
  %s0 = inlined_call_operand.hbm [shape: bf16[256,1024], index: 0, kind: input, shape index: {}]
  %s1 = inlined_call_operand.hbm [shape: bf16[1024,1024], index: 1, kind: input, shape index: {}]
  %s2 = inlined_call_operand.hbm [shape: f32[1,1024], index: 2, kind: input, shape index: {}]
  %s3 = inlined_call_operand.hbm [shape: f32[1,1024], index: 3, kind: input, shape index: {}]
  %s4 = inlined_call_operand.<no memory space> [shape: f32[1,1], index: 4, kind: input, shape index: {}]
  %s5 = inlined_call_operand.vmem [shape: f32[256,1], index: 5, kind: output, shape index: {}]
  %s6 = sld [smem:[#allocation0]]
  $region69: #{tpu_custom_call.1} parent=0
    _
  %s8 = ssub.s32 1, %s6
  %s9 = scalar_select 0, %s8, %s6
  %10 = sst [smem:[#allocation2]] %s4
  $region1: #{tpu_custom_call.1} parent=0
    #allocation3 [shape = 'u8[524288]{0}', space=vmem, size = 0x80000, scoped, tag = 'input window, operand 0']
    #allocation4 [shape = 's32[2]{0}', space=sflag, size = 0x8, scoped, tag = 'scoped memory for tpu_custom_call.1']
    #allocation5 [shape = 'u8[2097152]{0}', space=vmem, size = 0x200000, scoped, tag = 'input window, operand 1, single buffered']
    #allocation6 [shape = 's32[1]{0}', space=sflag, size = 0x4, scoped, tag = 'scoped memory for tpu_custom_call.1']
    #allocation7 [shape = 'u8[4096]{0}', space=vmem, size = 0x1000, scoped, tag = 'input window, operand 2, single buffered']
    #allocation8 [shape = 'u8[4096]{0}', space=vmem, size = 0x1000, scoped, tag = 'input window, operand 3, single buffered']
    #allocation9 [shape = 's32[1]{0}', space=sflag, size = 0x4, scoped, tag = 'scoped memory for tpu_custom_call.1']
    %11 = vsyncpa [#allocation4], 0
    %s12 = scalar_lea.sflag [#allocation4], 1
    %13 = vsyncpa %s12, 0
    %14 = vsyncpa [#allocation6], 0
    %15 = vsyncpa [#allocation9], 0
    loop: start=0, step=1, limit=4
    $region2: #{tpu_custom_call.1} parent=1 // loop_pre_header
      _
    $region3: #{tpu_custom_call.1} parent=1 // loop_header
      %s17 = sphi 0, %s21
      %p18 = scmp.ge.s32.totalorder %s17, 4
      %s27 = sphi 0, %s29
      %s30 = sphi 0, %s27
      %s31 = sphi 0, %s30
      %s47 = sphi 0, %s31
      %s51 = sphi 0, %s51
      %s53 = sphi 0, %s51
      %s54 = sphi 0, %s53
      %s68 = sphi 0, %s54
      %s72 = sphi 0, %s72
      %s74 = sphi 0, %s72
      %s75 = sphi 0, %s74
      %s89 = sphi 0, %s75
      %s93 = sphi 0, %s93
      %s95 = sphi 0, %s93
      %s96 = sphi 0, %s95
      %s110 = sphi 0, %s96
      %s114 = sphi 0, %s114
      %s116 = sphi 0, %s114
      %s117 = sphi 0, %s116
      %s131 = sphi 0, %s117
      %s137 = sphi 0, %s139
      %s140 = sphi 0, %s137
      %s141 = sphi 0, %s140
      %s157 = sphi 0, %s141
    $region4: #{tpu_custom_call.1} parent=1 // loop_header_branch
      %20 = sbr.rel (%p18) target = $region8
    $region5: #{tpu_custom_call.1} parent=1 // loop_body
      %s22 = ssub.s32 %s17, 1
      %s23 = ssub.s32 %s17, 2
      %s24 = sadd.s32 %s17, 1
      %s25 = ssub.s32 %s17, %s24
      %p26 = scmp.eq.s32.totalorder %s25, 0
      %s28 = sadd.s32 %s27, 1
      %s29 = scalar_select %p26, %s27, %s28
      %p32 = pneg %p26
      %p33 = scmp.eq.s32.totalorder %s17, 1
      %p34 = por %p32, %p33
      %p35 = scmp.ne.s32.totalorder %s27, %s30
      %p36 = scmp.eq.s32.totalorder %s17, 0
      %p37 = por %p35, %p36
      %p38 = scmp.ne.s32.totalorder %s27, %s30
      %p39 = scmp.eq.s32.totalorder %s22, 1
      %p40 = por %p38, %p39
      %p41 = scmp.ne.s32.totalorder %s30, %s31
      %p42 = scmp.eq.s32.totalorder %s22, 0
      %p43 = por %p41, %p42
      %p44 = scmp.ne.s32.totalorder %s30, %s31
      %p45 = scmp.eq.s32.totalorder %s23, 1
      %p46 = por %p44, %p45
      %p48 = scmp.ne.s32.totalorder %s31, %s47
      %p49 = scmp.eq.s32.totalorder %s23, 0
      %p50 = por %p48, %p49
      %s52 = sadd.s32 %s51, 1
      %p55 = scmp.eq.s32.totalorder %s17, 1
      %p56 = scmp.ne.s32.totalorder %s51, %s53
      %p57 = scmp.eq.s32.totalorder %s17, 0
      %p58 = por %p56, %p57
      %p59 = scmp.ne.s32.totalorder %s51, %s53
      %p60 = scmp.eq.s32.totalorder %s22, 1
      %p61 = por %p59, %p60
      %p62 = scmp.ne.s32.totalorder %s53, %s54
      %p63 = scmp.eq.s32.totalorder %s22, 0
      %p64 = por %p62, %p63
      %p65 = scmp.ne.s32.totalorder %s53, %s54
      %p66 = scmp.eq.s32.totalorder %s23, 1
      %p67 = por %p65, %p66
      %p69 = scmp.ne.s32.totalorder %s54, %s68
      %p70 = scmp.eq.s32.totalorder %s23, 0
      %p71 = por %p69, %p70
      %s73 = sadd.s32 %s72, 1
      %p76 = scmp.eq.s32.totalorder %s17, 1
      %p77 = scmp.ne.s32.totalorder %s72, %s74
      %p78 = scmp.eq.s32.totalorder %s17, 0
      %p79 = por %p77, %p78
      %p80 = scmp.ne.s32.totalorder %s72, %s74
      %p81 = scmp.eq.s32.totalorder %s22, 1
      %p82 = por %p80, %p81
      %p83 = scmp.ne.s32.totalorder %s74, %s75
      %p84 = scmp.eq.s32.totalorder %s22, 0
      %p85 = por %p83, %p84
      %p86 = scmp.ne.s32.totalorder %s74, %s75
      %p87 = scmp.eq.s32.totalorder %s23, 1
      %p88 = por %p86, %p87
      %p90 = scmp.ne.s32.totalorder %s75, %s89
      %p91 = scmp.eq.s32.totalorder %s23, 0
      %p92 = por %p90, %p91
      %s94 = sadd.s32 %s93, 1
      %p97 = scmp.eq.s32.totalorder %s17, 1
      %p98 = scmp.ne.s32.totalorder %s93, %s95
      %p99 = scmp.eq.s32.totalorder %s17, 0
      %p100 = por %p98, %p99
      %p101 = scmp.ne.s32.totalorder %s93, %s95
      %p102 = scmp.eq.s32.totalorder %s22, 1
      %p103 = por %p101, %p102
      %p104 = scmp.ne.s32.totalorder %s95, %s96
      %p105 = scmp.eq.s32.totalorder %s22, 0
      %p106 = por %p104, %p105
      %p107 = scmp.ne.s32.totalorder %s95, %s96
      %p108 = scmp.eq.s32.totalorder %s23, 1
      %p109 = por %p107, %p108
      %p111 = scmp.ne.s32.totalorder %s96, %s110
      %p112 = scmp.eq.s32.totalorder %s23, 0
      %p113 = por %p111, %p112
      %s115 = sadd.s32 %s114, 1
      %p118 = scmp.eq.s32.totalorder %s17, 1
      %p119 = scmp.ne.s32.totalorder %s114, %s116
      %p120 = scmp.eq.s32.totalorder %s17, 0
      %p121 = por %p119, %p120
      %p122 = scmp.ne.s32.totalorder %s114, %s116
      %p123 = scmp.eq.s32.totalorder %s22, 1
      %p124 = por %p122, %p123
      %p125 = scmp.ne.s32.totalorder %s116, %s117
      %p126 = scmp.eq.s32.totalorder %s22, 0
      %p127 = por %p125, %p126
      %p128 = scmp.ne.s32.totalorder %s116, %s117
      %p129 = scmp.eq.s32.totalorder %s23, 1
      %p130 = por %p128, %p129
      %p132 = scmp.ne.s32.totalorder %s117, %s131
      %p133 = scmp.eq.s32.totalorder %s23, 0
      %p134 = por %p132, %p133
      %s135 = ssub.s32 %s17, %s24
      %p136 = scmp.eq.s32.totalorder %s135, 0
      %s138 = sadd.s32 %s137, 1
      %s139 = scalar_select %p136, %s137, %s138
      %p142 = pneg %p136
      %p143 = scmp.eq.s32.totalorder %s17, 1
      %p144 = por %p142, %p143
      %p145 = scmp.ne.s32.totalorder %s137, %s140
      %p146 = scmp.eq.s32.totalorder %s17, 0
      %p147 = por %p145, %p146
      %p148 = scmp.ne.s32.totalorder %s137, %s140
      %p149 = scmp.eq.s32.totalorder %s22, 1
      %p150 = por %p148, %p149
      %p151 = scmp.ne.s32.totalorder %s140, %s141
      %p152 = scmp.eq.s32.totalorder %s22, 0
      %p153 = por %p151, %p152
      %p154 = scmp.ne.s32.totalorder %s140, %s141
      %p155 = scmp.eq.s32.totalorder %s23, 1
      %p156 = por %p154, %p155
      %p158 = scmp.ne.s32.totalorder %s141, %s157
      %p159 = scmp.eq.s32.totalorder %s23, 0
      %p160 = por %p158, %p159
      %p161 = scmp.le.s32.totalorder 1, %s17
      %p162 = scmp.lt.s32.totalorder %s17, 3
      %p163 = pnand %p161, %p162
      %p164 = pneg %p163
      // Predicated region
      $region9: #{tpu_custom_call.1} parent=5 // pred_check
        _
      $region10: #{tpu_custom_call.1} parent=5 // pred_check_branch
        %166 = sbr.rel (%p163) target = $region12
      $region11: #{tpu_custom_call.1} parent=5 // pred_region
        %s167 = ssub.s32 %s17, 1
        // Predicated region
        $region13: #{tpu_custom_call.1} parent=11 // pred_check
          %p168 = pneg %p64
        $region14: #{tpu_custom_call.1} parent=11 // pred_check_branch
          %170 = sbr.rel (%p168) target = $region16
        $region15: #{tpu_custom_call.1} parent=11 // pred_region
          %s172 = ssub.s32 65536, 65536
          %173 = vsyncadd [#allocation6], %s172
          %s174 = sshll.u32 [#allocation5], 4
          %s175 = int_to_ptr.vmem [resolvable:$true] %s174
          %180 = dma.hbm_to_vmem [thread:$0]  %s1, 65536, %s175, [#allocation6], 512, 512, 32
        $region16: #{tpu_custom_call.1} parent=11 // pred_fallthru
          _
        // Predicated region
        $region17: #{tpu_custom_call.1} parent=11 // pred_check
          %p181 = pneg %p85
        $region18: #{tpu_custom_call.1} parent=11 // pred_check_branch
          %183 = sbr.rel (%p181) target = $region20
        $region19: #{tpu_custom_call.1} parent=11 // pred_region
          %s185 = ssub.s32 128, 128
          %186 = vsyncadd [#allocation6], %s185
          %s188 = sshll.u32 [#allocation7], 4
          %s189 = int_to_ptr.vmem [resolvable:$true] %s188
          %191 = dma.hbm_to_vmem [thread:$0]  %s2, 128, %s189, [#allocation6]
        $region20: #{tpu_custom_call.1} parent=11 // pred_fallthru
          _
        // Predicated region
        $region21: #{tpu_custom_call.1} parent=11 // pred_check
          %p192 = pneg %p106
        $region22: #{tpu_custom_call.1} parent=11 // pred_check_branch
          %194 = sbr.rel (%p192) target = $region24
        $region23: #{tpu_custom_call.1} parent=11 // pred_region
          %s196 = ssub.s32 128, 128
          %197 = vsyncadd [#allocation9], %s196
          %s199 = sshll.u32 [#allocation8], 4
          %s200 = int_to_ptr.vmem [resolvable:$true] %s199
          %202 = dma.hbm_to_vmem [thread:$0]  %s3, 128, %s200, [#allocation9]
        $region24: #{tpu_custom_call.1} parent=11 // pred_fallthru
          _
        // Predicated region
        $region25: #{tpu_custom_call.1} parent=11 // pred_check
          %p203 = pneg %p127
        $region26: #{tpu_custom_call.1} parent=11 // pred_check_branch
          %205 = sbr.rel (%p203) target = $region28
        $region27: #{tpu_custom_call.1} parent=11 // pred_region
          _
        $region28: #{tpu_custom_call.1} parent=11 // pred_fallthru
          _
      $region12: #{tpu_custom_call.1} parent=5 // pred_fallthru
        _
      %p206 = scmp.lt.s32.totalorder %s17, 2
      // Predicated region
      $region29: #{tpu_custom_call.1} parent=5 // pred_check
        %p207 = pneg %p206
      $region30: #{tpu_custom_call.1} parent=5 // pred_check_branch
        %209 = sbr.rel (%p207) target = $region32
      $region31: #{tpu_custom_call.1} parent=5 // pred_region
        // Predicated region
        $region33: #{tpu_custom_call.1} parent=31 // pred_check
          %p210 = pneg %p37
        $region34: #{tpu_custom_call.1} parent=31 // pred_check_branch
          %212 = sbr.rel (%p210) target = $region36
        $region35: #{tpu_custom_call.1} parent=31 // pred_region
          %s213 = sand.u32 %s27, 1
          %s214 = scalar_lea.sflag [#allocation4], %s213
          %s215 = sand.u32 %s27, 1
          %s216 = smul.addr %s215, 512
          %s217 = scalar_lea.vmem [#allocation3], %s216
          %s218 = smul.u32 16, %s17
          %s220 = ssub.s32 8192, 8192
          %221 = vsyncadd %s214, %s220
          %s222 = smul.addr %s218, 8
          %s223 = smul.addr %s222, 64
          %s224 = scalar_lea.hbm %s0, %s223
          %s225 = sshll.u32 %s217, 4
          %s226 = int_to_ptr.vmem [resolvable:$true] %s225
          %231 = dma.hbm_to_vmem [thread:$0]  %s224, 8192, %s226, %s214, 512, 512, 32
        $region36: #{tpu_custom_call.1} parent=31 // pred_fallthru
          _
      $region32: #{tpu_custom_call.1} parent=5 // pred_fallthru
        _
      %p232 = scmp.le.s32.totalorder 1, %s17
      %p233 = scmp.lt.s32.totalorder %s17, 3
      %p234 = pnand %p232, %p233
      %p235 = pneg %p234
      // Predicated region
      $region37: #{tpu_custom_call.1} parent=5 // pred_check
        _
      $region38: #{tpu_custom_call.1} parent=5 // pred_check_branch
        %237 = sbr.rel (%p234) target = $region40
      $region39: #{tpu_custom_call.1} parent=5 // pred_region
        %s238 = ssub.s32 %s17, 1
        %s239 = sand.u32 %s30, 1
        %s240 = scalar_lea.sflag [#allocation4], %s239
        %s241 = sand.u32 %s30, 1
        %s242 = smul.addr %s241, 512
        %s243 = scalar_lea.vmem [#allocation3], %s242
        // Predicated region
        $region41: #{tpu_custom_call.1} parent=39 // pred_check
          %p244 = pneg %p43
        $region42: #{tpu_custom_call.1} parent=39 // pred_check_branch
          %246 = sbr.rel (%p244) target = $region44
        $region43: #{tpu_custom_call.1} parent=39 // pred_region
          %247 = dma.done %s240, 8192
        $region44: #{tpu_custom_call.1} parent=39 // pred_fallthru
          _
        // Predicated region
        $region45: #{tpu_custom_call.1} parent=39 // pred_check
          %p248 = pneg %p64
        $region46: #{tpu_custom_call.1} parent=39 // pred_check_branch
          %250 = sbr.rel (%p248) target = $region48
        $region47: #{tpu_custom_call.1} parent=39 // pred_region
          %251 = dma.done [#allocation6], 65536
        $region48: #{tpu_custom_call.1} parent=39 // pred_fallthru
          _
        // Predicated region
        $region49: #{tpu_custom_call.1} parent=39 // pred_check
          %p252 = pneg %p85
        $region50: #{tpu_custom_call.1} parent=39 // pred_check_branch
          %254 = sbr.rel (%p252) target = $region52
        $region51: #{tpu_custom_call.1} parent=39 // pred_region
          %255 = dma.done [#allocation6], 128
        $region52: #{tpu_custom_call.1} parent=39 // pred_fallthru
          _
        // Predicated region
        $region53: #{tpu_custom_call.1} parent=39 // pred_check
          %p256 = pneg %p106
        $region54: #{tpu_custom_call.1} parent=39 // pred_check_branch
          %258 = sbr.rel (%p256) target = $region56
        $region55: #{tpu_custom_call.1} parent=39 // pred_region
          %259 = dma.done [#allocation9], 128
        $region56: #{tpu_custom_call.1} parent=39 // pred_fallthru
          _
        %s260 = sand.u32 %s30, 1
        %s261 = scalar_lea.sflag [#allocation4], %s260
        %s262 = sand.u32 %s30, 1
        %s263 = smul.addr %s262, 512
        %s264 = scalar_lea.vmem [#allocation3], %s263
        %p265 = pneg %p43
        %p266 = pneg %p40
        %p267 = pneg %p64
        %p268 = pneg %p61
        %p269 = pneg %p85
        %p270 = pneg %p82
        %p271 = pneg %p106
        %p272 = pneg %p103
        %p273 = pneg %p127
        %p274 = pneg %p124
        %p275 = pneg %p153
        %p276 = pneg %p150
        %s277 = smul.u32 16, %s22
        %p278 = scmp.lt.s32.totalorder %s277, 31
        %s279 = scalar_select %p278, %s277, 31
        %s280 = smul.addr %s279, 8
        %s281 = scalar_lea.vmem %s5, %s280
        %s282 = smul.u32 16, %s22
        %s283 = smul.u32 16, %s22
        %p284 = scmp.lt.s32.totalorder %s283, 31
        %s285 = scalar_select %p284, %s283, 31
        %s286 = smul.addr %s285, 8
        %s287 = scalar_lea.vmem %s5, %s286
        %s288 = smul.u32 16, %s22
        %v289 = vld [vmem:[%s243] sm:$0xff]
        %v290 = vld [vmem:[%s243 + $0x8] sm:$0xff]
        %v291 = vld [vmem:[%s243 + $0x10] sm:$0xff]
        %v292 = vld [vmem:[%s243 + $0x18] sm:$0xff]
        %v293 = vld [vmem:[%s243 + $0x20] sm:$0xff]
        %v294 = vld [vmem:[%s243 + $0x28] sm:$0xff]
        %v295 = vld [vmem:[%s243 + $0x30] sm:$0xff]
        %v296 = vld [vmem:[%s243 + $0x38] sm:$0xff]
        %v297 = vld [vmem:[%s243 + $0x40] sm:$0xff]
        %v298 = vld [vmem:[%s243 + $0x48] sm:$0xff]
        %v299 = vld [vmem:[%s243 + $0x50] sm:$0xff]
        %v300 = vld [vmem:[%s243 + $0x58] sm:$0xff]
        %v301 = vld [vmem:[%s243 + $0x60] sm:$0xff]
        %v302 = vld [vmem:[%s243 + $0x68] sm:$0xff]
        %v303 = vld [vmem:[%s243 + $0x70] sm:$0xff]
        %v304 = vld [vmem:[%s243 + $0x78] sm:$0xff]
        %v305 = vld [vmem:[%s243 + $0x80] sm:$0xff]
        %v306 = vld [vmem:[%s243 + $0x88] sm:$0xff]
        %v307 = vld [vmem:[%s243 + $0x90] sm:$0xff]
        %v308 = vld [vmem:[%s243 + $0x98] sm:$0xff]
        %v309 = vld [vmem:[%s243 + $0xa0] sm:$0xff]
        %v310 = vld [vmem:[%s243 + $0xa8] sm:$0xff]
        %v311 = vld [vmem:[%s243 + $0xb0] sm:$0xff]
        %v312 = vld [vmem:[%s243 + $0xb8] sm:$0xff]
        %v313 = vld [vmem:[%s243 + $0xc0] sm:$0xff]
        %v314 = vld [vmem:[%s243 + $0xc8] sm:$0xff]
        %v315 = vld [vmem:[%s243 + $0xd0] sm:$0xff]
        %v316 = vld [vmem:[%s243 + $0xd8] sm:$0xff]
        %v317 = vld [vmem:[%s243 + $0xe0] sm:$0xff]
        %v318 = vld [vmem:[%s243 + $0xe8] sm:$0xff]
        %v319 = vld [vmem:[%s243 + $0xf0] sm:$0xff]
        %v320 = vld [vmem:[%s243 + $0xf8] sm:$0xff]
        %v321 = vld [vmem:[%s243 + $0x100] sm:$0xff]
        %v322 = vld [vmem:[%s243 + $0x108] sm:$0xff]
        %v323 = vld [vmem:[%s243 + $0x110] sm:$0xff]
        %v324 = vld [vmem:[%s243 + $0x118] sm:$0xff]
        %v325 = vld [vmem:[%s243 + $0x120] sm:$0xff]
        %v326 = vld [vmem:[%s243 + $0x128] sm:$0xff]
        %v327 = vld [vmem:[%s243 + $0x130] sm:$0xff]
        %v328 = vld [vmem:[%s243 + $0x138] sm:$0xff]
        %v329 = vld [vmem:[%s243 + $0x140] sm:$0xff]
        %v330 = vld [vmem:[%s243 + $0x148] sm:$0xff]
        %v331 = vld [vmem:[%s243 + $0x150] sm:$0xff]
        %v332 = vld [vmem:[%s243 + $0x158] sm:$0xff]
        %v333 = vld [vmem:[%s243 + $0x160] sm:$0xff]
        %v334 = vld [vmem:[%s243 + $0x168] sm:$0xff]
        %v335 = vld [vmem:[%s243 + $0x170] sm:$0xff]
        %v336 = vld [vmem:[%s243 + $0x178] sm:$0xff]
        %v337 = vld [vmem:[%s243 + $0x180] sm:$0xff]
        %v338 = vld [vmem:[%s243 + $0x188] sm:$0xff]
        %v339 = vld [vmem:[%s243 + $0x190] sm:$0xff]
        %v340 = vld [vmem:[%s243 + $0x198] sm:$0xff]
        %v341 = vld [vmem:[%s243 + $0x1a0] sm:$0xff]
        %v342 = vld [vmem:[%s243 + $0x1a8] sm:$0xff]
        %v343 = vld [vmem:[%s243 + $0x1b0] sm:$0xff]
        %v344 = vld [vmem:[%s243 + $0x1b8] sm:$0xff]
        %v345 = vld [vmem:[%s243 + $0x1c0] sm:$0xff]
        %v346 = vld [vmem:[%s243 + $0x1c8] sm:$0xff]
        %v347 = vld [vmem:[%s243 + $0x1d0] sm:$0xff]
        %v348 = vld [vmem:[%s243 + $0x1d8] sm:$0xff]
        %v349 = vld [vmem:[%s243 + $0x1e0] sm:$0xff]
        %v350 = vld [vmem:[%s243 + $0x1e8] sm:$0xff]
        %v351 = vld [vmem:[%s243 + $0x1f0] sm:$0xff]
        %v352 = vld [vmem:[%s243 + $0x1f8] sm:$0xff]
        %v353 = vld [vmem:[#allocation5] sm:$0xff]
        %v354 = vld [vmem:[#allocation5 + $0x8] sm:$0xff]
        %v355 = vld [vmem:[#allocation5 + $0x10] sm:$0xff]
        %v356 = vld [vmem:[#allocation5 + $0x18] sm:$0xff]
        %v357 = vld [vmem:[#allocation5 + $0x20] sm:$0xff]
        %v358 = vld [vmem:[#allocation5 + $0x28] sm:$0xff]
        %v359 = vld [vmem:[#allocation5 + $0x30] sm:$0xff]
        %v360 = vld [vmem:[#allocation5 + $0x38] sm:$0xff]
        %v361 = vld [vmem:[#allocation5 + $0x40] sm:$0xff]
        %v362 = vld [vmem:[#allocation5 + $0x48] sm:$0xff]
        %v363 = vld [vmem:[#allocation5 + $0x50] sm:$0xff]
        %v364 = vld [vmem:[#allocation5 + $0x58] sm:$0xff]
        %v365 = vld [vmem:[#allocation5 + $0x60] sm:$0xff]
        %v366 = vld [vmem:[#allocation5 + $0x68] sm:$0xff]
        %v367 = vld [vmem:[#allocation5 + $0x70] sm:$0xff]
        %v368 = vld [vmem:[#allocation5 + $0x78] sm:$0xff]
        %v369 = vld [vmem:[#allocation5 + $0x80] sm:$0xff]
        %v370 = vld [vmem:[#allocation5 + $0x88] sm:$0xff]
        %v371 = vld [vmem:[#allocation5 + $0x90] sm:$0xff]
        %v372 = vld [vmem:[#allocation5 + $0x98] sm:$0xff]
        %v373 = vld [vmem:[#allocation5 + $0xa0] sm:$0xff]
        %v374 = vld [vmem:[#allocation5 + $0xa8] sm:$0xff]
        %v375 = vld [vmem:[#allocation5 + $0xb0] sm:$0xff]
        %v376 = vld [vmem:[#allocation5 + $0xb8] sm:$0xff]
        %v377 = vld [vmem:[#allocation5 + $0xc0] sm:$0xff]
        %v378 = vld [vmem:[#allocation5 + $0xc8] sm:$0xff]
        %v379 = vld [vmem:[#allocation5 + $0xd0] sm:$0xff]
        %v380 = vld [vmem:[#allocation5 + $0xd8] sm:$0xff]
        %v381 = vld [vmem:[#allocation5 + $0xe0] sm:$0xff]
        %v382 = vld [vmem:[#allocation5 + $0xe8] sm:$0xff]
        %v383 = vld [vmem:[#allocation5 + $0xf0] sm:$0xff]
        %v384 = vld [vmem:[#allocation5 + $0xf8] sm:$0xff]
        %v385 = vld [vmem:[#allocation5 + $0x100] sm:$0xff]
        %v386 = vld [vmem:[#allocation5 + $0x108] sm:$0xff]
        %v387 = vld [vmem:[#allocation5 + $0x110] sm:$0xff]
        %v388 = vld [vmem:[#allocation5 + $0x118] sm:$0xff]
        %v389 = vld [vmem:[#allocation5 + $0x120] sm:$0xff]
        %v390 = vld [vmem:[#allocation5 + $0x128] sm:$0xff]
        %v391 = vld [vmem:[#allocation5 + $0x130] sm:$0xff]
        %v392 = vld [vmem:[#allocation5 + $0x138] sm:$0xff]
        %v393 = vld [vmem:[#allocation5 + $0x140] sm:$0xff]
        %v394 = vld [vmem:[#allocation5 + $0x148] sm:$0xff]
        %v395 = vld [vmem:[#allocation5 + $0x150] sm:$0xff]
        %v396 = vld [vmem:[#allocation5 + $0x158] sm:$0xff]
        %v397 = vld [vmem:[#allocation5 + $0x160] sm:$0xff]
        %v398 = vld [vmem:[#allocation5 + $0x168] sm:$0xff]
        %v399 = vld [vmem:[#allocation5 + $0x170] sm:$0xff]
        %v400 = vld [vmem:[#allocation5 + $0x178] sm:$0xff]
        %v401 = vld [vmem:[#allocation5 + $0x180] sm:$0xff]
        %v402 = vld [vmem:[#allocation5 + $0x188] sm:$0xff]
        %v403 = vld [vmem:[#allocation5 + $0x190] sm:$0xff]
        %v404 = vld [vmem:[#allocation5 + $0x198] sm:$0xff]
        %v405 = vld [vmem:[#allocation5 + $0x1a0] sm:$0xff]
        %v406 = vld [vmem:[#allocation5 + $0x1a8] sm:$0xff]
        %v407 = vld [vmem:[#allocation5 + $0x1b0] sm:$0xff]
        %v408 = vld [vmem:[#allocation5 + $0x1b8] sm:$0xff]
        %v409 = vld [vmem:[#allocation5 + $0x1c0] sm:$0xff]
        %v410 = vld [vmem:[#allocation5 + $0x1c8] sm:$0xff]
        %v411 = vld [vmem:[#allocation5 + $0x1d0] sm:$0xff]
        %v412 = vld [vmem:[#allocation5 + $0x1d8] sm:$0xff]
        %v413 = vld [vmem:[#allocation5 + $0x1e0] sm:$0xff]
        %v414 = vld [vmem:[#allocation5 + $0x1e8] sm:$0xff]
        %v415 = vld [vmem:[#allocation5 + $0x1f0] sm:$0xff]
        %v416 = vld [vmem:[#allocation5 + $0x1f8] sm:$0xff]
        %v417 = vld [vmem:[#allocation5 + $0x200] sm:$0xff]
        %v418 = vld [vmem:[#allocation5 + $0x208] sm:$0xff]
        %v419 = vld [vmem:[#allocation5 + $0x210] sm:$0xff]
        %v420 = vld [vmem:[#allocation5 + $0x218] sm:$0xff]
        %v421 = vld [vmem:[#allocation5 + $0x220] sm:$0xff]
        %v422 = vld [vmem:[#allocation5 + $0x228] sm:$0xff]
        %v423 = vld [vmem:[#allocation5 + $0x230] sm:$0xff]
        %v424 = vld [vmem:[#allocation5 + $0x238] sm:$0xff]
        %v425 = vld [vmem:[#allocation5 + $0x240] sm:$0xff]
        %v426 = vld [vmem:[#allocation5 + $0x248] sm:$0xff]
        %v427 = vld [vmem:[#allocation5 + $0x250] sm:$0xff]
        %v428 = vld [vmem:[#allocation5 + $0x258] sm:$0xff]
        %v429 = vld [vmem:[#allocation5 + $0x260] sm:$0xff]
        %v430 = vld [vmem:[#allocation5 + $0x268] sm:$0xff]
        %v431 = vld [vmem:[#allocation5 + $0x270] sm:$0xff]
        %v432 = vld [vmem:[#allocation5 + $0x278] sm:$0xff]
        %v433 = vld [vmem:[#allocation5 + $0x280] sm:$0xff]
        %v434 = vld [vmem:[#allocation5 + $0x288] sm:$0xff]
        %v435 = vld [vmem:[#allocation5 + $0x290] sm:$0xff]
        %v436 = vld [vmem:[#allocation5 + $0x298] sm:$0xff]
        %v437 = vld [vmem:[#allocation5 + $0x2a0] sm:$0xff]
        %v438 = vld [vmem:[#allocation5 + $0x2a8] sm:$0xff]
        %v439 = vld [vmem:[#allocation5 + $0x2b0] sm:$0xff]
        %v440 = vld [vmem:[#allocation5 + $0x2b8] sm:$0xff]
        %v441 = vld [vmem:[#allocation5 + $0x2c0] sm:$0xff]
        %v442 = vld [vmem:[#allocation5 + $0x2c8] sm:$0xff]
        %v443 = vld [vmem:[#allocation5 + $0x2d0] sm:$0xff]
        %v444 = vld [vmem:[#allocation5 + $0x2d8] sm:$0xff]
        %v445 = vld [vmem:[#allocation5 + $0x2e0] sm:$0xff]
        %v446 = vld [vmem:[#allocation5 + $0x2e8] sm:$0xff]
        %v447 = vld [vmem:[#allocation5 + $0x2f0] sm:$0xff]
        %v448 = vld [vmem:[#allocation5 + $0x2f8] sm:$0xff]
        %v449 = vld [vmem:[#allocation5 + $0x300] sm:$0xff]
        %v450 = vld [vmem:[#allocation5 + $0x308] sm:$0xff]
        %v451 = vld [vmem:[#allocation5 + $0x310] sm:$0xff]
        %v452 = vld [vmem:[#allocation5 + $0x318] sm:$0xff]
        %v453 = vld [vmem:[#allocation5 + $0x320] sm:$0xff]
        %v454 = vld [vmem:[#allocation5 + $0x328] sm:$0xff]
        %v455 = vld [vmem:[#allocation5 + $0x330] sm:$0xff]
        %v456 = vld [vmem:[#allocation5 + $0x338] sm:$0xff]
        %v457 = vld [vmem:[#allocation5 + $0x340] sm:$0xff]
        %v458 = vld [vmem:[#allocation5 + $0x348] sm:$0xff]
        %v459 = vld [vmem:[#allocation5 + $0x350] sm:$0xff]
        %v460 = vld [vmem:[#allocation5 + $0x358] sm:$0xff]
        %v461 = vld [vmem:[#allocation5 + $0x360] sm:$0xff]
        %v462 = vld [vmem:[#allocation5 + $0x368] sm:$0xff]
        %v463 = vld [vmem:[#allocation5 + $0x370] sm:$0xff]
        %v464 = vld [vmem:[#allocation5 + $0x378] sm:$0xff]
        %v465 = vld [vmem:[#allocation5 + $0x380] sm:$0xff]
        %v466 = vld [vmem:[#allocation5 + $0x388] sm:$0xff]
        %v467 = vld [vmem:[#allocation5 + $0x390] sm:$0xff]
        %v468 = vld [vmem:[#allocation5 + $0x398] sm:$0xff]
        %v469 = vld [vmem:[#allocation5 + $0x3a0] sm:$0xff]
        %v470 = vld [vmem:[#allocation5 + $0x3a8] sm:$0xff]
        %v471 = vld [vmem:[#allocation5 + $0x3b0] sm:$0xff]
        %v472 = vld [vmem:[#allocation5 + $0x3b8] sm:$0xff]
        %v473 = vld [vmem:[#allocation5 + $0x3c0] sm:$0xff]
        %v474 = vld [vmem:[#allocation5 + $0x3c8] sm:$0xff]
        %v475 = vld [vmem:[#allocation5 + $0x3d0] sm:$0xff]
        %v476 = vld [vmem:[#allocation5 + $0x3d8] sm:$0xff]
        %v477 = vld [vmem:[#allocation5 + $0x3e0] sm:$0xff]
        %v478 = vld [vmem:[#allocation5 + $0x3e8] sm:$0xff]
        %v479 = vld [vmem:[#allocation5 + $0x3f0] sm:$0xff]
        %v480 = vld [vmem:[#allocation5 + $0x3f8] sm:$0xff]
        %v481 = vld [vmem:[#allocation5 + $0x400] sm:$0xff]
        %v482 = vld [vmem:[#allocation5 + $0x408] sm:$0xff]
        %v483 = vld [vmem:[#allocation5 + $0x410] sm:$0xff]
        %v484 = vld [vmem:[#allocation5 + $0x418] sm:$0xff]
        %v485 = vld [vmem:[#allocation5 + $0x420] sm:$0xff]
        %v486 = vld [vmem:[#allocation5 + $0x428] sm:$0xff]
        %v487 = vld [vmem:[#allocation5 + $0x430] sm:$0xff]
        %v488 = vld [vmem:[#allocation5 + $0x438] sm:$0xff]
        %v489 = vld [vmem:[#allocation5 + $0x440] sm:$0xff]
        %v490 = vld [vmem:[#allocation5 + $0x448] sm:$0xff]
        %v491 = vld [vmem:[#allocation5 + $0x450] sm:$0xff]
        %v492 = vld [vmem:[#allocation5 + $0x458] sm:$0xff]
        %v493 = vld [vmem:[#allocation5 + $0x460] sm:$0xff]
        %v494 = vld [vmem:[#allocation5 + $0x468] sm:$0xff]
        %v495 = vld [vmem:[#allocation5 + $0x470] sm:$0xff]
        %v496 = vld [vmem:[#allocation5 + $0x478] sm:$0xff]
        %v497 = vld [vmem:[#allocation5 + $0x480] sm:$0xff]
        %v498 = vld [vmem:[#allocation5 + $0x488] sm:$0xff]
        %v499 = vld [vmem:[#allocation5 + $0x490] sm:$0xff]
        %v500 = vld [vmem:[#allocation5 + $0x498] sm:$0xff]
        %v501 = vld [vmem:[#allocation5 + $0x4a0] sm:$0xff]
        %v502 = vld [vmem:[#allocation5 + $0x4a8] sm:$0xff]
        %v503 = vld [vmem:[#allocation5 + $0x4b0] sm:$0xff]
        %v504 = vld [vmem:[#allocation5 + $0x4b8] sm:$0xff]
        %v505 = vld [vmem:[#allocation5 + $0x4c0] sm:$0xff]
        %v506 = vld [vmem:[#allocation5 + $0x4c8] sm:$0xff]
        %v507 = vld [vmem:[#allocation5 + $0x4d0] sm:$0xff]
        %v508 = vld [vmem:[#allocation5 + $0x4d8] sm:$0xff]
        %v509 = vld [vmem:[#allocation5 + $0x4e0] sm:$0xff]
        %v510 = vld [vmem:[#allocation5 + $0x4e8] sm:$0xff]
        %v511 = vld [vmem:[#allocation5 + $0x4f0] sm:$0xff]
        %v512 = vld [vmem:[#allocation5 + $0x4f8] sm:$0xff]
        %v513 = vld [vmem:[#allocation5 + $0x500] sm:$0xff]
        %v514 = vld [vmem:[#allocation5 + $0x508] sm:$0xff]
        %v515 = vld [vmem:[#allocation5 + $0x510] sm:$0xff]
        %v516 = vld [vmem:[#allocation5 + $0x518] sm:$0xff]
        %v517 = vld [vmem:[#allocation5 + $0x520] sm:$0xff]
        %v518 = vld [vmem:[#allocation5 + $0x528] sm:$0xff]
        %v519 = vld [vmem:[#allocation5 + $0x530] sm:$0xff]
        %v520 = vld [vmem:[#allocation5 + $0x538] sm:$0xff]
        %v521 = vld [vmem:[#allocation5 + $0x540] sm:$0xff]
        %v522 = vld [vmem:[#allocation5 + $0x548] sm:$0xff]
        %v523 = vld [vmem:[#allocation5 + $0x550] sm:$0xff]
        %v524 = vld [vmem:[#allocation5 + $0x558] sm:$0xff]
        %v525 = vld [vmem:[#allocation5 + $0x560] sm:$0xff]
        %v526 = vld [vmem:[#allocation5 + $0x568] sm:$0xff]
        %v527 = vld [vmem:[#allocation5 + $0x570] sm:$0xff]
        %v528 = vld [vmem:[#allocation5 + $0x578] sm:$0xff]
        %v529 = vld [vmem:[#allocation5 + $0x580] sm:$0xff]
        %v530 = vld [vmem:[#allocation5 + $0x588] sm:$0xff]
        %v531 = vld [vmem:[#allocation5 + $0x590] sm:$0xff]
        %v532 = vld [vmem:[#allocation5 + $0x598] sm:$0xff]
        %v533 = vld [vmem:[#allocation5 + $0x5a0] sm:$0xff]
        %v534 = vld [vmem:[#allocation5 + $0x5a8] sm:$0xff]
        %v535 = vld [vmem:[#allocation5 + $0x5b0] sm:$0xff]
        %v536 = vld [vmem:[#allocation5 + $0x5b8] sm:$0xff]
        %v537 = vld [vmem:[#allocation5 + $0x5c0] sm:$0xff]
        %v538 = vld [vmem:[#allocation5 + $0x5c8] sm:$0xff]
        %v539 = vld [vmem:[#allocation5 + $0x5d0] sm:$0xff]
        %v540 = vld [vmem:[#allocation5 + $0x5d8] sm:$0xff]
        %v541 = vld [vmem:[#allocation5 + $0x5e0] sm:$0xff]
        %v542 = vld [vmem:[#allocation5 + $0x5e8] sm:$0xff]
        %v543 = vld [vmem:[#allocation5 + $0x5f0] sm:$0xff]
        %v544 = vld [vmem:[#allocation5 + $0x5f8] sm:$0xff]
        %v545 = vld [vmem:[#allocation5 + $0x600] sm:$0xff]
        %v546 = vld [vmem:[#allocation5 + $0x608] sm:$0xff]
        %v547 = vld [vmem:[#allocation5 + $0x610] sm:$0xff]
        %v548 = vld [vmem:[#allocation5 + $0x618] sm:$0xff]
        %v549 = vld [vmem:[#allocation5 + $0x620] sm:$0xff]
        %v550 = vld [vmem:[#allocation5 + $0x628] sm:$0xff]
        %v551 = vld [vmem:[#allocation5 + $0x630] sm:$0xff]
        %v552 = vld [vmem:[#allocation5 + $0x638] sm:$0xff]
        %v553 = vld [vmem:[#allocation5 + $0x640] sm:$0xff]
        %v554 = vld [vmem:[#allocation5 + $0x648] sm:$0xff]
        %v555 = vld [vmem:[#allocation5 + $0x650] sm:$0xff]
        %v556 = vld [vmem:[#allocation5 + $0x658] sm:$0xff]
        %v557 = vld [vmem:[#allocation5 + $0x660] sm:$0xff]
        %v558 = vld [vmem:[#allocation5 + $0x668] sm:$0xff]
        %v559 = vld [vmem:[#allocation5 + $0x670] sm:$0xff]
        %v560 = vld [vmem:[#allocation5 + $0x678] sm:$0xff]
        %v561 = vld [vmem:[#allocation5 + $0x680] sm:$0xff]
        %v562 = vld [vmem:[#allocation5 + $0x688] sm:$0xff]
        %v563 = vld [vmem:[#allocation5 + $0x690] sm:$0xff]
        %v564 = vld [vmem:[#allocation5 + $0x698] sm:$0xff]
        %v565 = vld [vmem:[#allocation5 + $0x6a0] sm:$0xff]
        %v566 = vld [vmem:[#allocation5 + $0x6a8] sm:$0xff]
        %v567 = vld [vmem:[#allocation5 + $0x6b0] sm:$0xff]
        %v568 = vld [vmem:[#allocation5 + $0x6b8] sm:$0xff]
        %v569 = vld [vmem:[#allocation5 + $0x6c0] sm:$0xff]
        %v570 = vld [vmem:[#allocation5 + $0x6c8] sm:$0xff]
        %v571 = vld [vmem:[#allocation5 + $0x6d0] sm:$0xff]
        %v572 = vld [vmem:[#allocation5 + $0x6d8] sm:$0xff]
        %v573 = vld [vmem:[#allocation5 + $0x6e0] sm:$0xff]
        %v574 = vld [vmem:[#allocation5 + $0x6e8] sm:$0xff]
        %v575 = vld [vmem:[#allocation5 + $0x6f0] sm:$0xff]
        %v576 = vld [vmem:[#allocation5 + $0x6f8] sm:$0xff]
        %v577 = vld [vmem:[#allocation5 + $0x700] sm:$0xff]
        %v578 = vld [vmem:[#allocation5 + $0x708] sm:$0xff]
        %v579 = vld [vmem:[#allocation5 + $0x710] sm:$0xff]
        %v580 = vld [vmem:[#allocation5 + $0x718] sm:$0xff]
        %v581 = vld [vmem:[#allocation5 + $0x720] sm:$0xff]
        %v582 = vld [vmem:[#allocation5 + $0x728] sm:$0xff]
        %v583 = vld [vmem:[#allocation5 + $0x730] sm:$0xff]
        %v584 = vld [vmem:[#allocation5 + $0x738] sm:$0xff]
        %v585 = vld [vmem:[#allocation5 + $0x740] sm:$0xff]
        %v586 = vld [vmem:[#allocation5 + $0x748] sm:$0xff]
        %v587 = vld [vmem:[#allocation5 + $0x750] sm:$0xff]
        %v588 = vld [vmem:[#allocation5 + $0x758] sm:$0xff]
        %v589 = vld [vmem:[#allocation5 + $0x760] sm:$0xff]
        %v590 = vld [vmem:[#allocation5 + $0x768] sm:$0xff]
        %v591 = vld [vmem:[#allocation5 + $0x770] sm:$0xff]
        %v592 = vld [vmem:[#allocation5 + $0x778] sm:$0xff]
        %v593 = vld [vmem:[#allocation5 + $0x780] sm:$0xff]
        %v594 = vld [vmem:[#allocation5 + $0x788] sm:$0xff]
        %v595 = vld [vmem:[#allocation5 + $0x790] sm:$0xff]
        %v596 = vld [vmem:[#allocation5 + $0x798] sm:$0xff]
        %v597 = vld [vmem:[#allocation5 + $0x7a0] sm:$0xff]
        %v598 = vld [vmem:[#allocation5 + $0x7a8] sm:$0xff]
        %v599 = vld [vmem:[#allocation5 + $0x7b0] sm:$0xff]
        %v600 = vld [vmem:[#allocation5 + $0x7b8] sm:$0xff]
        %v601 = vld [vmem:[#allocation5 + $0x7c0] sm:$0xff]
        %v602 = vld [vmem:[#allocation5 + $0x7c8] sm:$0xff]
        %v603 = vld [vmem:[#allocation5 + $0x7d0] sm:$0xff]
        %v604 = vld [vmem:[#allocation5 + $0x7d8] sm:$0xff]
        %v605 = vld [vmem:[#allocation5 + $0x7e0] sm:$0xff]
        %v606 = vld [vmem:[#allocation5 + $0x7e8] sm:$0xff]
        %v607 = vld [vmem:[#allocation5 + $0x7f0] sm:$0xff]
        %v608 = vld [vmem:[#allocation5 + $0x7f8] sm:$0xff]
        %v609 = vld [vmem:[#allocation5 + $0x800] sm:$0xff]
        %v610 = vld [vmem:[#allocation5 + $0x808] sm:$0xff]
        %v611 = vld [vmem:[#allocation5 + $0x810] sm:$0xff]
        %v612 = vld [vmem:[#allocation5 + $0x818] sm:$0xff]
        %v613 = vld [vmem:[#allocation5 + $0x820] sm:$0xff]
        %v614 = vld [vmem:[#allocation5 + $0x828] sm:$0xff]
        %v615 = vld [vmem:[#allocation5 + $0x830] sm:$0xff]
        %v616 = vld [vmem:[#allocation5 + $0x838] sm:$0xff]
        %v617 = vld [vmem:[#allocation5 + $0x840] sm:$0xff]
        %v618 = vld [vmem:[#allocation5 + $0x848] sm:$0xff]
        %v619 = vld [vmem:[#allocation5 + $0x850] sm:$0xff]
        %v620 = vld [vmem:[#allocation5 + $0x858] sm:$0xff]
        %v621 = vld [vmem:[#allocation5 + $0x860] sm:$0xff]
        %v622 = vld [vmem:[#allocation5 + $0x868] sm:$0xff]
        %v623 = vld [vmem:[#allocation5 + $0x870] sm:$0xff]
        %v624 = vld [vmem:[#allocation5 + $0x878] sm:$0xff]
        %v625 = vld [vmem:[#allocation5 + $0x880] sm:$0xff]
        %v626 = vld [vmem:[#allocation5 + $0x888] sm:$0xff]
        %v627 = vld [vmem:[#allocation5 + $0x890] sm:$0xff]
        %v628 = vld [vmem:[#allocation5 + $0x898] sm:$0xff]
        %v629 = vld [vmem:[#allocation5 + $0x8a0] sm:$0xff]
        %v630 = vld [vmem:[#allocation5 + $0x8a8] sm:$0xff]
        %v631 = vld [vmem:[#allocation5 + $0x8b0] sm:$0xff]
        %v632 = vld [vmem:[#allocation5 + $0x8b8] sm:$0xff]
        %v633 = vld [vmem:[#allocation5 + $0x8c0] sm:$0xff]
        %v634 = vld [vmem:[#allocation5 + $0x8c8] sm:$0xff]
        %v635 = vld [vmem:[#allocation5 + $0x8d0] sm:$0xff]
        %v636 = vld [vmem:[#allocation5 + $0x8d8] sm:$0xff]
        %v637 = vld [vmem:[#allocation5 + $0x8e0] sm:$0xff]
        %v638 = vld [vmem:[#allocation5 + $0x8e8] sm:$0xff]
        %v639 = vld [vmem:[#allocation5 + $0x8f0] sm:$0xff]
        %v640 = vld [vmem:[#allocation5 + $0x8f8] sm:$0xff]
        %v641 = vld [vmem:[#allocation5 + $0x900] sm:$0xff]
        %v642 = vld [vmem:[#allocation5 + $0x908] sm:$0xff]
        %v643 = vld [vmem:[#allocation5 + $0x910] sm:$0xff]
        %v644 = vld [vmem:[#allocation5 + $0x918] sm:$0xff]
        %v645 = vld [vmem:[#allocation5 + $0x920] sm:$0xff]
        %v646 = vld [vmem:[#allocation5 + $0x928] sm:$0xff]
        %v647 = vld [vmem:[#allocation5 + $0x930] sm:$0xff]
        %v648 = vld [vmem:[#allocation5 + $0x938] sm:$0xff]
        %v649 = vld [vmem:[#allocation5 + $0x940] sm:$0xff]
        %v650 = vld [vmem:[#allocation5 + $0x948] sm:$0xff]
        %v651 = vld [vmem:[#allocation5 + $0x950] sm:$0xff]
        %v652 = vld [vmem:[#allocation5 + $0x958] sm:$0xff]
        %v653 = vld [vmem:[#allocation5 + $0x960] sm:$0xff]
        %v654 = vld [vmem:[#allocation5 + $0x968] sm:$0xff]
        %v655 = vld [vmem:[#allocation5 + $0x970] sm:$0xff]
        %v656 = vld [vmem:[#allocation5 + $0x978] sm:$0xff]
        %v657 = vld [vmem:[#allocation5 + $0x980] sm:$0xff]
        %v658 = vld [vmem:[#allocation5 + $0x988] sm:$0xff]
        %v659 = vld [vmem:[#allocation5 + $0x990] sm:$0xff]
        %v660 = vld [vmem:[#allocation5 + $0x998] sm:$0xff]
        %v661 = vld [vmem:[#allocation5 + $0x9a0] sm:$0xff]
        %v662 = vld [vmem:[#allocation5 + $0x9a8] sm:$0xff]
        %v663 = vld [vmem:[#allocation5 + $0x9b0] sm:$0xff]
        %v664 = vld [vmem:[#allocation5 + $0x9b8] sm:$0xff]
        %v665 = vld [vmem:[#allocation5 + $0x9c0] sm:$0xff]
        %v666 = vld [vmem:[#allocation5 + $0x9c8] sm:$0xff]
        %v667 = vld [vmem:[#allocation5 + $0x9d0] sm:$0xff]
        %v668 = vld [vmem:[#allocation5 + $0x9d8] sm:$0xff]
        %v669 = vld [vmem:[#allocation5 + $0x9e0] sm:$0xff]
        %v670 = vld [vmem:[#allocation5 + $0x9e8] sm:$0xff]
        %v671 = vld [vmem:[#allocation5 + $0x9f0] sm:$0xff]
        %v672 = vld [vmem:[#allocation5 + $0x9f8] sm:$0xff]
        %v673 = vld [vmem:[#allocation5 + $0xa00] sm:$0xff]
        %v674 = vld [vmem:[#allocation5 + $0xa08] sm:$0xff]
        %v675 = vld [vmem:[#allocation5 + $0xa10] sm:$0xff]
        %v676 = vld [vmem:[#allocation5 + $0xa18] sm:$0xff]
        %v677 = vld [vmem:[#allocation5 + $0xa20] sm:$0xff]
        %v678 = vld [vmem:[#allocation5 + $0xa28] sm:$0xff]
        %v679 = vld [vmem:[#allocation5 + $0xa30] sm:$0xff]
        %v680 = vld [vmem:[#allocation5 + $0xa38] sm:$0xff]
        %v681 = vld [vmem:[#allocation5 + $0xa40] sm:$0xff]
        %v682 = vld [vmem:[#allocation5 + $0xa48] sm:$0xff]
        %v683 = vld [vmem:[#allocation5 + $0xa50] sm:$0xff]
        %v684 = vld [vmem:[#allocation5 + $0xa58] sm:$0xff]
        %v685 = vld [vmem:[#allocation5 + $0xa60] sm:$0xff]
        %v686 = vld [vmem:[#allocation5 + $0xa68] sm:$0xff]
        %v687 = vld [vmem:[#allocation5 + $0xa70] sm:$0xff]
        %v688 = vld [vmem:[#allocation5 + $0xa78] sm:$0xff]
        %v689 = vld [vmem:[#allocation5 + $0xa80] sm:$0xff]
        %v690 = vld [vmem:[#allocation5 + $0xa88] sm:$0xff]
        %v691 = vld [vmem:[#allocation5 + $0xa90] sm:$0xff]
        %v692 = vld [vmem:[#allocation5 + $0xa98] sm:$0xff]
        %v693 = vld [vmem:[#allocation5 + $0xaa0] sm:$0xff]
        %v694 = vld [vmem:[#allocation5 + $0xaa8] sm:$0xff]
        %v695 = vld [vmem:[#allocation5 + $0xab0] sm:$0xff]
        %v696 = vld [vmem:[#allocation5 + $0xab8] sm:$0xff]
        %v697 = vld [vmem:[#allocation5 + $0xac0] sm:$0xff]
        %v698 = vld [vmem:[#allocation5 + $0xac8] sm:$0xff]
        %v699 = vld [vmem:[#allocation5 + $0xad0] sm:$0xff]
        %v700 = vld [vmem:[#allocation5 + $0xad8] sm:$0xff]
        %v701 = vld [vmem:[#allocation5 + $0xae0] sm:$0xff]
        %v702 = vld [vmem:[#allocation5 + $0xae8] sm:$0xff]
        %v703 = vld [vmem:[#allocation5 + $0xaf0] sm:$0xff]
        %v704 = vld [vmem:[#allocation5 + $0xaf8] sm:$0xff]
        %v705 = vld [vmem:[#allocation5 + $0xb00] sm:$0xff]
        %v706 = vld [vmem:[#allocation5 + $0xb08] sm:$0xff]
        %v707 = vld [vmem:[#allocation5 + $0xb10] sm:$0xff]
        %v708 = vld [vmem:[#allocation5 + $0xb18] sm:$0xff]
        %v709 = vld [vmem:[#allocation5 + $0xb20] sm:$0xff]
        %v710 = vld [vmem:[#allocation5 + $0xb28] sm:$0xff]
        %v711 = vld [vmem:[#allocation5 + $0xb30] sm:$0xff]
        %v712 = vld [vmem:[#allocation5 + $0xb38] sm:$0xff]
        %v713 = vld [vmem:[#allocation5 + $0xb40] sm:$0xff]
        %v714 = vld [vmem:[#allocation5 + $0xb48] sm:$0xff]
        %v715 = vld [vmem:[#allocation5 + $0xb50] sm:$0xff]
        %v716 = vld [vmem:[#allocation5 + $0xb58] sm:$0xff]
        %v717 = vld [vmem:[#allocation5 + $0xb60] sm:$0xff]
        %v718 = vld [vmem:[#allocation5 + $0xb68] sm:$0xff]
        %v719 = vld [vmem:[#allocation5 + $0xb70] sm:$0xff]
        %v720 = vld [vmem:[#allocation5 + $0xb78] sm:$0xff]
        %v721 = vld [vmem:[#allocation5 + $0xb80] sm:$0xff]
        %v722 = vld [vmem:[#allocation5 + $0xb88] sm:$0xff]
        %v723 = vld [vmem:[#allocation5 + $0xb90] sm:$0xff]
        %v724 = vld [vmem:[#allocation5 + $0xb98] sm:$0xff]
        %v725 = vld [vmem:[#allocation5 + $0xba0] sm:$0xff]
        %v726 = vld [vmem:[#allocation5 + $0xba8] sm:$0xff]
        %v727 = vld [vmem:[#allocation5 + $0xbb0] sm:$0xff]
        %v728 = vld [vmem:[#allocation5 + $0xbb8] sm:$0xff]
        %v729 = vld [vmem:[#allocation5 + $0xbc0] sm:$0xff]
        %v730 = vld [vmem:[#allocation5 + $0xbc8] sm:$0xff]
        %v731 = vld [vmem:[#allocation5 + $0xbd0] sm:$0xff]
        %v732 = vld [vmem:[#allocation5 + $0xbd8] sm:$0xff]
        %v733 = vld [vmem:[#allocation5 + $0xbe0] sm:$0xff]
        %v734 = vld [vmem:[#allocation5 + $0xbe8] sm:$0xff]
        %v735 = vld [vmem:[#allocation5 + $0xbf0] sm:$0xff]
        %v736 = vld [vmem:[#allocation5 + $0xbf8] sm:$0xff]
        %v737 = vld [vmem:[#allocation5 + $0xc00] sm:$0xff]
        %v738 = vld [vmem:[#allocation5 + $0xc08] sm:$0xff]
        %v739 = vld [vmem:[#allocation5 + $0xc10] sm:$0xff]
        %v740 = vld [vmem:[#allocation5 + $0xc18] sm:$0xff]
        %v741 = vld [vmem:[#allocation5 + $0xc20] sm:$0xff]
        %v742 = vld [vmem:[#allocation5 + $0xc28] sm:$0xff]
        %v743 = vld [vmem:[#allocation5 + $0xc30] sm:$0xff]
        %v744 = vld [vmem:[#allocation5 + $0xc38] sm:$0xff]
        %v745 = vld [vmem:[#allocation5 + $0xc40] sm:$0xff]
        %v746 = vld [vmem:[#allocation5 + $0xc48] sm:$0xff]
        %v747 = vld [vmem:[#allocation5 + $0xc50] sm:$0xff]
        %v748 = vld [vmem:[#allocation5 + $0xc58] sm:$0xff]
        %v749 = vld [vmem:[#allocation5 + $0xc60] sm:$0xff]
        %v750 = vld [vmem:[#allocation5 + $0xc68] sm:$0xff]
        %v751 = vld [vmem:[#allocation5 + $0xc70] sm:$0xff]
        %v752 = vld [vmem:[#allocation5 + $0xc78] sm:$0xff]
        %v753 = vld [vmem:[#allocation5 + $0xc80] sm:$0xff]
        %v754 = vld [vmem:[#allocation5 + $0xc88] sm:$0xff]
        %v755 = vld [vmem:[#allocation5 + $0xc90] sm:$0xff]
        %v756 = vld [vmem:[#allocation5 + $0xc98] sm:$0xff]
        %v757 = vld [vmem:[#allocation5 + $0xca0] sm:$0xff]
        %v758 = vld [vmem:[#allocation5 + $0xca8] sm:$0xff]
        %v759 = vld [vmem:[#allocation5 + $0xcb0] sm:$0xff]
        %v760 = vld [vmem:[#allocation5 + $0xcb8] sm:$0xff]
        %v761 = vld [vmem:[#allocation5 + $0xcc0] sm:$0xff]
        %v762 = vld [vmem:[#allocation5 + $0xcc8] sm:$0xff]
        %v763 = vld [vmem:[#allocation5 + $0xcd0] sm:$0xff]
        %v764 = vld [vmem:[#allocation5 + $0xcd8] sm:$0xff]
        %v765 = vld [vmem:[#allocation5 + $0xce0] sm:$0xff]
        %v766 = vld [vmem:[#allocation5 + $0xce8] sm:$0xff]
        %v767 = vld [vmem:[#allocation5 + $0xcf0] sm:$0xff]
        %v768 = vld [vmem:[#allocation5 + $0xcf8] sm:$0xff]
        %v769 = vld [vmem:[#allocation5 + $0xd00] sm:$0xff]
        %v770 = vld [vmem:[#allocation5 + $0xd08] sm:$0xff]
        %v771 = vld [vmem:[#allocation5 + $0xd10] sm:$0xff]
        %v772 = vld [vmem:[#allocation5 + $0xd18] sm:$0xff]
        %v773 = vld [vmem:[#allocation5 + $0xd20] sm:$0xff]
        %v774 = vld [vmem:[#allocation5 + $0xd28] sm:$0xff]
        %v775 = vld [vmem:[#allocation5 + $0xd30] sm:$0xff]
        %v776 = vld [vmem:[#allocation5 + $0xd38] sm:$0xff]
        %v777 = vld [vmem:[#allocation5 + $0xd40] sm:$0xff]
        %v778 = vld [vmem:[#allocation5 + $0xd48] sm:$0xff]
        %v779 = vld [vmem:[#allocation5 + $0xd50] sm:$0xff]
        %v780 = vld [vmem:[#allocation5 + $0xd58] sm:$0xff]
        %v781 = vld [vmem:[#allocation5 + $0xd60] sm:$0xff]
        %v782 = vld [vmem:[#allocation5 + $0xd68] sm:$0xff]
        %v783 = vld [vmem:[#allocation5 + $0xd70] sm:$0xff]
        %v784 = vld [vmem:[#allocation5 + $0xd78] sm:$0xff]
        %v785 = vld [vmem:[#allocation5 + $0xd80] sm:$0xff]
        %v786 = vld [vmem:[#allocation5 + $0xd88] sm:$0xff]
        %v787 = vld [vmem:[#allocation5 + $0xd90] sm:$0xff]
        %v788 = vld [vmem:[#allocation5 + $0xd98] sm:$0xff]
        %v789 = vld [vmem:[#allocation5 + $0xda0] sm:$0xff]
        %v790 = vld [vmem:[#allocation5 + $0xda8] sm:$0xff]
        %v791 = vld [vmem:[#allocation5 + $0xdb0] sm:$0xff]
        %v792 = vld [vmem:[#allocation5 + $0xdb8] sm:$0xff]
        %v793 = vld [vmem:[#allocation5 + $0xdc0] sm:$0xff]
        %v794 = vld [vmem:[#allocation5 + $0xdc8] sm:$0xff]
        %v795 = vld [vmem:[#allocation5 + $0xdd0] sm:$0xff]
        %v796 = vld [vmem:[#allocation5 + $0xdd8] sm:$0xff]
        %v797 = vld [vmem:[#allocation5 + $0xde0] sm:$0xff]
        %v798 = vld [vmem:[#allocation5 + $0xde8] sm:$0xff]
        %v799 = vld [vmem:[#allocation5 + $0xdf0] sm:$0xff]
        %v800 = vld [vmem:[#allocation5 + $0xdf8] sm:$0xff]
        %v801 = vld [vmem:[#allocation5 + $0xe00] sm:$0xff]
        %v802 = vld [vmem:[#allocation5 + $0xe08] sm:$0xff]
        %v803 = vld [vmem:[#allocation5 + $0xe10] sm:$0xff]
        %v804 = vld [vmem:[#allocation5 + $0xe18] sm:$0xff]
        %v805 = vld [vmem:[#allocation5 + $0xe20] sm:$0xff]
        %v806 = vld [vmem:[#allocation5 + $0xe28] sm:$0xff]
        %v807 = vld [vmem:[#allocation5 + $0xe30] sm:$0xff]
        %v808 = vld [vmem:[#allocation5 + $0xe38] sm:$0xff]
        %v809 = vld [vmem:[#allocation5 + $0xe40] sm:$0xff]
        %v810 = vld [vmem:[#allocation5 + $0xe48] sm:$0xff]
        %v811 = vld [vmem:[#allocation5 + $0xe50] sm:$0xff]
        %v812 = vld [vmem:[#allocation5 + $0xe58] sm:$0xff]
        %v813 = vld [vmem:[#allocation5 + $0xe60] sm:$0xff]
        %v814 = vld [vmem:[#allocation5 + $0xe68] sm:$0xff]
        %v815 = vld [vmem:[#allocation5 + $0xe70] sm:$0xff]
        %v816 = vld [vmem:[#allocation5 + $0xe78] sm:$0xff]
        %v817 = vld [vmem:[#allocation5 + $0xe80] sm:$0xff]
        %v818 = vld [vmem:[#allocation5 + $0xe88] sm:$0xff]
        %v819 = vld [vmem:[#allocation5 + $0xe90] sm:$0xff]
        %v820 = vld [vmem:[#allocation5 + $0xe98] sm:$0xff]
        %v821 = vld [vmem:[#allocation5 + $0xea0] sm:$0xff]
        %v822 = vld [vmem:[#allocation5 + $0xea8] sm:$0xff]
        %v823 = vld [vmem:[#allocation5 + $0xeb0] sm:$0xff]
        %v824 = vld [vmem:[#allocation5 + $0xeb8] sm:$0xff]
        %v825 = vld [vmem:[#allocation5 + $0xec0] sm:$0xff]
        %v826 = vld [vmem:[#allocation5 + $0xec8] sm:$0xff]
        %v827 = vld [vmem:[#allocation5 + $0xed0] sm:$0xff]
        %v828 = vld [vmem:[#allocation5 + $0xed8] sm:$0xff]
        %v829 = vld [vmem:[#allocation5 + $0xee0] sm:$0xff]
        %v830 = vld [vmem:[#allocation5 + $0xee8] sm:$0xff]
        %v831 = vld [vmem:[#allocation5 + $0xef0] sm:$0xff]
        %v832 = vld [vmem:[#allocation5 + $0xef8] sm:$0xff]
        %v833 = vld [vmem:[#allocation5 + $0xf00] sm:$0xff]
        %v834 = vld [vmem:[#allocation5 + $0xf08] sm:$0xff]
        %v835 = vld [vmem:[#allocation5 + $0xf10] sm:$0xff]
        %v836 = vld [vmem:[#allocation5 + $0xf18] sm:$0xff]
        %v837 = vld [vmem:[#allocation5 + $0xf20] sm:$0xff]
        %v838 = vld [vmem:[#allocation5 + $0xf28] sm:$0xff]
        %v839 = vld [vmem:[#allocation5 + $0xf30] sm:$0xff]
        %v840 = vld [vmem:[#allocation5 + $0xf38] sm:$0xff]
        %v841 = vld [vmem:[#allocation5 + $0xf40] sm:$0xff]
        %v842 = vld [vmem:[#allocation5 + $0xf48] sm:$0xff]
        %v843 = vld [vmem:[#allocation5 + $0xf50] sm:$0xff]
        %v844 = vld [vmem:[#allocation5 + $0xf58] sm:$0xff]
        %v845 = vld [vmem:[#allocation5 + $0xf60] sm:$0xff]
        %v846 = vld [vmem:[#allocation5 + $0xf68] sm:$0xff]
        %v847 = vld [vmem:[#allocation5 + $0xf70] sm:$0xff]
        %v848 = vld [vmem:[#allocation5 + $0xf78] sm:$0xff]
        %v849 = vld [vmem:[#allocation5 + $0xf80] sm:$0xff]
        %v850 = vld [vmem:[#allocation5 + $0xf88] sm:$0xff]
        %v851 = vld [vmem:[#allocation5 + $0xf90] sm:$0xff]
        %v852 = vld [vmem:[#allocation5 + $0xf98] sm:$0xff]
        %v853 = vld [vmem:[#allocation5 + $0xfa0] sm:$0xff]
        %v854 = vld [vmem:[#allocation5 + $0xfa8] sm:$0xff]
        %v855 = vld [vmem:[#allocation5 + $0xfb0] sm:$0xff]
        %v856 = vld [vmem:[#allocation5 + $0xfb8] sm:$0xff]
        %v857 = vld [vmem:[#allocation5 + $0xfc0] sm:$0xff]
        %v858 = vld [vmem:[#allocation5 + $0xfc8] sm:$0xff]
        %v859 = vld [vmem:[#allocation5 + $0xfd0] sm:$0xff]
        %v860 = vld [vmem:[#allocation5 + $0xfd8] sm:$0xff]
        %v861 = vld [vmem:[#allocation5 + $0xfe0] sm:$0xff]
        %v862 = vld [vmem:[#allocation5 + $0xfe8] sm:$0xff]
        %v863 = vld [vmem:[#allocation5 + $0xff0] sm:$0xff]
        %v864 = vld [vmem:[#allocation5 + $0xff8] sm:$0xff]
        %v865 = vld [vmem:[#allocation7] sm:$0xff]
        %v867 = vlaneseq
        %v868 = vshrl.u32 %v867, 7
        %v869 = vsub.s32 0, %v868
        %v870 = vrot.slane %v865, %v869
        %v871 = vlaneseq
        %v872 = vshrl.u32 %v871, 7
        %v873 = vsub.s32 1, %v872
        %v874 = vrot.slane %v865, %v873
        %v875 = vlaneseq
        %v876 = vshrl.u32 %v875, 7
        %v877 = vsub.s32 2, %v876
        %v878 = vrot.slane %v865, %v877
        %v879 = vlaneseq
        %v880 = vshrl.u32 %v879, 7
        %v881 = vsub.s32 3, %v880
        %v882 = vrot.slane %v865, %v881
        %v883 = vlaneseq
        %v884 = vshrl.u32 %v883, 7
        %v885 = vsub.s32 4, %v884
        %v886 = vrot.slane %v865, %v885
        %v887 = vlaneseq
        %v888 = vshrl.u32 %v887, 7
        %v889 = vsub.s32 5, %v888
        %v890 = vrot.slane %v865, %v889
        %v891 = vlaneseq
        %v892 = vshrl.u32 %v891, 7
        %v893 = vsub.s32 6, %v892
        %v894 = vrot.slane %v865, %v893
        %v895 = vlaneseq
        %v896 = vshrl.u32 %v895, 7
        %v897 = vsub.s32 7, %v896
        %v898 = vrot.slane %v865, %v897
        %v971 = vunpack.c.l.b16 %v289
        %v972 = vunpack.c.h.b16 %v289
        %v973 = vunpack.c.l.b16 %v290
        %v974 = vunpack.c.h.b16 %v290
        %v975 = vunpack.c.l.b16 %v291
        %v976 = vunpack.c.h.b16 %v291
        %v977 = vunpack.c.l.b16 %v292
        %v978 = vunpack.c.h.b16 %v292
        %v979 = vunpack.c.l.b16 %v293
        %v980 = vunpack.c.h.b16 %v293
        %v981 = vunpack.c.l.b16 %v294
        %v982 = vunpack.c.h.b16 %v294
        %v983 = vunpack.c.l.b16 %v295
        %v984 = vunpack.c.h.b16 %v295
        %v985 = vunpack.c.l.b16 %v296
        %v986 = vunpack.c.h.b16 %v296
        %v987 = vunpack.c.l.b16 %v297
        %v988 = vunpack.c.h.b16 %v297
        %v989 = vunpack.c.l.b16 %v298
        %v990 = vunpack.c.h.b16 %v298
        %v991 = vunpack.c.l.b16 %v299
        %v992 = vunpack.c.h.b16 %v299
        %v993 = vunpack.c.l.b16 %v300
        %v994 = vunpack.c.h.b16 %v300
        %v995 = vunpack.c.l.b16 %v301
        %v996 = vunpack.c.h.b16 %v301
        %v997 = vunpack.c.l.b16 %v302
        %v998 = vunpack.c.h.b16 %v302
        %v999 = vunpack.c.l.b16 %v303
        %v1000 = vunpack.c.h.b16 %v303
        %v1001 = vunpack.c.l.b16 %v304
        %v1002 = vunpack.c.h.b16 %v304
        %v1003 = vunpack.c.l.b16 %v305
        %v1004 = vunpack.c.h.b16 %v305
        %v1005 = vunpack.c.l.b16 %v306
        %v1006 = vunpack.c.h.b16 %v306
        %v1007 = vunpack.c.l.b16 %v307
        %v1008 = vunpack.c.h.b16 %v307
        %v1009 = vunpack.c.l.b16 %v308
        %v1010 = vunpack.c.h.b16 %v308
        %v1011 = vunpack.c.l.b16 %v309
        %v1012 = vunpack.c.h.b16 %v309
        %v1013 = vunpack.c.l.b16 %v310
        %v1014 = vunpack.c.h.b16 %v310
        %v1015 = vunpack.c.l.b16 %v311
        %v1016 = vunpack.c.h.b16 %v311
        %v1017 = vunpack.c.l.b16 %v312
        %v1018 = vunpack.c.h.b16 %v312
        %v1019 = vunpack.c.l.b16 %v313
        %v1020 = vunpack.c.h.b16 %v313
        %v1021 = vunpack.c.l.b16 %v314
        %v1022 = vunpack.c.h.b16 %v314
        %v1023 = vunpack.c.l.b16 %v315
        %v1024 = vunpack.c.h.b16 %v315
        %v1025 = vunpack.c.l.b16 %v316
        %v1026 = vunpack.c.h.b16 %v316
        %v1027 = vunpack.c.l.b16 %v317
        %v1028 = vunpack.c.h.b16 %v317
        %v1029 = vunpack.c.l.b16 %v318
        %v1030 = vunpack.c.h.b16 %v318
        %v1031 = vunpack.c.l.b16 %v319
        %v1032 = vunpack.c.h.b16 %v319
        %v1033 = vunpack.c.l.b16 %v320
        %v1034 = vunpack.c.h.b16 %v320
        %v1035 = vunpack.c.l.b16 %v321
        %v1036 = vunpack.c.h.b16 %v321
        %v1037 = vunpack.c.l.b16 %v322
        %v1038 = vunpack.c.h.b16 %v322
        %v1039 = vunpack.c.l.b16 %v323
        %v1040 = vunpack.c.h.b16 %v323
        %v1041 = vunpack.c.l.b16 %v324
        %v1042 = vunpack.c.h.b16 %v324
        %v1043 = vunpack.c.l.b16 %v325
        %v1044 = vunpack.c.h.b16 %v325
        %v1045 = vunpack.c.l.b16 %v326
        %v1046 = vunpack.c.h.b16 %v326
        %v1047 = vunpack.c.l.b16 %v327
        %v1048 = vunpack.c.h.b16 %v327
        %v1049 = vunpack.c.l.b16 %v328
        %v1050 = vunpack.c.h.b16 %v328
        %v1051 = vunpack.c.l.b16 %v329
        %v1052 = vunpack.c.h.b16 %v329
        %v1053 = vunpack.c.l.b16 %v330
        %v1054 = vunpack.c.h.b16 %v330
        %v1055 = vunpack.c.l.b16 %v331
        %v1056 = vunpack.c.h.b16 %v331
        %v1057 = vunpack.c.l.b16 %v332
        %v1058 = vunpack.c.h.b16 %v332
        %v1059 = vunpack.c.l.b16 %v333
        %v1060 = vunpack.c.h.b16 %v333
        %v1061 = vunpack.c.l.b16 %v334
        %v1062 = vunpack.c.h.b16 %v334
        %v1063 = vunpack.c.l.b16 %v335
        %v1064 = vunpack.c.h.b16 %v335
        %v1065 = vunpack.c.l.b16 %v336
        %v1066 = vunpack.c.h.b16 %v336
        %v1067 = vunpack.c.l.b16 %v337
        %v1068 = vunpack.c.h.b16 %v337
        %v1069 = vunpack.c.l.b16 %v338
        %v1070 = vunpack.c.h.b16 %v338
        %v1071 = vunpack.c.l.b16 %v339
        %v1072 = vunpack.c.h.b16 %v339
        %v1073 = vunpack.c.l.b16 %v340
        %v1074 = vunpack.c.h.b16 %v340
        %v1075 = vunpack.c.l.b16 %v341
        %v1076 = vunpack.c.h.b16 %v341
        %v1077 = vunpack.c.l.b16 %v342
        %v1078 = vunpack.c.h.b16 %v342
        %v1079 = vunpack.c.l.b16 %v343
        %v1080 = vunpack.c.h.b16 %v343
        %v1081 = vunpack.c.l.b16 %v344
        %v1082 = vunpack.c.h.b16 %v344
        %v1083 = vunpack.c.l.b16 %v345
        %v1084 = vunpack.c.h.b16 %v345
        %v1085 = vunpack.c.l.b16 %v346
        %v1086 = vunpack.c.h.b16 %v346
        %v1087 = vunpack.c.l.b16 %v347
        %v1088 = vunpack.c.h.b16 %v347
        %v1089 = vunpack.c.l.b16 %v348
        %v1090 = vunpack.c.h.b16 %v348
        %v1091 = vunpack.c.l.b16 %v349
        %v1092 = vunpack.c.h.b16 %v349
        %v1093 = vunpack.c.l.b16 %v350
        %v1094 = vunpack.c.h.b16 %v350
        %v1095 = vunpack.c.l.b16 %v351
        %v1096 = vunpack.c.h.b16 %v351
        %v1097 = vunpack.c.l.b16 %v352
        %v1098 = vunpack.c.h.b16 %v352
        %v1099 = vpack.c.b16 %v979, %v971
        %v1100 = vpack.c.b16 %v980, %v972
        %v1101 = vpack.c.b16 %v981, %v973
        %v1102 = vpack.c.b16 %v982, %v974
        %v1103 = vpack.c.b16 %v983, %v975
        %v1104 = vpack.c.b16 %v984, %v976
        %v1105 = vpack.c.b16 %v985, %v977
        %v1106 = vpack.c.b16 %v986, %v978
        %v1107 = vpack.c.b16 %v995, %v987
        %v1108 = vpack.c.b16 %v996, %v988
        %v1109 = vpack.c.b16 %v997, %v989
        %v1110 = vpack.c.b16 %v998, %v990
        %v1111 = vpack.c.b16 %v999, %v991
        %v1112 = vpack.c.b16 %v1000, %v992
        %v1113 = vpack.c.b16 %v1001, %v993
        %v1114 = vpack.c.b16 %v1002, %v994
        %v1115 = vpack.c.b16 %v1011, %v1003
        %v1116 = vpack.c.b16 %v1012, %v1004
        %v1117 = vpack.c.b16 %v1013, %v1005
        %v1118 = vpack.c.b16 %v1014, %v1006
        %v1119 = vpack.c.b16 %v1015, %v1007
        %v1120 = vpack.c.b16 %v1016, %v1008
        %v1121 = vpack.c.b16 %v1017, %v1009
        %v1122 = vpack.c.b16 %v1018, %v1010
        %v1123 = vpack.c.b16 %v1027, %v1019
        %v1124 = vpack.c.b16 %v1028, %v1020
        %v1125 = vpack.c.b16 %v1029, %v1021
        %v1126 = vpack.c.b16 %v1030, %v1022
        %v1127 = vpack.c.b16 %v1031, %v1023
        %v1128 = vpack.c.b16 %v1032, %v1024
        %v1129 = vpack.c.b16 %v1033, %v1025
        %v1130 = vpack.c.b16 %v1034, %v1026
        %v1131 = vpack.c.b16 %v1043, %v1035
        %v1132 = vpack.c.b16 %v1044, %v1036
        %v1133 = vpack.c.b16 %v1045, %v1037
        %v1134 = vpack.c.b16 %v1046, %v1038
        %v1135 = vpack.c.b16 %v1047, %v1039
        %v1136 = vpack.c.b16 %v1048, %v1040
        %v1137 = vpack.c.b16 %v1049, %v1041
        %v1138 = vpack.c.b16 %v1050, %v1042
        %v1139 = vpack.c.b16 %v1059, %v1051
        %v1140 = vpack.c.b16 %v1060, %v1052
        %v1141 = vpack.c.b16 %v1061, %v1053
        %v1142 = vpack.c.b16 %v1062, %v1054
        %v1143 = vpack.c.b16 %v1063, %v1055
        %v1144 = vpack.c.b16 %v1064, %v1056
        %v1145 = vpack.c.b16 %v1065, %v1057
        %v1146 = vpack.c.b16 %v1066, %v1058
        %v1147 = vpack.c.b16 %v1075, %v1067
        %v1148 = vpack.c.b16 %v1076, %v1068
        %v1149 = vpack.c.b16 %v1077, %v1069
        %v1150 = vpack.c.b16 %v1078, %v1070
        %v1151 = vpack.c.b16 %v1079, %v1071
        %v1152 = vpack.c.b16 %v1080, %v1072
        %v1153 = vpack.c.b16 %v1081, %v1073
        %v1154 = vpack.c.b16 %v1082, %v1074
        %v1155 = vpack.c.b16 %v1091, %v1083
        %v1156 = vpack.c.b16 %v1092, %v1084
        %v1157 = vpack.c.b16 %v1093, %v1085
        %v1158 = vpack.c.b16 %v1094, %v1086
        %v1159 = vpack.c.b16 %v1095, %v1087
        %v1160 = vpack.c.b16 %v1096, %v1088
        %v1161 = vpack.c.b16 %v1097, %v1089
        %v1162 = vpack.c.b16 %v1098, %v1090
        %v1739 = vunpack.c.l.b16 %v353
        %v1740 = vunpack.c.h.b16 %v353
        %v1741 = vunpack.c.l.b16 %v354
        %v1742 = vunpack.c.h.b16 %v354
        %v1743 = vunpack.c.l.b16 %v355
        %v1744 = vunpack.c.h.b16 %v355
        %v1745 = vunpack.c.l.b16 %v356
        %v1746 = vunpack.c.h.b16 %v356
        %v1747 = vunpack.c.l.b16 %v357
        %v1748 = vunpack.c.h.b16 %v357
        %v1749 = vunpack.c.l.b16 %v358
        %v1750 = vunpack.c.h.b16 %v358
        %v1751 = vunpack.c.l.b16 %v359
        %v1752 = vunpack.c.h.b16 %v359
        %v1753 = vunpack.c.l.b16 %v360
        %v1754 = vunpack.c.h.b16 %v360
        %v1755 = vunpack.c.l.b16 %v361
        %v1756 = vunpack.c.h.b16 %v361
        %v1757 = vunpack.c.l.b16 %v362
        %v1758 = vunpack.c.h.b16 %v362
        %v1759 = vunpack.c.l.b16 %v363
        %v1760 = vunpack.c.h.b16 %v363
        %v1761 = vunpack.c.l.b16 %v364
        %v1762 = vunpack.c.h.b16 %v364
        %v1763 = vunpack.c.l.b16 %v365
        %v1764 = vunpack.c.h.b16 %v365
        %v1765 = vunpack.c.l.b16 %v366
        %v1766 = vunpack.c.h.b16 %v366
        %v1767 = vunpack.c.l.b16 %v367
        %v1768 = vunpack.c.h.b16 %v367
        %v1769 = vunpack.c.l.b16 %v368
        %v1770 = vunpack.c.h.b16 %v368
        %v1771 = vunpack.c.l.b16 %v369
        %v1772 = vunpack.c.h.b16 %v369
        %v1773 = vunpack.c.l.b16 %v370
        %v1774 = vunpack.c.h.b16 %v370
        %v1775 = vunpack.c.l.b16 %v371
        %v1776 = vunpack.c.h.b16 %v371
        %v1777 = vunpack.c.l.b16 %v372
        %v1778 = vunpack.c.h.b16 %v372
        %v1779 = vunpack.c.l.b16 %v373
        %v1780 = vunpack.c.h.b16 %v373
        %v1781 = vunpack.c.l.b16 %v374
        %v1782 = vunpack.c.h.b16 %v374
        %v1783 = vunpack.c.l.b16 %v375
        %v1784 = vunpack.c.h.b16 %v375
        %v1785 = vunpack.c.l.b16 %v376
        %v1786 = vunpack.c.h.b16 %v376
        %v1787 = vunpack.c.l.b16 %v377
        %v1788 = vunpack.c.h.b16 %v377
        %v1789 = vunpack.c.l.b16 %v378
        %v1790 = vunpack.c.h.b16 %v378
        %v1791 = vunpack.c.l.b16 %v379
        %v1792 = vunpack.c.h.b16 %v379
        %v1793 = vunpack.c.l.b16 %v380
        %v1794 = vunpack.c.h.b16 %v380
        %v1795 = vunpack.c.l.b16 %v381
        %v1796 = vunpack.c.h.b16 %v381
        %v1797 = vunpack.c.l.b16 %v382
        %v1798 = vunpack.c.h.b16 %v382
        %v1799 = vunpack.c.l.b16 %v383
        %v1800 = vunpack.c.h.b16 %v383
        %v1801 = vunpack.c.l.b16 %v384
        %v1802 = vunpack.c.h.b16 %v384
        %v1803 = vunpack.c.l.b16 %v385
        %v1804 = vunpack.c.h.b16 %v385
        %v1805 = vunpack.c.l.b16 %v386
        %v1806 = vunpack.c.h.b16 %v386
        %v1807 = vunpack.c.l.b16 %v387
        %v1808 = vunpack.c.h.b16 %v387
        %v1809 = vunpack.c.l.b16 %v388
        %v1810 = vunpack.c.h.b16 %v388
        %v1811 = vunpack.c.l.b16 %v389
        %v1812 = vunpack.c.h.b16 %v389
        %v1813 = vunpack.c.l.b16 %v390
        %v1814 = vunpack.c.h.b16 %v390
        %v1815 = vunpack.c.l.b16 %v391
        %v1816 = vunpack.c.h.b16 %v391
        %v1817 = vunpack.c.l.b16 %v392
        %v1818 = vunpack.c.h.b16 %v392
        %v1819 = vunpack.c.l.b16 %v393
        %v1820 = vunpack.c.h.b16 %v393
        %v1821 = vunpack.c.l.b16 %v394
        %v1822 = vunpack.c.h.b16 %v394
        %v1823 = vunpack.c.l.b16 %v395
        %v1824 = vunpack.c.h.b16 %v395
        %v1825 = vunpack.c.l.b16 %v396
        %v1826 = vunpack.c.h.b16 %v396
        %v1827 = vunpack.c.l.b16 %v397
        %v1828 = vunpack.c.h.b16 %v397
        %v1829 = vunpack.c.l.b16 %v398
        %v1830 = vunpack.c.h.b16 %v398
        %v1831 = vunpack.c.l.b16 %v399
        %v1832 = vunpack.c.h.b16 %v399
        %v1833 = vunpack.c.l.b16 %v400
        %v1834 = vunpack.c.h.b16 %v400
        %v1835 = vunpack.c.l.b16 %v401
        %v1836 = vunpack.c.h.b16 %v401
        %v1837 = vunpack.c.l.b16 %v402
        %v1838 = vunpack.c.h.b16 %v402
        %v1839 = vunpack.c.l.b16 %v403
        %v1840 = vunpack.c.h.b16 %v403
        %v1841 = vunpack.c.l.b16 %v404
        %v1842 = vunpack.c.h.b16 %v404
        %v1843 = vunpack.c.l.b16 %v405
        %v1844 = vunpack.c.h.b16 %v405
        %v1845 = vunpack.c.l.b16 %v406
        %v1846 = vunpack.c.h.b16 %v406
        %v1847 = vunpack.c.l.b16 %v407
        %v1848 = vunpack.c.h.b16 %v407
        %v1849 = vunpack.c.l.b16 %v408
        %v1850 = vunpack.c.h.b16 %v408
        %v1851 = vunpack.c.l.b16 %v409
        %v1852 = vunpack.c.h.b16 %v409
        %v1853 = vunpack.c.l.b16 %v410
        %v1854 = vunpack.c.h.b16 %v410
        %v1855 = vunpack.c.l.b16 %v411
        %v1856 = vunpack.c.h.b16 %v411
        %v1857 = vunpack.c.l.b16 %v412
        %v1858 = vunpack.c.h.b16 %v412
        %v1859 = vunpack.c.l.b16 %v413
        %v1860 = vunpack.c.h.b16 %v413
        %v1861 = vunpack.c.l.b16 %v414
        %v1862 = vunpack.c.h.b16 %v414
        %v1863 = vunpack.c.l.b16 %v415
        %v1864 = vunpack.c.h.b16 %v415
        %v1865 = vunpack.c.l.b16 %v416
        %v1866 = vunpack.c.h.b16 %v416
        %v1867 = vunpack.c.l.b16 %v417
        %v1868 = vunpack.c.h.b16 %v417
        %v1869 = vunpack.c.l.b16 %v418
        %v1870 = vunpack.c.h.b16 %v418
        %v1871 = vunpack.c.l.b16 %v419
        %v1872 = vunpack.c.h.b16 %v419
        %v1873 = vunpack.c.l.b16 %v420
        %v1874 = vunpack.c.h.b16 %v420
        %v1875 = vunpack.c.l.b16 %v421
        %v1876 = vunpack.c.h.b16 %v421
        %v1877 = vunpack.c.l.b16 %v422
        %v1878 = vunpack.c.h.b16 %v422
        %v1879 = vunpack.c.l.b16 %v423
        %v1880 = vunpack.c.h.b16 %v423
        %v1881 = vunpack.c.l.b16 %v424
        %v1882 = vunpack.c.h.b16 %v424
        %v1883 = vunpack.c.l.b16 %v425
        %v1884 = vunpack.c.h.b16 %v425
        %v1885 = vunpack.c.l.b16 %v426
        %v1886 = vunpack.c.h.b16 %v426
        %v1887 = vunpack.c.l.b16 %v427
        %v1888 = vunpack.c.h.b16 %v427
        %v1889 = vunpack.c.l.b16 %v428
        %v1890 = vunpack.c.h.b16 %v428
        %v1891 = vunpack.c.l.b16 %v429
        %v1892 = vunpack.c.h.b16 %v429
        %v1893 = vunpack.c.l.b16 %v430
        %v1894 = vunpack.c.h.b16 %v430
        %v1895 = vunpack.c.l.b16 %v431
        %v1896 = vunpack.c.h.b16 %v431
        %v1897 = vunpack.c.l.b16 %v432
        %v1898 = vunpack.c.h.b16 %v432
        %v1899 = vunpack.c.l.b16 %v433
        %v1900 = vunpack.c.h.b16 %v433
        %v1901 = vunpack.c.l.b16 %v434
        %v1902 = vunpack.c.h.b16 %v434
        %v1903 = vunpack.c.l.b16 %v435
        %v1904 = vunpack.c.h.b16 %v435
        %v1905 = vunpack.c.l.b16 %v436
        %v1906 = vunpack.c.h.b16 %v436
        %v1907 = vunpack.c.l.b16 %v437
        %v1908 = vunpack.c.h.b16 %v437
        %v1909 = vunpack.c.l.b16 %v438
        %v1910 = vunpack.c.h.b16 %v438
        %v1911 = vunpack.c.l.b16 %v439
        %v1912 = vunpack.c.h.b16 %v439
        %v1913 = vunpack.c.l.b16 %v440
        %v1914 = vunpack.c.h.b16 %v440
        %v1915 = vunpack.c.l.b16 %v441
        %v1916 = vunpack.c.h.b16 %v441
        %v1917 = vunpack.c.l.b16 %v442
        %v1918 = vunpack.c.h.b16 %v442
        %v1919 = vunpack.c.l.b16 %v443
        %v1920 = vunpack.c.h.b16 %v443
        %v1921 = vunpack.c.l.b16 %v444
        %v1922 = vunpack.c.h.b16 %v444
        %v1923 = vunpack.c.l.b16 %v445
        %v1924 = vunpack.c.h.b16 %v445
        %v1925 = vunpack.c.l.b16 %v446
        %v1926 = vunpack.c.h.b16 %v446
        %v1927 = vunpack.c.l.b16 %v447
        %v1928 = vunpack.c.h.b16 %v447
        %v1929 = vunpack.c.l.b16 %v448
        %v1930 = vunpack.c.h.b16 %v448
        %v1931 = vunpack.c.l.b16 %v449
        %v1932 = vunpack.c.h.b16 %v449
        %v1933 = vunpack.c.l.b16 %v450
        %v1934 = vunpack.c.h.b16 %v450
        %v1935 = vunpack.c.l.b16 %v451
        %v1936 = vunpack.c.h.b16 %v451
        %v1937 = vunpack.c.l.b16 %v452
        %v1938 = vunpack.c.h.b16 %v452
        %v1939 = vunpack.c.l.b16 %v453
        %v1940 = vunpack.c.h.b16 %v453
        %v1941 = vunpack.c.l.b16 %v454
        %v1942 = vunpack.c.h.b16 %v454
        %v1943 = vunpack.c.l.b16 %v455
        %v1944 = vunpack.c.h.b16 %v455
        %v1945 = vunpack.c.l.b16 %v456
        %v1946 = vunpack.c.h.b16 %v456
        %v1947 = vunpack.c.l.b16 %v457
        %v1948 = vunpack.c.h.b16 %v457
        %v1949 = vunpack.c.l.b16 %v458
        %v1950 = vunpack.c.h.b16 %v458
        %v1951 = vunpack.c.l.b16 %v459
        %v1952 = vunpack.c.h.b16 %v459
        %v1953 = vunpack.c.l.b16 %v460
        %v1954 = vunpack.c.h.b16 %v460
        %v1955 = vunpack.c.l.b16 %v461
        %v1956 = vunpack.c.h.b16 %v461
        %v1957 = vunpack.c.l.b16 %v462
        %v1958 = vunpack.c.h.b16 %v462
        %v1959 = vunpack.c.l.b16 %v463
        %v1960 = vunpack.c.h.b16 %v463
        %v1961 = vunpack.c.l.b16 %v464
        %v1962 = vunpack.c.h.b16 %v464
        %v1963 = vunpack.c.l.b16 %v465
        %v1964 = vunpack.c.h.b16 %v465
        %v1965 = vunpack.c.l.b16 %v466
        %v1966 = vunpack.c.h.b16 %v466
        %v1967 = vunpack.c.l.b16 %v467
        %v1968 = vunpack.c.h.b16 %v467
        %v1969 = vunpack.c.l.b16 %v468
        %v1970 = vunpack.c.h.b16 %v468
        %v1971 = vunpack.c.l.b16 %v469
        %v1972 = vunpack.c.h.b16 %v469
        %v1973 = vunpack.c.l.b16 %v470
        %v1974 = vunpack.c.h.b16 %v470
        %v1975 = vunpack.c.l.b16 %v471
        %v1976 = vunpack.c.h.b16 %v471
        %v1977 = vunpack.c.l.b16 %v472
        %v1978 = vunpack.c.h.b16 %v472
        %v1979 = vunpack.c.l.b16 %v473
        %v1980 = vunpack.c.h.b16 %v473
        %v1981 = vunpack.c.l.b16 %v474
        %v1982 = vunpack.c.h.b16 %v474
        %v1983 = vunpack.c.l.b16 %v475
        %v1984 = vunpack.c.h.b16 %v475
        %v1985 = vunpack.c.l.b16 %v476
        %v1986 = vunpack.c.h.b16 %v476
        %v1987 = vunpack.c.l.b16 %v477
        %v1988 = vunpack.c.h.b16 %v477
        %v1989 = vunpack.c.l.b16 %v478
        %v1990 = vunpack.c.h.b16 %v478
        %v1991 = vunpack.c.l.b16 %v479
        %v1992 = vunpack.c.h.b16 %v479
        %v1993 = vunpack.c.l.b16 %v480
        %v1994 = vunpack.c.h.b16 %v480
        %v1995 = vunpack.c.l.b16 %v481
        %v1996 = vunpack.c.h.b16 %v481
        %v1997 = vunpack.c.l.b16 %v482
        %v1998 = vunpack.c.h.b16 %v482
        %v1999 = vunpack.c.l.b16 %v483
        %v2000 = vunpack.c.h.b16 %v483
        %v2001 = vunpack.c.l.b16 %v484
        %v2002 = vunpack.c.h.b16 %v484
        %v2003 = vunpack.c.l.b16 %v485
        %v2004 = vunpack.c.h.b16 %v485
        %v2005 = vunpack.c.l.b16 %v486
        %v2006 = vunpack.c.h.b16 %v486
        %v2007 = vunpack.c.l.b16 %v487
        %v2008 = vunpack.c.h.b16 %v487
        %v2009 = vunpack.c.l.b16 %v488
        %v2010 = vunpack.c.h.b16 %v488
        %v2011 = vunpack.c.l.b16 %v489
        %v2012 = vunpack.c.h.b16 %v489
        %v2013 = vunpack.c.l.b16 %v490
        %v2014 = vunpack.c.h.b16 %v490
        %v2015 = vunpack.c.l.b16 %v491
        %v2016 = vunpack.c.h.b16 %v491
        %v2017 = vunpack.c.l.b16 %v492
        %v2018 = vunpack.c.h.b16 %v492
        %v2019 = vunpack.c.l.b16 %v493
        %v2020 = vunpack.c.h.b16 %v493
        %v2021 = vunpack.c.l.b16 %v494
        %v2022 = vunpack.c.h.b16 %v494
        %v2023 = vunpack.c.l.b16 %v495
        %v2024 = vunpack.c.h.b16 %v495
        %v2025 = vunpack.c.l.b16 %v496
        %v2026 = vunpack.c.h.b16 %v496
        %v2027 = vunpack.c.l.b16 %v497
        %v2028 = vunpack.c.h.b16 %v497
        %v2029 = vunpack.c.l.b16 %v498
        %v2030 = vunpack.c.h.b16 %v498
        %v2031 = vunpack.c.l.b16 %v499
        %v2032 = vunpack.c.h.b16 %v499
        %v2033 = vunpack.c.l.b16 %v500
        %v2034 = vunpack.c.h.b16 %v500
        %v2035 = vunpack.c.l.b16 %v501
        %v2036 = vunpack.c.h.b16 %v501
        %v2037 = vunpack.c.l.b16 %v502
        %v2038 = vunpack.c.h.b16 %v502
        %v2039 = vunpack.c.l.b16 %v503
        %v2040 = vunpack.c.h.b16 %v503
        %v2041 = vunpack.c.l.b16 %v504
        %v2042 = vunpack.c.h.b16 %v504
        %v2043 = vunpack.c.l.b16 %v505
        %v2044 = vunpack.c.h.b16 %v505
        %v2045 = vunpack.c.l.b16 %v506
        %v2046 = vunpack.c.h.b16 %v506
        %v2047 = vunpack.c.l.b16 %v507
        %v2048 = vunpack.c.h.b16 %v507
        %v2049 = vunpack.c.l.b16 %v508
        %v2050 = vunpack.c.h.b16 %v508
        %v2051 = vunpack.c.l.b16 %v509
        %v2052 = vunpack.c.h.b16 %v509
        %v2053 = vunpack.c.l.b16 %v510
        %v2054 = vunpack.c.h.b16 %v510
        %v2055 = vunpack.c.l.b16 %v511
        %v2056 = vunpack.c.h.b16 %v511
        %v2057 = vunpack.c.l.b16 %v512
        %v2058 = vunpack.c.h.b16 %v512
        %v2059 = vunpack.c.l.b16 %v513
        %v2060 = vunpack.c.h.b16 %v513
        %v2061 = vunpack.c.l.b16 %v514
        %v2062 = vunpack.c.h.b16 %v514
        %v2063 = vunpack.c.l.b16 %v515
        %v2064 = vunpack.c.h.b16 %v515
        %v2065 = vunpack.c.l.b16 %v516
        %v2066 = vunpack.c.h.b16 %v516
        %v2067 = vunpack.c.l.b16 %v517
        %v2068 = vunpack.c.h.b16 %v517
        %v2069 = vunpack.c.l.b16 %v518
        %v2070 = vunpack.c.h.b16 %v518
        %v2071 = vunpack.c.l.b16 %v519
        %v2072 = vunpack.c.h.b16 %v519
        %v2073 = vunpack.c.l.b16 %v520
        %v2074 = vunpack.c.h.b16 %v520
        %v2075 = vunpack.c.l.b16 %v521
        %v2076 = vunpack.c.h.b16 %v521
        %v2077 = vunpack.c.l.b16 %v522
        %v2078 = vunpack.c.h.b16 %v522
        %v2079 = vunpack.c.l.b16 %v523
        %v2080 = vunpack.c.h.b16 %v523
        %v2081 = vunpack.c.l.b16 %v524
        %v2082 = vunpack.c.h.b16 %v524
        %v2083 = vunpack.c.l.b16 %v525
        %v2084 = vunpack.c.h.b16 %v525
        %v2085 = vunpack.c.l.b16 %v526
        %v2086 = vunpack.c.h.b16 %v526
        %v2087 = vunpack.c.l.b16 %v527
        %v2088 = vunpack.c.h.b16 %v527
        %v2089 = vunpack.c.l.b16 %v528
        %v2090 = vunpack.c.h.b16 %v528
        %v2091 = vunpack.c.l.b16 %v529
        %v2092 = vunpack.c.h.b16 %v529
        %v2093 = vunpack.c.l.b16 %v530
        %v2094 = vunpack.c.h.b16 %v530
        %v2095 = vunpack.c.l.b16 %v531
        %v2096 = vunpack.c.h.b16 %v531
        %v2097 = vunpack.c.l.b16 %v532
        %v2098 = vunpack.c.h.b16 %v532
        %v2099 = vunpack.c.l.b16 %v533
        %v2100 = vunpack.c.h.b16 %v533
        %v2101 = vunpack.c.l.b16 %v534
        %v2102 = vunpack.c.h.b16 %v534
        %v2103 = vunpack.c.l.b16 %v535
        %v2104 = vunpack.c.h.b16 %v535
        %v2105 = vunpack.c.l.b16 %v536
        %v2106 = vunpack.c.h.b16 %v536
        %v2107 = vunpack.c.l.b16 %v537
        %v2108 = vunpack.c.h.b16 %v537
        %v2109 = vunpack.c.l.b16 %v538
        %v2110 = vunpack.c.h.b16 %v538
        %v2111 = vunpack.c.l.b16 %v539
        %v2112 = vunpack.c.h.b16 %v539
        %v2113 = vunpack.c.l.b16 %v540
        %v2114 = vunpack.c.h.b16 %v540
        %v2115 = vunpack.c.l.b16 %v541
        %v2116 = vunpack.c.h.b16 %v541
        %v2117 = vunpack.c.l.b16 %v542
        %v2118 = vunpack.c.h.b16 %v542
        %v2119 = vunpack.c.l.b16 %v543
        %v2120 = vunpack.c.h.b16 %v543
        %v2121 = vunpack.c.l.b16 %v544
        %v2122 = vunpack.c.h.b16 %v544
        %v2123 = vunpack.c.l.b16 %v545
        %v2124 = vunpack.c.h.b16 %v545
        %v2125 = vunpack.c.l.b16 %v546
        %v2126 = vunpack.c.h.b16 %v546
        %v2127 = vunpack.c.l.b16 %v547
        %v2128 = vunpack.c.h.b16 %v547
        %v2129 = vunpack.c.l.b16 %v548
        %v2130 = vunpack.c.h.b16 %v548
        %v2131 = vunpack.c.l.b16 %v549
        %v2132 = vunpack.c.h.b16 %v549
        %v2133 = vunpack.c.l.b16 %v550
        %v2134 = vunpack.c.h.b16 %v550
        %v2135 = vunpack.c.l.b16 %v551
        %v2136 = vunpack.c.h.b16 %v551
        %v2137 = vunpack.c.l.b16 %v552
        %v2138 = vunpack.c.h.b16 %v552
        %v2139 = vunpack.c.l.b16 %v553
        %v2140 = vunpack.c.h.b16 %v553
        %v2141 = vunpack.c.l.b16 %v554
        %v2142 = vunpack.c.h.b16 %v554
        %v2143 = vunpack.c.l.b16 %v555
        %v2144 = vunpack.c.h.b16 %v555
        %v2145 = vunpack.c.l.b16 %v556
        %v2146 = vunpack.c.h.b16 %v556
        %v2147 = vunpack.c.l.b16 %v557
        %v2148 = vunpack.c.h.b16 %v557
        %v2149 = vunpack.c.l.b16 %v558
        %v2150 = vunpack.c.h.b16 %v558
        %v2151 = vunpack.c.l.b16 %v559
        %v2152 = vunpack.c.h.b16 %v559
        %v2153 = vunpack.c.l.b16 %v560
        %v2154 = vunpack.c.h.b16 %v560
        %v2155 = vunpack.c.l.b16 %v561
        %v2156 = vunpack.c.h.b16 %v561
        %v2157 = vunpack.c.l.b16 %v562
        %v2158 = vunpack.c.h.b16 %v562
        %v2159 = vunpack.c.l.b16 %v563
        %v2160 = vunpack.c.h.b16 %v563
        %v2161 = vunpack.c.l.b16 %v564
        %v2162 = vunpack.c.h.b16 %v564
        %v2163 = vunpack.c.l.b16 %v565
        %v2164 = vunpack.c.h.b16 %v565
        %v2165 = vunpack.c.l.b16 %v566
        %v2166 = vunpack.c.h.b16 %v566
        %v2167 = vunpack.c.l.b16 %v567
        %v2168 = vunpack.c.h.b16 %v567
        %v2169 = vunpack.c.l.b16 %v568
        %v2170 = vunpack.c.h.b16 %v568
        %v2171 = vunpack.c.l.b16 %v569
        %v2172 = vunpack.c.h.b16 %v569
        %v2173 = vunpack.c.l.b16 %v570
        %v2174 = vunpack.c.h.b16 %v570
        %v2175 = vunpack.c.l.b16 %v571
        %v2176 = vunpack.c.h.b16 %v571
        %v2177 = vunpack.c.l.b16 %v572
        %v2178 = vunpack.c.h.b16 %v572
        %v2179 = vunpack.c.l.b16 %v573
        %v2180 = vunpack.c.h.b16 %v573
        %v2181 = vunpack.c.l.b16 %v574
        %v2182 = vunpack.c.h.b16 %v574
        %v2183 = vunpack.c.l.b16 %v575
        %v2184 = vunpack.c.h.b16 %v575
        %v2185 = vunpack.c.l.b16 %v576
        %v2186 = vunpack.c.h.b16 %v576
        %v2187 = vunpack.c.l.b16 %v577
        %v2188 = vunpack.c.h.b16 %v577
        %v2189 = vunpack.c.l.b16 %v578
        %v2190 = vunpack.c.h.b16 %v578
        %v2191 = vunpack.c.l.b16 %v579
        %v2192 = vunpack.c.h.b16 %v579
        %v2193 = vunpack.c.l.b16 %v580
        %v2194 = vunpack.c.h.b16 %v580
        %v2195 = vunpack.c.l.b16 %v581
        %v2196 = vunpack.c.h.b16 %v581
        %v2197 = vunpack.c.l.b16 %v582
        %v2198 = vunpack.c.h.b16 %v582
        %v2199 = vunpack.c.l.b16 %v583
        %v2200 = vunpack.c.h.b16 %v583
        %v2201 = vunpack.c.l.b16 %v584
        %v2202 = vunpack.c.h.b16 %v584
        %v2203 = vunpack.c.l.b16 %v585
        %v2204 = vunpack.c.h.b16 %v585
        %v2205 = vunpack.c.l.b16 %v586
        %v2206 = vunpack.c.h.b16 %v586
        %v2207 = vunpack.c.l.b16 %v587
        %v2208 = vunpack.c.h.b16 %v587
        %v2209 = vunpack.c.l.b16 %v588
        %v2210 = vunpack.c.h.b16 %v588
        %v2211 = vunpack.c.l.b16 %v589
        %v2212 = vunpack.c.h.b16 %v589
        %v2213 = vunpack.c.l.b16 %v590
        %v2214 = vunpack.c.h.b16 %v590
        %v2215 = vunpack.c.l.b16 %v591
        %v2216 = vunpack.c.h.b16 %v591
        %v2217 = vunpack.c.l.b16 %v592
        %v2218 = vunpack.c.h.b16 %v592
        %v2219 = vunpack.c.l.b16 %v593
        %v2220 = vunpack.c.h.b16 %v593
        %v2221 = vunpack.c.l.b16 %v594
        %v2222 = vunpack.c.h.b16 %v594
        %v2223 = vunpack.c.l.b16 %v595
        %v2224 = vunpack.c.h.b16 %v595
        %v2225 = vunpack.c.l.b16 %v596
        %v2226 = vunpack.c.h.b16 %v596
        %v2227 = vunpack.c.l.b16 %v597
        %v2228 = vunpack.c.h.b16 %v597
        %v2229 = vunpack.c.l.b16 %v598
        %v2230 = vunpack.c.h.b16 %v598
        %v2231 = vunpack.c.l.b16 %v599
        %v2232 = vunpack.c.h.b16 %v599
        %v2233 = vunpack.c.l.b16 %v600
        %v2234 = vunpack.c.h.b16 %v600
        %v2235 = vunpack.c.l.b16 %v601
        %v2236 = vunpack.c.h.b16 %v601
        %v2237 = vunpack.c.l.b16 %v602
        %v2238 = vunpack.c.h.b16 %v602
        %v2239 = vunpack.c.l.b16 %v603
        %v2240 = vunpack.c.h.b16 %v603
        %v2241 = vunpack.c.l.b16 %v604
        %v2242 = vunpack.c.h.b16 %v604
        %v2243 = vunpack.c.l.b16 %v605
        %v2244 = vunpack.c.h.b16 %v605
        %v2245 = vunpack.c.l.b16 %v606
        %v2246 = vunpack.c.h.b16 %v606
        %v2247 = vunpack.c.l.b16 %v607
        %v2248 = vunpack.c.h.b16 %v607
        %v2249 = vunpack.c.l.b16 %v608
        %v2250 = vunpack.c.h.b16 %v608
        %v2251 = vunpack.c.l.b16 %v609
        %v2252 = vunpack.c.h.b16 %v609
        %v2253 = vunpack.c.l.b16 %v610
        %v2254 = vunpack.c.h.b16 %v610
        %v2255 = vunpack.c.l.b16 %v611
        %v2256 = vunpack.c.h.b16 %v611
        %v2257 = vunpack.c.l.b16 %v612
        %v2258 = vunpack.c.h.b16 %v612
        %v2259 = vunpack.c.l.b16 %v613
        %v2260 = vunpack.c.h.b16 %v613
        %v2261 = vunpack.c.l.b16 %v614
        %v2262 = vunpack.c.h.b16 %v614
        %v2263 = vunpack.c.l.b16 %v615
        %v2264 = vunpack.c.h.b16 %v615
        %v2265 = vunpack.c.l.b16 %v616
        %v2266 = vunpack.c.h.b16 %v616
        %v2267 = vunpack.c.l.b16 %v617
        %v2268 = vunpack.c.h.b16 %v617
        %v2269 = vunpack.c.l.b16 %v618
        %v2270 = vunpack.c.h.b16 %v618
        %v2271 = vunpack.c.l.b16 %v619
        %v2272 = vunpack.c.h.b16 %v619
        %v2273 = vunpack.c.l.b16 %v620
        %v2274 = vunpack.c.h.b16 %v620
        %v2275 = vunpack.c.l.b16 %v621
        %v2276 = vunpack.c.h.b16 %v621
        %v2277 = vunpack.c.l.b16 %v622
        %v2278 = vunpack.c.h.b16 %v622
        %v2279 = vunpack.c.l.b16 %v623
        %v2280 = vunpack.c.h.b16 %v623
        %v2281 = vunpack.c.l.b16 %v624
        %v2282 = vunpack.c.h.b16 %v624
        %v2283 = vunpack.c.l.b16 %v625
        %v2284 = vunpack.c.h.b16 %v625
        %v2285 = vunpack.c.l.b16 %v626
        %v2286 = vunpack.c.h.b16 %v626
        %v2287 = vunpack.c.l.b16 %v627
        %v2288 = vunpack.c.h.b16 %v627
        %v2289 = vunpack.c.l.b16 %v628
        %v2290 = vunpack.c.h.b16 %v628
        %v2291 = vunpack.c.l.b16 %v629
        %v2292 = vunpack.c.h.b16 %v629
        %v2293 = vunpack.c.l.b16 %v630
        %v2294 = vunpack.c.h.b16 %v630
        %v2295 = vunpack.c.l.b16 %v631
        %v2296 = vunpack.c.h.b16 %v631
        %v2297 = vunpack.c.l.b16 %v632
        %v2298 = vunpack.c.h.b16 %v632
        %v2299 = vunpack.c.l.b16 %v633
        %v2300 = vunpack.c.h.b16 %v633
        %v2301 = vunpack.c.l.b16 %v634
        %v2302 = vunpack.c.h.b16 %v634
        %v2303 = vunpack.c.l.b16 %v635
        %v2304 = vunpack.c.h.b16 %v635
        %v2305 = vunpack.c.l.b16 %v636
        %v2306 = vunpack.c.h.b16 %v636
        %v2307 = vunpack.c.l.b16 %v637
        %v2308 = vunpack.c.h.b16 %v637
        %v2309 = vunpack.c.l.b16 %v638
        %v2310 = vunpack.c.h.b16 %v638
        %v2311 = vunpack.c.l.b16 %v639
        %v2312 = vunpack.c.h.b16 %v639
        %v2313 = vunpack.c.l.b16 %v640
        %v2314 = vunpack.c.h.b16 %v640
        %v2315 = vunpack.c.l.b16 %v641
        %v2316 = vunpack.c.h.b16 %v641
        %v2317 = vunpack.c.l.b16 %v642
        %v2318 = vunpack.c.h.b16 %v642
        %v2319 = vunpack.c.l.b16 %v643
        %v2320 = vunpack.c.h.b16 %v643
        %v2321 = vunpack.c.l.b16 %v644
        %v2322 = vunpack.c.h.b16 %v644
        %v2323 = vunpack.c.l.b16 %v645
        %v2324 = vunpack.c.h.b16 %v645
        %v2325 = vunpack.c.l.b16 %v646
        %v2326 = vunpack.c.h.b16 %v646
        %v2327 = vunpack.c.l.b16 %v647
        %v2328 = vunpack.c.h.b16 %v647
        %v2329 = vunpack.c.l.b16 %v648
        %v2330 = vunpack.c.h.b16 %v648
        %v2331 = vunpack.c.l.b16 %v649
        %v2332 = vunpack.c.h.b16 %v649
        %v2333 = vunpack.c.l.b16 %v650
        %v2334 = vunpack.c.h.b16 %v650
        %v2335 = vunpack.c.l.b16 %v651
        %v2336 = vunpack.c.h.b16 %v651
        %v2337 = vunpack.c.l.b16 %v652
        %v2338 = vunpack.c.h.b16 %v652
        %v2339 = vunpack.c.l.b16 %v653
        %v2340 = vunpack.c.h.b16 %v653
        %v2341 = vunpack.c.l.b16 %v654
        %v2342 = vunpack.c.h.b16 %v654
        %v2343 = vunpack.c.l.b16 %v655
        %v2344 = vunpack.c.h.b16 %v655
        %v2345 = vunpack.c.l.b16 %v656
        %v2346 = vunpack.c.h.b16 %v656
        %v2347 = vunpack.c.l.b16 %v657
        %v2348 = vunpack.c.h.b16 %v657
        %v2349 = vunpack.c.l.b16 %v658
        %v2350 = vunpack.c.h.b16 %v658
        %v2351 = vunpack.c.l.b16 %v659
        %v2352 = vunpack.c.h.b16 %v659
        %v2353 = vunpack.c.l.b16 %v660
        %v2354 = vunpack.c.h.b16 %v660
        %v2355 = vunpack.c.l.b16 %v661
        %v2356 = vunpack.c.h.b16 %v661
        %v2357 = vunpack.c.l.b16 %v662
        %v2358 = vunpack.c.h.b16 %v662
        %v2359 = vunpack.c.l.b16 %v663
        %v2360 = vunpack.c.h.b16 %v663
        %v2361 = vunpack.c.l.b16 %v664
        %v2362 = vunpack.c.h.b16 %v664
        %v2363 = vunpack.c.l.b16 %v665
        %v2364 = vunpack.c.h.b16 %v665
        %v2365 = vunpack.c.l.b16 %v666
        %v2366 = vunpack.c.h.b16 %v666
        %v2367 = vunpack.c.l.b16 %v667
        %v2368 = vunpack.c.h.b16 %v667
        %v2369 = vunpack.c.l.b16 %v668
        %v2370 = vunpack.c.h.b16 %v668
        %v2371 = vunpack.c.l.b16 %v669
        %v2372 = vunpack.c.h.b16 %v669
        %v2373 = vunpack.c.l.b16 %v670
        %v2374 = vunpack.c.h.b16 %v670
        %v2375 = vunpack.c.l.b16 %v671
        %v2376 = vunpack.c.h.b16 %v671
        %v2377 = vunpack.c.l.b16 %v672
        %v2378 = vunpack.c.h.b16 %v672
        %v2379 = vunpack.c.l.b16 %v673
        %v2380 = vunpack.c.h.b16 %v673
        %v2381 = vunpack.c.l.b16 %v674
        %v2382 = vunpack.c.h.b16 %v674
        %v2383 = vunpack.c.l.b16 %v675
        %v2384 = vunpack.c.h.b16 %v675
        %v2385 = vunpack.c.l.b16 %v676
        %v2386 = vunpack.c.h.b16 %v676
        %v2387 = vunpack.c.l.b16 %v677
        %v2388 = vunpack.c.h.b16 %v677
        %v2389 = vunpack.c.l.b16 %v678
        %v2390 = vunpack.c.h.b16 %v678
        %v2391 = vunpack.c.l.b16 %v679
        %v2392 = vunpack.c.h.b16 %v679
        %v2393 = vunpack.c.l.b16 %v680
        %v2394 = vunpack.c.h.b16 %v680
        %v2395 = vunpack.c.l.b16 %v681
        %v2396 = vunpack.c.h.b16 %v681
        %v2397 = vunpack.c.l.b16 %v682
        %v2398 = vunpack.c.h.b16 %v682
        %v2399 = vunpack.c.l.b16 %v683
        %v2400 = vunpack.c.h.b16 %v683
        %v2401 = vunpack.c.l.b16 %v684
        %v2402 = vunpack.c.h.b16 %v684
        %v2403 = vunpack.c.l.b16 %v685
        %v2404 = vunpack.c.h.b16 %v685
        %v2405 = vunpack.c.l.b16 %v686
        %v2406 = vunpack.c.h.b16 %v686
        %v2407 = vunpack.c.l.b16 %v687
        %v2408 = vunpack.c.h.b16 %v687
        %v2409 = vunpack.c.l.b16 %v688
        %v2410 = vunpack.c.h.b16 %v688
        %v2411 = vunpack.c.l.b16 %v689
        %v2412 = vunpack.c.h.b16 %v689
        %v2413 = vunpack.c.l.b16 %v690
        %v2414 = vunpack.c.h.b16 %v690
        %v2415 = vunpack.c.l.b16 %v691
        %v2416 = vunpack.c.h.b16 %v691
        %v2417 = vunpack.c.l.b16 %v692
        %v2418 = vunpack.c.h.b16 %v692
        %v2419 = vunpack.c.l.b16 %v693
        %v2420 = vunpack.c.h.b16 %v693
        %v2421 = vunpack.c.l.b16 %v694
        %v2422 = vunpack.c.h.b16 %v694
        %v2423 = vunpack.c.l.b16 %v695
        %v2424 = vunpack.c.h.b16 %v695
        %v2425 = vunpack.c.l.b16 %v696
        %v2426 = vunpack.c.h.b16 %v696
        %v2427 = vunpack.c.l.b16 %v697
        %v2428 = vunpack.c.h.b16 %v697
        %v2429 = vunpack.c.l.b16 %v698
        %v2430 = vunpack.c.h.b16 %v698
        %v2431 = vunpack.c.l.b16 %v699
        %v2432 = vunpack.c.h.b16 %v699
        %v2433 = vunpack.c.l.b16 %v700
        %v2434 = vunpack.c.h.b16 %v700
        %v2435 = vunpack.c.l.b16 %v701
        %v2436 = vunpack.c.h.b16 %v701
        %v2437 = vunpack.c.l.b16 %v702
        %v2438 = vunpack.c.h.b16 %v702
        %v2439 = vunpack.c.l.b16 %v703
        %v2440 = vunpack.c.h.b16 %v703
        %v2441 = vunpack.c.l.b16 %v704
        %v2442 = vunpack.c.h.b16 %v704
        %v2443 = vunpack.c.l.b16 %v705
        %v2444 = vunpack.c.h.b16 %v705
        %v2445 = vunpack.c.l.b16 %v706
        %v2446 = vunpack.c.h.b16 %v706
        %v2447 = vunpack.c.l.b16 %v707
        %v2448 = vunpack.c.h.b16 %v707
        %v2449 = vunpack.c.l.b16 %v708
        %v2450 = vunpack.c.h.b16 %v708
        %v2451 = vunpack.c.l.b16 %v709
        %v2452 = vunpack.c.h.b16 %v709
        %v2453 = vunpack.c.l.b16 %v710
        %v2454 = vunpack.c.h.b16 %v710
        %v2455 = vunpack.c.l.b16 %v711
        %v2456 = vunpack.c.h.b16 %v711
        %v2457 = vunpack.c.l.b16 %v712
        %v2458 = vunpack.c.h.b16 %v712
        %v2459 = vunpack.c.l.b16 %v713
        %v2460 = vunpack.c.h.b16 %v713
        %v2461 = vunpack.c.l.b16 %v714
        %v2462 = vunpack.c.h.b16 %v714
        %v2463 = vunpack.c.l.b16 %v715
        %v2464 = vunpack.c.h.b16 %v715
        %v2465 = vunpack.c.l.b16 %v716
        %v2466 = vunpack.c.h.b16 %v716
        %v2467 = vunpack.c.l.b16 %v717
        %v2468 = vunpack.c.h.b16 %v717
        %v2469 = vunpack.c.l.b16 %v718
        %v2470 = vunpack.c.h.b16 %v718
        %v2471 = vunpack.c.l.b16 %v719
        %v2472 = vunpack.c.h.b16 %v719
        %v2473 = vunpack.c.l.b16 %v720
        %v2474 = vunpack.c.h.b16 %v720
        %v2475 = vunpack.c.l.b16 %v721
        %v2476 = vunpack.c.h.b16 %v721
        %v2477 = vunpack.c.l.b16 %v722
        %v2478 = vunpack.c.h.b16 %v722
        %v2479 = vunpack.c.l.b16 %v723
        %v2480 = vunpack.c.h.b16 %v723
        %v2481 = vunpack.c.l.b16 %v724
        %v2482 = vunpack.c.h.b16 %v724
        %v2483 = vunpack.c.l.b16 %v725
        %v2484 = vunpack.c.h.b16 %v725
        %v2485 = vunpack.c.l.b16 %v726
        %v2486 = vunpack.c.h.b16 %v726
        %v2487 = vunpack.c.l.b16 %v727
        %v2488 = vunpack.c.h.b16 %v727
        %v2489 = vunpack.c.l.b16 %v728
        %v2490 = vunpack.c.h.b16 %v728
        %v2491 = vunpack.c.l.b16 %v729
        %v2492 = vunpack.c.h.b16 %v729
        %v2493 = vunpack.c.l.b16 %v730
        %v2494 = vunpack.c.h.b16 %v730
        %v2495 = vunpack.c.l.b16 %v731
        %v2496 = vunpack.c.h.b16 %v731
        %v2497 = vunpack.c.l.b16 %v732
        %v2498 = vunpack.c.h.b16 %v732
        %v2499 = vunpack.c.l.b16 %v733
        %v2500 = vunpack.c.h.b16 %v733
        %v2501 = vunpack.c.l.b16 %v734
        %v2502 = vunpack.c.h.b16 %v734
        %v2503 = vunpack.c.l.b16 %v735
        %v2504 = vunpack.c.h.b16 %v735
        %v2505 = vunpack.c.l.b16 %v736
        %v2506 = vunpack.c.h.b16 %v736
        %v2507 = vunpack.c.l.b16 %v737
        %v2508 = vunpack.c.h.b16 %v737
        %v2509 = vunpack.c.l.b16 %v738
        %v2510 = vunpack.c.h.b16 %v738
        %v2511 = vunpack.c.l.b16 %v739
        %v2512 = vunpack.c.h.b16 %v739
        %v2513 = vunpack.c.l.b16 %v740
        %v2514 = vunpack.c.h.b16 %v740
        %v2515 = vunpack.c.l.b16 %v741
        %v2516 = vunpack.c.h.b16 %v741
        %v2517 = vunpack.c.l.b16 %v742
        %v2518 = vunpack.c.h.b16 %v742
        %v2519 = vunpack.c.l.b16 %v743
        %v2520 = vunpack.c.h.b16 %v743
        %v2521 = vunpack.c.l.b16 %v744
        %v2522 = vunpack.c.h.b16 %v744
        %v2523 = vunpack.c.l.b16 %v745
        %v2524 = vunpack.c.h.b16 %v745
        %v2525 = vunpack.c.l.b16 %v746
        %v2526 = vunpack.c.h.b16 %v746
        %v2527 = vunpack.c.l.b16 %v747
        %v2528 = vunpack.c.h.b16 %v747
        %v2529 = vunpack.c.l.b16 %v748
        %v2530 = vunpack.c.h.b16 %v748
        %v2531 = vunpack.c.l.b16 %v749
        %v2532 = vunpack.c.h.b16 %v749
        %v2533 = vunpack.c.l.b16 %v750
        %v2534 = vunpack.c.h.b16 %v750
        %v2535 = vunpack.c.l.b16 %v751
        %v2536 = vunpack.c.h.b16 %v751
        %v2537 = vunpack.c.l.b16 %v752
        %v2538 = vunpack.c.h.b16 %v752
        %v2539 = vunpack.c.l.b16 %v753
        %v2540 = vunpack.c.h.b16 %v753
        %v2541 = vunpack.c.l.b16 %v754
        %v2542 = vunpack.c.h.b16 %v754
        %v2543 = vunpack.c.l.b16 %v755
        %v2544 = vunpack.c.h.b16 %v755
        %v2545 = vunpack.c.l.b16 %v756
        %v2546 = vunpack.c.h.b16 %v756
        %v2547 = vunpack.c.l.b16 %v757
        %v2548 = vunpack.c.h.b16 %v757
        %v2549 = vunpack.c.l.b16 %v758
        %v2550 = vunpack.c.h.b16 %v758
        %v2551 = vunpack.c.l.b16 %v759
        %v2552 = vunpack.c.h.b16 %v759
        %v2553 = vunpack.c.l.b16 %v760
        %v2554 = vunpack.c.h.b16 %v760
        %v2555 = vunpack.c.l.b16 %v761
        %v2556 = vunpack.c.h.b16 %v761
        %v2557 = vunpack.c.l.b16 %v762
        %v2558 = vunpack.c.h.b16 %v762
        %v2559 = vunpack.c.l.b16 %v763
        %v2560 = vunpack.c.h.b16 %v763
        %v2561 = vunpack.c.l.b16 %v764
        %v2562 = vunpack.c.h.b16 %v764
        %v2563 = vunpack.c.l.b16 %v765
        %v2564 = vunpack.c.h.b16 %v765
        %v2565 = vunpack.c.l.b16 %v766
        %v2566 = vunpack.c.h.b16 %v766
        %v2567 = vunpack.c.l.b16 %v767
        %v2568 = vunpack.c.h.b16 %v767
        %v2569 = vunpack.c.l.b16 %v768
        %v2570 = vunpack.c.h.b16 %v768
        %v2571 = vunpack.c.l.b16 %v769
        %v2572 = vunpack.c.h.b16 %v769
        %v2573 = vunpack.c.l.b16 %v770
        %v2574 = vunpack.c.h.b16 %v770
        %v2575 = vunpack.c.l.b16 %v771
        %v2576 = vunpack.c.h.b16 %v771
        %v2577 = vunpack.c.l.b16 %v772
        %v2578 = vunpack.c.h.b16 %v772
        %v2579 = vunpack.c.l.b16 %v773
        %v2580 = vunpack.c.h.b16 %v773
        %v2581 = vunpack.c.l.b16 %v774
        %v2582 = vunpack.c.h.b16 %v774
        %v2583 = vunpack.c.l.b16 %v775
        %v2584 = vunpack.c.h.b16 %v775
        %v2585 = vunpack.c.l.b16 %v776
        %v2586 = vunpack.c.h.b16 %v776
        %v2587 = vunpack.c.l.b16 %v777
        %v2588 = vunpack.c.h.b16 %v777
        %v2589 = vunpack.c.l.b16 %v778
        %v2590 = vunpack.c.h.b16 %v778
        %v2591 = vunpack.c.l.b16 %v779
        %v2592 = vunpack.c.h.b16 %v779
        %v2593 = vunpack.c.l.b16 %v780
        %v2594 = vunpack.c.h.b16 %v780
        %v2595 = vunpack.c.l.b16 %v781
        %v2596 = vunpack.c.h.b16 %v781
        %v2597 = vunpack.c.l.b16 %v782
        %v2598 = vunpack.c.h.b16 %v782
        %v2599 = vunpack.c.l.b16 %v783
        %v2600 = vunpack.c.h.b16 %v783
        %v2601 = vunpack.c.l.b16 %v784
        %v2602 = vunpack.c.h.b16 %v784
        %v2603 = vunpack.c.l.b16 %v785
        %v2604 = vunpack.c.h.b16 %v785
        %v2605 = vunpack.c.l.b16 %v786
        %v2606 = vunpack.c.h.b16 %v786
        %v2607 = vunpack.c.l.b16 %v787
        %v2608 = vunpack.c.h.b16 %v787
        %v2609 = vunpack.c.l.b16 %v788
        %v2610 = vunpack.c.h.b16 %v788
        %v2611 = vunpack.c.l.b16 %v789
        %v2612 = vunpack.c.h.b16 %v789
        %v2613 = vunpack.c.l.b16 %v790
        %v2614 = vunpack.c.h.b16 %v790
        %v2615 = vunpack.c.l.b16 %v791
        %v2616 = vunpack.c.h.b16 %v791
        %v2617 = vunpack.c.l.b16 %v792
        %v2618 = vunpack.c.h.b16 %v792
        %v2619 = vunpack.c.l.b16 %v793
        %v2620 = vunpack.c.h.b16 %v793
        %v2621 = vunpack.c.l.b16 %v794
        %v2622 = vunpack.c.h.b16 %v794
        %v2623 = vunpack.c.l.b16 %v795
        %v2624 = vunpack.c.h.b16 %v795
        %v2625 = vunpack.c.l.b16 %v796
        %v2626 = vunpack.c.h.b16 %v796
        %v2627 = vunpack.c.l.b16 %v797
        %v2628 = vunpack.c.h.b16 %v797
        %v2629 = vunpack.c.l.b16 %v798
        %v2630 = vunpack.c.h.b16 %v798
        %v2631 = vunpack.c.l.b16 %v799
        %v2632 = vunpack.c.h.b16 %v799
        %v2633 = vunpack.c.l.b16 %v800
        %v2634 = vunpack.c.h.b16 %v800
        %v2635 = vunpack.c.l.b16 %v801
        %v2636 = vunpack.c.h.b16 %v801
        %v2637 = vunpack.c.l.b16 %v802
        %v2638 = vunpack.c.h.b16 %v802
        %v2639 = vunpack.c.l.b16 %v803
        %v2640 = vunpack.c.h.b16 %v803
        %v2641 = vunpack.c.l.b16 %v804
        %v2642 = vunpack.c.h.b16 %v804
        %v2643 = vunpack.c.l.b16 %v805
        %v2644 = vunpack.c.h.b16 %v805
        %v2645 = vunpack.c.l.b16 %v806
        %v2646 = vunpack.c.h.b16 %v806
        %v2647 = vunpack.c.l.b16 %v807
        %v2648 = vunpack.c.h.b16 %v807
        %v2649 = vunpack.c.l.b16 %v808
        %v2650 = vunpack.c.h.b16 %v808
        %v2651 = vunpack.c.l.b16 %v809
        %v2652 = vunpack.c.h.b16 %v809
        %v2653 = vunpack.c.l.b16 %v810
        %v2654 = vunpack.c.h.b16 %v810
        %v2655 = vunpack.c.l.b16 %v811
        %v2656 = vunpack.c.h.b16 %v811
        %v2657 = vunpack.c.l.b16 %v812
        %v2658 = vunpack.c.h.b16 %v812
        %v2659 = vunpack.c.l.b16 %v813
        %v2660 = vunpack.c.h.b16 %v813
        %v2661 = vunpack.c.l.b16 %v814
        %v2662 = vunpack.c.h.b16 %v814
        %v2663 = vunpack.c.l.b16 %v815
        %v2664 = vunpack.c.h.b16 %v815
        %v2665 = vunpack.c.l.b16 %v816
        %v2666 = vunpack.c.h.b16 %v816
        %v2667 = vunpack.c.l.b16 %v817
        %v2668 = vunpack.c.h.b16 %v817
        %v2669 = vunpack.c.l.b16 %v818
        %v2670 = vunpack.c.h.b16 %v818
        %v2671 = vunpack.c.l.b16 %v819
        %v2672 = vunpack.c.h.b16 %v819
        %v2673 = vunpack.c.l.b16 %v820
        %v2674 = vunpack.c.h.b16 %v820
        %v2675 = vunpack.c.l.b16 %v821
        %v2676 = vunpack.c.h.b16 %v821
        %v2677 = vunpack.c.l.b16 %v822
        %v2678 = vunpack.c.h.b16 %v822
        %v2679 = vunpack.c.l.b16 %v823
        %v2680 = vunpack.c.h.b16 %v823
        %v2681 = vunpack.c.l.b16 %v824
        %v2682 = vunpack.c.h.b16 %v824
        %v2683 = vunpack.c.l.b16 %v825
        %v2684 = vunpack.c.h.b16 %v825
        %v2685 = vunpack.c.l.b16 %v826
        %v2686 = vunpack.c.h.b16 %v826
        %v2687 = vunpack.c.l.b16 %v827
        %v2688 = vunpack.c.h.b16 %v827
        %v2689 = vunpack.c.l.b16 %v828
        %v2690 = vunpack.c.h.b16 %v828
        %v2691 = vunpack.c.l.b16 %v829
        %v2692 = vunpack.c.h.b16 %v829
        %v2693 = vunpack.c.l.b16 %v830
        %v2694 = vunpack.c.h.b16 %v830
        %v2695 = vunpack.c.l.b16 %v831
        %v2696 = vunpack.c.h.b16 %v831
        %v2697 = vunpack.c.l.b16 %v832
        %v2698 = vunpack.c.h.b16 %v832
        %v2699 = vunpack.c.l.b16 %v833
        %v2700 = vunpack.c.h.b16 %v833
        %v2701 = vunpack.c.l.b16 %v834
        %v2702 = vunpack.c.h.b16 %v834
        %v2703 = vunpack.c.l.b16 %v835
        %v2704 = vunpack.c.h.b16 %v835
        %v2705 = vunpack.c.l.b16 %v836
        %v2706 = vunpack.c.h.b16 %v836
        %v2707 = vunpack.c.l.b16 %v837
        %v2708 = vunpack.c.h.b16 %v837
        %v2709 = vunpack.c.l.b16 %v838
        %v2710 = vunpack.c.h.b16 %v838
        %v2711 = vunpack.c.l.b16 %v839
        %v2712 = vunpack.c.h.b16 %v839
        %v2713 = vunpack.c.l.b16 %v840
        %v2714 = vunpack.c.h.b16 %v840
        %v2715 = vunpack.c.l.b16 %v841
        %v2716 = vunpack.c.h.b16 %v841
        %v2717 = vunpack.c.l.b16 %v842
        %v2718 = vunpack.c.h.b16 %v842
        %v2719 = vunpack.c.l.b16 %v843
        %v2720 = vunpack.c.h.b16 %v843
        %v2721 = vunpack.c.l.b16 %v844
        %v2722 = vunpack.c.h.b16 %v844
        %v2723 = vunpack.c.l.b16 %v845
        %v2724 = vunpack.c.h.b16 %v845
        %v2725 = vunpack.c.l.b16 %v846
        %v2726 = vunpack.c.h.b16 %v846
        %v2727 = vunpack.c.l.b16 %v847
        %v2728 = vunpack.c.h.b16 %v847
        %v2729 = vunpack.c.l.b16 %v848
        %v2730 = vunpack.c.h.b16 %v848
        %v2731 = vunpack.c.l.b16 %v849
        %v2732 = vunpack.c.h.b16 %v849
        %v2733 = vunpack.c.l.b16 %v850
        %v2734 = vunpack.c.h.b16 %v850
        %v2735 = vunpack.c.l.b16 %v851
        %v2736 = vunpack.c.h.b16 %v851
        %v2737 = vunpack.c.l.b16 %v852
        %v2738 = vunpack.c.h.b16 %v852
        %v2739 = vunpack.c.l.b16 %v853
        %v2740 = vunpack.c.h.b16 %v853
        %v2741 = vunpack.c.l.b16 %v854
        %v2742 = vunpack.c.h.b16 %v854
        %v2743 = vunpack.c.l.b16 %v855
        %v2744 = vunpack.c.h.b16 %v855
        %v2745 = vunpack.c.l.b16 %v856
        %v2746 = vunpack.c.h.b16 %v856
        %v2747 = vunpack.c.l.b16 %v857
        %v2748 = vunpack.c.h.b16 %v857
        %v2749 = vunpack.c.l.b16 %v858
        %v2750 = vunpack.c.h.b16 %v858
        %v2751 = vunpack.c.l.b16 %v859
        %v2752 = vunpack.c.h.b16 %v859
        %v2753 = vunpack.c.l.b16 %v860
        %v2754 = vunpack.c.h.b16 %v860
        %v2755 = vunpack.c.l.b16 %v861
        %v2756 = vunpack.c.h.b16 %v861
        %v2757 = vunpack.c.l.b16 %v862
        %v2758 = vunpack.c.h.b16 %v862
        %v2759 = vunpack.c.l.b16 %v863
        %v2760 = vunpack.c.h.b16 %v863
        %v2761 = vunpack.c.l.b16 %v864
        %v2762 = vunpack.c.h.b16 %v864
        %v2763 = vpack.c.b16 %v1747, %v1739
        %v2764 = vpack.c.b16 %v1748, %v1740
        %v2765 = vpack.c.b16 %v1749, %v1741
        %v2766 = vpack.c.b16 %v1750, %v1742
        %v2767 = vpack.c.b16 %v1751, %v1743
        %v2768 = vpack.c.b16 %v1752, %v1744
        %v2769 = vpack.c.b16 %v1753, %v1745
        %v2770 = vpack.c.b16 %v1754, %v1746
        %v2771 = vpack.c.b16 %v1763, %v1755
        %v2772 = vpack.c.b16 %v1764, %v1756
        %v2773 = vpack.c.b16 %v1765, %v1757
        %v2774 = vpack.c.b16 %v1766, %v1758
        %v2775 = vpack.c.b16 %v1767, %v1759
        %v2776 = vpack.c.b16 %v1768, %v1760
        %v2777 = vpack.c.b16 %v1769, %v1761
        %v2778 = vpack.c.b16 %v1770, %v1762
        %v2779 = vpack.c.b16 %v1779, %v1771
        %v2780 = vpack.c.b16 %v1780, %v1772
        %v2781 = vpack.c.b16 %v1781, %v1773
        %v2782 = vpack.c.b16 %v1782, %v1774
        %v2783 = vpack.c.b16 %v1783, %v1775
        %v2784 = vpack.c.b16 %v1784, %v1776
        %v2785 = vpack.c.b16 %v1785, %v1777
        %v2786 = vpack.c.b16 %v1786, %v1778
        %v2787 = vpack.c.b16 %v1795, %v1787
        %v2788 = vpack.c.b16 %v1796, %v1788
        %v2789 = vpack.c.b16 %v1797, %v1789
        %v2790 = vpack.c.b16 %v1798, %v1790
        %v2791 = vpack.c.b16 %v1799, %v1791
        %v2792 = vpack.c.b16 %v1800, %v1792
        %v2793 = vpack.c.b16 %v1801, %v1793
        %v2794 = vpack.c.b16 %v1802, %v1794
        %v2795 = vpack.c.b16 %v1811, %v1803
        %v2796 = vpack.c.b16 %v1812, %v1804
        %v2797 = vpack.c.b16 %v1813, %v1805
        %v2798 = vpack.c.b16 %v1814, %v1806
        %v2799 = vpack.c.b16 %v1815, %v1807
        %v2800 = vpack.c.b16 %v1816, %v1808
        %v2801 = vpack.c.b16 %v1817, %v1809
        %v2802 = vpack.c.b16 %v1818, %v1810
        %v2803 = vpack.c.b16 %v1827, %v1819
        %v2804 = vpack.c.b16 %v1828, %v1820
        %v2805 = vpack.c.b16 %v1829, %v1821
        %v2806 = vpack.c.b16 %v1830, %v1822
        %v2807 = vpack.c.b16 %v1831, %v1823
        %v2808 = vpack.c.b16 %v1832, %v1824
        %v2809 = vpack.c.b16 %v1833, %v1825
        %v2810 = vpack.c.b16 %v1834, %v1826
        %v2811 = vpack.c.b16 %v1843, %v1835
        %v2812 = vpack.c.b16 %v1844, %v1836
        %v2813 = vpack.c.b16 %v1845, %v1837
        %v2814 = vpack.c.b16 %v1846, %v1838
        %v2815 = vpack.c.b16 %v1847, %v1839
        %v2816 = vpack.c.b16 %v1848, %v1840
        %v2817 = vpack.c.b16 %v1849, %v1841
        %v2818 = vpack.c.b16 %v1850, %v1842
        %v2819 = vpack.c.b16 %v1859, %v1851
        %v2820 = vpack.c.b16 %v1860, %v1852
        %v2821 = vpack.c.b16 %v1861, %v1853
        %v2822 = vpack.c.b16 %v1862, %v1854
        %v2823 = vpack.c.b16 %v1863, %v1855
        %v2824 = vpack.c.b16 %v1864, %v1856
        %v2825 = vpack.c.b16 %v1865, %v1857
        %v2826 = vpack.c.b16 %v1866, %v1858
        %v2827 = vpack.c.b16 %v1875, %v1867
        %v2828 = vpack.c.b16 %v1876, %v1868
        %v2829 = vpack.c.b16 %v1877, %v1869
        %v2830 = vpack.c.b16 %v1878, %v1870
        %v2831 = vpack.c.b16 %v1879, %v1871
        %v2832 = vpack.c.b16 %v1880, %v1872
        %v2833 = vpack.c.b16 %v1881, %v1873
        %v2834 = vpack.c.b16 %v1882, %v1874
        %v2835 = vpack.c.b16 %v1891, %v1883
        %v2836 = vpack.c.b16 %v1892, %v1884
        %v2837 = vpack.c.b16 %v1893, %v1885
        %v2838 = vpack.c.b16 %v1894, %v1886
        %v2839 = vpack.c.b16 %v1895, %v1887
        %v2840 = vpack.c.b16 %v1896, %v1888
        %v2841 = vpack.c.b16 %v1897, %v1889
        %v2842 = vpack.c.b16 %v1898, %v1890
        %v2843 = vpack.c.b16 %v1907, %v1899
        %v2844 = vpack.c.b16 %v1908, %v1900
        %v2845 = vpack.c.b16 %v1909, %v1901
        %v2846 = vpack.c.b16 %v1910, %v1902
        %v2847 = vpack.c.b16 %v1911, %v1903
        %v2848 = vpack.c.b16 %v1912, %v1904
        %v2849 = vpack.c.b16 %v1913, %v1905
        %v2850 = vpack.c.b16 %v1914, %v1906
        %v2851 = vpack.c.b16 %v1923, %v1915
        %v2852 = vpack.c.b16 %v1924, %v1916
        %v2853 = vpack.c.b16 %v1925, %v1917
        %v2854 = vpack.c.b16 %v1926, %v1918
        %v2855 = vpack.c.b16 %v1927, %v1919
        %v2856 = vpack.c.b16 %v1928, %v1920
        %v2857 = vpack.c.b16 %v1929, %v1921
        %v2858 = vpack.c.b16 %v1930, %v1922
        %v2859 = vpack.c.b16 %v1939, %v1931
        %v2860 = vpack.c.b16 %v1940, %v1932
        %v2861 = vpack.c.b16 %v1941, %v1933
        %v2862 = vpack.c.b16 %v1942, %v1934
        %v2863 = vpack.c.b16 %v1943, %v1935
        %v2864 = vpack.c.b16 %v1944, %v1936
        %v2865 = vpack.c.b16 %v1945, %v1937
        %v2866 = vpack.c.b16 %v1946, %v1938
        %v2867 = vpack.c.b16 %v1955, %v1947
        %v2868 = vpack.c.b16 %v1956, %v1948
        %v2869 = vpack.c.b16 %v1957, %v1949
        %v2870 = vpack.c.b16 %v1958, %v1950
        %v2871 = vpack.c.b16 %v1959, %v1951
        %v2872 = vpack.c.b16 %v1960, %v1952
        %v2873 = vpack.c.b16 %v1961, %v1953
        %v2874 = vpack.c.b16 %v1962, %v1954
        %v2875 = vpack.c.b16 %v1971, %v1963
        %v2876 = vpack.c.b16 %v1972, %v1964
        %v2877 = vpack.c.b16 %v1973, %v1965
        %v2878 = vpack.c.b16 %v1974, %v1966
        %v2879 = vpack.c.b16 %v1975, %v1967
        %v2880 = vpack.c.b16 %v1976, %v1968
        %v2881 = vpack.c.b16 %v1977, %v1969
        %v2882 = vpack.c.b16 %v1978, %v1970
        %v2883 = vpack.c.b16 %v1987, %v1979
        %v2884 = vpack.c.b16 %v1988, %v1980
        %v2885 = vpack.c.b16 %v1989, %v1981
        %v2886 = vpack.c.b16 %v1990, %v1982
        %v2887 = vpack.c.b16 %v1991, %v1983
        %v2888 = vpack.c.b16 %v1992, %v1984
        %v2889 = vpack.c.b16 %v1993, %v1985
        %v2890 = vpack.c.b16 %v1994, %v1986
        %v2891 = vpack.c.b16 %v2003, %v1995
        %v2892 = vpack.c.b16 %v2004, %v1996
        %v2893 = vpack.c.b16 %v2005, %v1997
        %v2894 = vpack.c.b16 %v2006, %v1998
        %v2895 = vpack.c.b16 %v2007, %v1999
        %v2896 = vpack.c.b16 %v2008, %v2000
        %v2897 = vpack.c.b16 %v2009, %v2001
        %v2898 = vpack.c.b16 %v2010, %v2002
        %v2899 = vpack.c.b16 %v2019, %v2011
        %v2900 = vpack.c.b16 %v2020, %v2012
        %v2901 = vpack.c.b16 %v2021, %v2013
        %v2902 = vpack.c.b16 %v2022, %v2014
        %v2903 = vpack.c.b16 %v2023, %v2015
        %v2904 = vpack.c.b16 %v2024, %v2016
        %v2905 = vpack.c.b16 %v2025, %v2017
        %v2906 = vpack.c.b16 %v2026, %v2018
        %v2907 = vpack.c.b16 %v2035, %v2027
        %v2908 = vpack.c.b16 %v2036, %v2028
        %v2909 = vpack.c.b16 %v2037, %v2029
        %v2910 = vpack.c.b16 %v2038, %v2030
        %v2911 = vpack.c.b16 %v2039, %v2031
        %v2912 = vpack.c.b16 %v2040, %v2032
        %v2913 = vpack.c.b16 %v2041, %v2033
        %v2914 = vpack.c.b16 %v2042, %v2034
        %v2915 = vpack.c.b16 %v2051, %v2043
        %v2916 = vpack.c.b16 %v2052, %v2044
        %v2917 = vpack.c.b16 %v2053, %v2045
        %v2918 = vpack.c.b16 %v2054, %v2046
        %v2919 = vpack.c.b16 %v2055, %v2047
        %v2920 = vpack.c.b16 %v2056, %v2048
        %v2921 = vpack.c.b16 %v2057, %v2049
        %v2922 = vpack.c.b16 %v2058, %v2050
        %v2923 = vpack.c.b16 %v2067, %v2059
        %v2924 = vpack.c.b16 %v2068, %v2060
        %v2925 = vpack.c.b16 %v2069, %v2061
        %v2926 = vpack.c.b16 %v2070, %v2062
        %v2927 = vpack.c.b16 %v2071, %v2063
        %v2928 = vpack.c.b16 %v2072, %v2064
        %v2929 = vpack.c.b16 %v2073, %v2065
        %v2930 = vpack.c.b16 %v2074, %v2066
        %v2931 = vpack.c.b16 %v2083, %v2075
        %v2932 = vpack.c.b16 %v2084, %v2076
        %v2933 = vpack.c.b16 %v2085, %v2077
        %v2934 = vpack.c.b16 %v2086, %v2078
        %v2935 = vpack.c.b16 %v2087, %v2079
        %v2936 = vpack.c.b16 %v2088, %v2080
        %v2937 = vpack.c.b16 %v2089, %v2081
        %v2938 = vpack.c.b16 %v2090, %v2082
        %v2939 = vpack.c.b16 %v2099, %v2091
        %v2940 = vpack.c.b16 %v2100, %v2092
        %v2941 = vpack.c.b16 %v2101, %v2093
        %v2942 = vpack.c.b16 %v2102, %v2094
        %v2943 = vpack.c.b16 %v2103, %v2095
        %v2944 = vpack.c.b16 %v2104, %v2096
        %v2945 = vpack.c.b16 %v2105, %v2097
        %v2946 = vpack.c.b16 %v2106, %v2098
        %v2947 = vpack.c.b16 %v2115, %v2107
        %v2948 = vpack.c.b16 %v2116, %v2108
        %v2949 = vpack.c.b16 %v2117, %v2109
        %v2950 = vpack.c.b16 %v2118, %v2110
        %v2951 = vpack.c.b16 %v2119, %v2111
        %v2952 = vpack.c.b16 %v2120, %v2112
        %v2953 = vpack.c.b16 %v2121, %v2113
        %v2954 = vpack.c.b16 %v2122, %v2114
        %v2955 = vpack.c.b16 %v2131, %v2123
        %v2956 = vpack.c.b16 %v2132, %v2124
        %v2957 = vpack.c.b16 %v2133, %v2125
        %v2958 = vpack.c.b16 %v2134, %v2126
        %v2959 = vpack.c.b16 %v2135, %v2127
        %v2960 = vpack.c.b16 %v2136, %v2128
        %v2961 = vpack.c.b16 %v2137, %v2129
        %v2962 = vpack.c.b16 %v2138, %v2130
        %v2963 = vpack.c.b16 %v2147, %v2139
        %v2964 = vpack.c.b16 %v2148, %v2140
        %v2965 = vpack.c.b16 %v2149, %v2141
        %v2966 = vpack.c.b16 %v2150, %v2142
        %v2967 = vpack.c.b16 %v2151, %v2143
        %v2968 = vpack.c.b16 %v2152, %v2144
        %v2969 = vpack.c.b16 %v2153, %v2145
        %v2970 = vpack.c.b16 %v2154, %v2146
        %v2971 = vpack.c.b16 %v2163, %v2155
        %v2972 = vpack.c.b16 %v2164, %v2156
        %v2973 = vpack.c.b16 %v2165, %v2157
        %v2974 = vpack.c.b16 %v2166, %v2158
        %v2975 = vpack.c.b16 %v2167, %v2159
        %v2976 = vpack.c.b16 %v2168, %v2160
        %v2977 = vpack.c.b16 %v2169, %v2161
        %v2978 = vpack.c.b16 %v2170, %v2162
        %v2979 = vpack.c.b16 %v2179, %v2171
        %v2980 = vpack.c.b16 %v2180, %v2172
        %v2981 = vpack.c.b16 %v2181, %v2173
        %v2982 = vpack.c.b16 %v2182, %v2174
        %v2983 = vpack.c.b16 %v2183, %v2175
        %v2984 = vpack.c.b16 %v2184, %v2176
        %v2985 = vpack.c.b16 %v2185, %v2177
        %v2986 = vpack.c.b16 %v2186, %v2178
        %v2987 = vpack.c.b16 %v2195, %v2187
        %v2988 = vpack.c.b16 %v2196, %v2188
        %v2989 = vpack.c.b16 %v2197, %v2189
        %v2990 = vpack.c.b16 %v2198, %v2190
        %v2991 = vpack.c.b16 %v2199, %v2191
        %v2992 = vpack.c.b16 %v2200, %v2192
        %v2993 = vpack.c.b16 %v2201, %v2193
        %v2994 = vpack.c.b16 %v2202, %v2194
        %v2995 = vpack.c.b16 %v2211, %v2203
        %v2996 = vpack.c.b16 %v2212, %v2204
        %v2997 = vpack.c.b16 %v2213, %v2205
        %v2998 = vpack.c.b16 %v2214, %v2206
        %v2999 = vpack.c.b16 %v2215, %v2207
        %v3000 = vpack.c.b16 %v2216, %v2208
        %v3001 = vpack.c.b16 %v2217, %v2209
        %v3002 = vpack.c.b16 %v2218, %v2210
        %v3003 = vpack.c.b16 %v2227, %v2219
        %v3004 = vpack.c.b16 %v2228, %v2220
        %v3005 = vpack.c.b16 %v2229, %v2221
        %v3006 = vpack.c.b16 %v2230, %v2222
        %v3007 = vpack.c.b16 %v2231, %v2223
        %v3008 = vpack.c.b16 %v2232, %v2224
        %v3009 = vpack.c.b16 %v2233, %v2225
        %v3010 = vpack.c.b16 %v2234, %v2226
        %v3011 = vpack.c.b16 %v2243, %v2235
        %v3012 = vpack.c.b16 %v2244, %v2236
        %v3013 = vpack.c.b16 %v2245, %v2237
        %v3014 = vpack.c.b16 %v2246, %v2238
        %v3015 = vpack.c.b16 %v2247, %v2239
        %v3016 = vpack.c.b16 %v2248, %v2240
        %v3017 = vpack.c.b16 %v2249, %v2241
        %v3018 = vpack.c.b16 %v2250, %v2242
        %v3019 = vpack.c.b16 %v2259, %v2251
        %v3020 = vpack.c.b16 %v2260, %v2252
        %v3021 = vpack.c.b16 %v2261, %v2253
        %v3022 = vpack.c.b16 %v2262, %v2254
        %v3023 = vpack.c.b16 %v2263, %v2255
        %v3024 = vpack.c.b16 %v2264, %v2256
        %v3025 = vpack.c.b16 %v2265, %v2257
        %v3026 = vpack.c.b16 %v2266, %v2258
        %v3027 = vpack.c.b16 %v2275, %v2267
        %v3028 = vpack.c.b16 %v2276, %v2268
        %v3029 = vpack.c.b16 %v2277, %v2269
        %v3030 = vpack.c.b16 %v2278, %v2270
        %v3031 = vpack.c.b16 %v2279, %v2271
        %v3032 = vpack.c.b16 %v2280, %v2272
        %v3033 = vpack.c.b16 %v2281, %v2273
        %v3034 = vpack.c.b16 %v2282, %v2274
        %v3035 = vpack.c.b16 %v2291, %v2283
        %v3036 = vpack.c.b16 %v2292, %v2284
        %v3037 = vpack.c.b16 %v2293, %v2285
        %v3038 = vpack.c.b16 %v2294, %v2286
        %v3039 = vpack.c.b16 %v2295, %v2287
        %v3040 = vpack.c.b16 %v2296, %v2288
        %v3041 = vpack.c.b16 %v2297, %v2289
        %v3042 = vpack.c.b16 %v2298, %v2290
        %v3043 = vpack.c.b16 %v2307, %v2299
        %v3044 = vpack.c.b16 %v2308, %v2300
        %v3045 = vpack.c.b16 %v2309, %v2301
        %v3046 = vpack.c.b16 %v2310, %v2302
        %v3047 = vpack.c.b16 %v2311, %v2303
        %v3048 = vpack.c.b16 %v2312, %v2304
        %v3049 = vpack.c.b16 %v2313, %v2305
        %v3050 = vpack.c.b16 %v2314, %v2306
        %v3051 = vpack.c.b16 %v2323, %v2315
        %v3052 = vpack.c.b16 %v2324, %v2316
        %v3053 = vpack.c.b16 %v2325, %v2317
        %v3054 = vpack.c.b16 %v2326, %v2318
        %v3055 = vpack.c.b16 %v2327, %v2319
        %v3056 = vpack.c.b16 %v2328, %v2320
        %v3057 = vpack.c.b16 %v2329, %v2321
        %v3058 = vpack.c.b16 %v2330, %v2322
        %v3059 = vpack.c.b16 %v2339, %v2331
        %v3060 = vpack.c.b16 %v2340, %v2332
        %v3061 = vpack.c.b16 %v2341, %v2333
        %v3062 = vpack.c.b16 %v2342, %v2334
        %v3063 = vpack.c.b16 %v2343, %v2335
        %v3064 = vpack.c.b16 %v2344, %v2336
        %v3065 = vpack.c.b16 %v2345, %v2337
        %v3066 = vpack.c.b16 %v2346, %v2338
        %v3067 = vpack.c.b16 %v2355, %v2347
        %v3068 = vpack.c.b16 %v2356, %v2348
        %v3069 = vpack.c.b16 %v2357, %v2349
        %v3070 = vpack.c.b16 %v2358, %v2350
        %v3071 = vpack.c.b16 %v2359, %v2351
        %v3072 = vpack.c.b16 %v2360, %v2352
        %v3073 = vpack.c.b16 %v2361, %v2353
        %v3074 = vpack.c.b16 %v2362, %v2354
        %v3075 = vpack.c.b16 %v2371, %v2363
        %v3076 = vpack.c.b16 %v2372, %v2364
        %v3077 = vpack.c.b16 %v2373, %v2365
        %v3078 = vpack.c.b16 %v2374, %v2366
        %v3079 = vpack.c.b16 %v2375, %v2367
        %v3080 = vpack.c.b16 %v2376, %v2368
        %v3081 = vpack.c.b16 %v2377, %v2369
        %v3082 = vpack.c.b16 %v2378, %v2370
        %v3083 = vpack.c.b16 %v2387, %v2379
        %v3084 = vpack.c.b16 %v2388, %v2380
        %v3085 = vpack.c.b16 %v2389, %v2381
        %v3086 = vpack.c.b16 %v2390, %v2382
        %v3087 = vpack.c.b16 %v2391, %v2383
        %v3088 = vpack.c.b16 %v2392, %v2384
        %v3089 = vpack.c.b16 %v2393, %v2385
        %v3090 = vpack.c.b16 %v2394, %v2386
        %v3091 = vpack.c.b16 %v2403, %v2395
        %v3092 = vpack.c.b16 %v2404, %v2396
        %v3093 = vpack.c.b16 %v2405, %v2397
        %v3094 = vpack.c.b16 %v2406, %v2398
        %v3095 = vpack.c.b16 %v2407, %v2399
        %v3096 = vpack.c.b16 %v2408, %v2400
        %v3097 = vpack.c.b16 %v2409, %v2401
        %v3098 = vpack.c.b16 %v2410, %v2402
        %v3099 = vpack.c.b16 %v2419, %v2411
        %v3100 = vpack.c.b16 %v2420, %v2412
        %v3101 = vpack.c.b16 %v2421, %v2413
        %v3102 = vpack.c.b16 %v2422, %v2414
        %v3103 = vpack.c.b16 %v2423, %v2415
        %v3104 = vpack.c.b16 %v2424, %v2416
        %v3105 = vpack.c.b16 %v2425, %v2417
        %v3106 = vpack.c.b16 %v2426, %v2418
        %v3107 = vpack.c.b16 %v2435, %v2427
        %v3108 = vpack.c.b16 %v2436, %v2428
        %v3109 = vpack.c.b16 %v2437, %v2429
        %v3110 = vpack.c.b16 %v2438, %v2430
        %v3111 = vpack.c.b16 %v2439, %v2431
        %v3112 = vpack.c.b16 %v2440, %v2432
        %v3113 = vpack.c.b16 %v2441, %v2433
        %v3114 = vpack.c.b16 %v2442, %v2434
        %v3115 = vpack.c.b16 %v2451, %v2443
        %v3116 = vpack.c.b16 %v2452, %v2444
        %v3117 = vpack.c.b16 %v2453, %v2445
        %v3118 = vpack.c.b16 %v2454, %v2446
        %v3119 = vpack.c.b16 %v2455, %v2447
        %v3120 = vpack.c.b16 %v2456, %v2448
        %v3121 = vpack.c.b16 %v2457, %v2449
        %v3122 = vpack.c.b16 %v2458, %v2450
        %v3123 = vpack.c.b16 %v2467, %v2459
        %v3124 = vpack.c.b16 %v2468, %v2460
        %v3125 = vpack.c.b16 %v2469, %v2461
        %v3126 = vpack.c.b16 %v2470, %v2462
        %v3127 = vpack.c.b16 %v2471, %v2463
        %v3128 = vpack.c.b16 %v2472, %v2464
        %v3129 = vpack.c.b16 %v2473, %v2465
        %v3130 = vpack.c.b16 %v2474, %v2466
        %v3131 = vpack.c.b16 %v2483, %v2475
        %v3132 = vpack.c.b16 %v2484, %v2476
        %v3133 = vpack.c.b16 %v2485, %v2477
        %v3134 = vpack.c.b16 %v2486, %v2478
        %v3135 = vpack.c.b16 %v2487, %v2479
        %v3136 = vpack.c.b16 %v2488, %v2480
        %v3137 = vpack.c.b16 %v2489, %v2481
        %v3138 = vpack.c.b16 %v2490, %v2482
        %v3139 = vpack.c.b16 %v2499, %v2491
        %v3140 = vpack.c.b16 %v2500, %v2492
        %v3141 = vpack.c.b16 %v2501, %v2493
        %v3142 = vpack.c.b16 %v2502, %v2494
        %v3143 = vpack.c.b16 %v2503, %v2495
        %v3144 = vpack.c.b16 %v2504, %v2496
        %v3145 = vpack.c.b16 %v2505, %v2497
        %v3146 = vpack.c.b16 %v2506, %v2498
        %v3147 = vpack.c.b16 %v2515, %v2507
        %v3148 = vpack.c.b16 %v2516, %v2508
        %v3149 = vpack.c.b16 %v2517, %v2509
        %v3150 = vpack.c.b16 %v2518, %v2510
        %v3151 = vpack.c.b16 %v2519, %v2511
        %v3152 = vpack.c.b16 %v2520, %v2512
        %v3153 = vpack.c.b16 %v2521, %v2513
        %v3154 = vpack.c.b16 %v2522, %v2514
        %v3155 = vpack.c.b16 %v2531, %v2523
        %v3156 = vpack.c.b16 %v2532, %v2524
        %v3157 = vpack.c.b16 %v2533, %v2525
        %v3158 = vpack.c.b16 %v2534, %v2526
        %v3159 = vpack.c.b16 %v2535, %v2527
        %v3160 = vpack.c.b16 %v2536, %v2528
        %v3161 = vpack.c.b16 %v2537, %v2529
        %v3162 = vpack.c.b16 %v2538, %v2530
        %v3163 = vpack.c.b16 %v2547, %v2539
        %v3164 = vpack.c.b16 %v2548, %v2540
        %v3165 = vpack.c.b16 %v2549, %v2541
        %v3166 = vpack.c.b16 %v2550, %v2542
        %v3167 = vpack.c.b16 %v2551, %v2543
        %v3168 = vpack.c.b16 %v2552, %v2544
        %v3169 = vpack.c.b16 %v2553, %v2545
        %v3170 = vpack.c.b16 %v2554, %v2546
        %v3171 = vpack.c.b16 %v2563, %v2555
        %v3172 = vpack.c.b16 %v2564, %v2556
        %v3173 = vpack.c.b16 %v2565, %v2557
        %v3174 = vpack.c.b16 %v2566, %v2558
        %v3175 = vpack.c.b16 %v2567, %v2559
        %v3176 = vpack.c.b16 %v2568, %v2560
        %v3177 = vpack.c.b16 %v2569, %v2561
        %v3178 = vpack.c.b16 %v2570, %v2562
        %v3179 = vpack.c.b16 %v2579, %v2571
        %v3180 = vpack.c.b16 %v2580, %v2572
        %v3181 = vpack.c.b16 %v2581, %v2573
        %v3182 = vpack.c.b16 %v2582, %v2574
        %v3183 = vpack.c.b16 %v2583, %v2575
        %v3184 = vpack.c.b16 %v2584, %v2576
        %v3185 = vpack.c.b16 %v2585, %v2577
        %v3186 = vpack.c.b16 %v2586, %v2578
        %v3187 = vpack.c.b16 %v2595, %v2587
        %v3188 = vpack.c.b16 %v2596, %v2588
        %v3189 = vpack.c.b16 %v2597, %v2589
        %v3190 = vpack.c.b16 %v2598, %v2590
        %v3191 = vpack.c.b16 %v2599, %v2591
        %v3192 = vpack.c.b16 %v2600, %v2592
        %v3193 = vpack.c.b16 %v2601, %v2593
        %v3194 = vpack.c.b16 %v2602, %v2594
        %v3195 = vpack.c.b16 %v2611, %v2603
        %v3196 = vpack.c.b16 %v2612, %v2604
        %v3197 = vpack.c.b16 %v2613, %v2605
        %v3198 = vpack.c.b16 %v2614, %v2606
        %v3199 = vpack.c.b16 %v2615, %v2607
        %v3200 = vpack.c.b16 %v2616, %v2608
        %v3201 = vpack.c.b16 %v2617, %v2609
        %v3202 = vpack.c.b16 %v2618, %v2610
        %v3203 = vpack.c.b16 %v2627, %v2619
        %v3204 = vpack.c.b16 %v2628, %v2620
        %v3205 = vpack.c.b16 %v2629, %v2621
        %v3206 = vpack.c.b16 %v2630, %v2622
        %v3207 = vpack.c.b16 %v2631, %v2623
        %v3208 = vpack.c.b16 %v2632, %v2624
        %v3209 = vpack.c.b16 %v2633, %v2625
        %v3210 = vpack.c.b16 %v2634, %v2626
        %v3211 = vpack.c.b16 %v2643, %v2635
        %v3212 = vpack.c.b16 %v2644, %v2636
        %v3213 = vpack.c.b16 %v2645, %v2637
        %v3214 = vpack.c.b16 %v2646, %v2638
        %v3215 = vpack.c.b16 %v2647, %v2639
        %v3216 = vpack.c.b16 %v2648, %v2640
        %v3217 = vpack.c.b16 %v2649, %v2641
        %v3218 = vpack.c.b16 %v2650, %v2642
        %v3219 = vpack.c.b16 %v2659, %v2651
        %v3220 = vpack.c.b16 %v2660, %v2652
        %v3221 = vpack.c.b16 %v2661, %v2653
        %v3222 = vpack.c.b16 %v2662, %v2654
        %v3223 = vpack.c.b16 %v2663, %v2655
        %v3224 = vpack.c.b16 %v2664, %v2656
        %v3225 = vpack.c.b16 %v2665, %v2657
        %v3226 = vpack.c.b16 %v2666, %v2658
        %v3227 = vpack.c.b16 %v2675, %v2667
        %v3228 = vpack.c.b16 %v2676, %v2668
        %v3229 = vpack.c.b16 %v2677, %v2669
        %v3230 = vpack.c.b16 %v2678, %v2670
        %v3231 = vpack.c.b16 %v2679, %v2671
        %v3232 = vpack.c.b16 %v2680, %v2672
        %v3233 = vpack.c.b16 %v2681, %v2673
        %v3234 = vpack.c.b16 %v2682, %v2674
        %v3235 = vpack.c.b16 %v2691, %v2683
        %v3236 = vpack.c.b16 %v2692, %v2684
        %v3237 = vpack.c.b16 %v2693, %v2685
        %v3238 = vpack.c.b16 %v2694, %v2686
        %v3239 = vpack.c.b16 %v2695, %v2687
        %v3240 = vpack.c.b16 %v2696, %v2688
        %v3241 = vpack.c.b16 %v2697, %v2689
        %v3242 = vpack.c.b16 %v2698, %v2690
        %v3243 = vpack.c.b16 %v2707, %v2699
        %v3244 = vpack.c.b16 %v2708, %v2700
        %v3245 = vpack.c.b16 %v2709, %v2701
        %v3246 = vpack.c.b16 %v2710, %v2702
        %v3247 = vpack.c.b16 %v2711, %v2703
        %v3248 = vpack.c.b16 %v2712, %v2704
        %v3249 = vpack.c.b16 %v2713, %v2705
        %v3250 = vpack.c.b16 %v2714, %v2706
        %v3251 = vpack.c.b16 %v2723, %v2715
        %v3252 = vpack.c.b16 %v2724, %v2716
        %v3253 = vpack.c.b16 %v2725, %v2717
        %v3254 = vpack.c.b16 %v2726, %v2718
        %v3255 = vpack.c.b16 %v2727, %v2719
        %v3256 = vpack.c.b16 %v2728, %v2720
        %v3257 = vpack.c.b16 %v2729, %v2721
        %v3258 = vpack.c.b16 %v2730, %v2722
        %v3259 = vpack.c.b16 %v2739, %v2731
        %v3260 = vpack.c.b16 %v2740, %v2732
        %v3261 = vpack.c.b16 %v2741, %v2733
        %v3262 = vpack.c.b16 %v2742, %v2734
        %v3263 = vpack.c.b16 %v2743, %v2735
        %v3264 = vpack.c.b16 %v2744, %v2736
        %v3265 = vpack.c.b16 %v2745, %v2737
        %v3266 = vpack.c.b16 %v2746, %v2738
        %v3267 = vpack.c.b16 %v2755, %v2747
        %v3268 = vpack.c.b16 %v2756, %v2748
        %v3269 = vpack.c.b16 %v2757, %v2749
        %v3270 = vpack.c.b16 %v2758, %v2750
        %v3271 = vpack.c.b16 %v2759, %v2751
        %v3272 = vpack.c.b16 %v2760, %v2752
        %v3273 = vpack.c.b16 %v2761, %v2753
        %v3274 = vpack.c.b16 %v2762, %v2754
        %3787 = vmatprep.subr.bf16.mxu0 %v2820
        %3788 = vmatpush1.bf16.msra.mxu0 %v2819
        %3789 = vmatprep.subr.bf16.mxu0 %v2812
        %3790 = vmatpush1.bf16.msra.mxu0 %v2811
        %3791 = vmatprep.subr.bf16.mxu0 %v2804
        %3792 = vmatpush1.bf16.msra.mxu0 %v2803
        %3793 = vmatprep.subr.bf16.mxu0 %v2796
        %3794 = vmatpush1.bf16.msra.mxu0 %v2795
        %3795 = vmatprep.subr.bf16.mxu0 %v2788
        %3796 = vmatpush1.bf16.msra.mxu0 %v2787
        %3797 = vmatprep.subr.bf16.mxu0 %v2780
        %3798 = vmatpush1.bf16.msra.mxu0 %v2779
        %3799 = vmatprep.subr.bf16.mxu0 %v2772
        %3800 = vmatpush1.bf16.msra.mxu0 %v2771
        %3801 = vmatprep.subr.bf16.mxu0 %v2764
        %3802 = vmatpush1.bf16.msra.mxu0 %v2763
        %3803 = vmatprep.subr.bf16.mxu0 %v2884
        %3804 = vmatpush2.bf16.msra.mxu0 %v2883
        %3805 = vmatprep.subr.bf16.mxu0 %v2876
        %3806 = vmatpush2.bf16.msra.mxu0 %v2875
        %3807 = vmatprep.subr.bf16.mxu0 %v2868
        %3808 = vmatpush2.bf16.msra.mxu0 %v2867
        %3809 = vmatprep.subr.bf16.mxu0 %v2860
        %3810 = vmatpush2.bf16.msra.mxu0 %v2859
        %3811 = vmatprep.subr.bf16.mxu0 %v2852
        %3812 = vmatpush2.bf16.msra.mxu0 %v2851
        %3813 = vmatprep.subr.bf16.mxu0 %v2844
        %3814 = vmatpush2.bf16.msra.mxu0 %v2843
        %3815 = vmatprep.subr.bf16.mxu0 %v2836
        %3816 = vmatpush2.bf16.msra.mxu0 %v2835
        %3817 = vmatprep.subr.bf16.mxu0 %v2828
        %3818 = vmatpush2.bf16.msra.mxu0 %v2827
        %3819 = vmatprep.mubr.bf16.mxu0 %v1100
        %3820 = vmatmul.mubr.bf16.gmra.mxu0 %v1099
        %v3821 = vpop.f32.mrf.mxu0
        %v3822 = vadd.f32 %v870, %v3821
        %v3823 = vpop.f32.mrf.mxu0
        %v3824 = vadd.f32 %v874, %v3823
        %v3825 = vpop.f32.mrf.mxu0
        %v3826 = vadd.f32 %v870, %v3825
        %v3827 = vpop.f32.mrf.mxu0
        %v3828 = vadd.f32 %v874, %v3827
        %3829 = vmatprep.mubr.bf16.mxu0 %v1108
        %3830 = vmatmul.mubr.bf16.gmra.mxu0 %v1107
        %v3831 = vpop.f32.mrf.mxu0
        %v3832 = vadd.f32 %v870, %v3831
        %v3833 = vpop.f32.mrf.mxu0
        %v3834 = vadd.f32 %v874, %v3833
        %v3835 = vpop.f32.mrf.mxu0
        %v3836 = vadd.f32 %v870, %v3835
        %v3837 = vpop.f32.mrf.mxu0
        %v3838 = vadd.f32 %v874, %v3837
        %3839 = vmatprep.mubr.bf16.mxu0 %v1116
        %3840 = vmatmul.mubr.bf16.gmra.mxu0 %v1115
        %v3841 = vpop.f32.mrf.mxu0
        %v3842 = vadd.f32 %v870, %v3841
        %v3843 = vpop.f32.mrf.mxu0
        %v3844 = vadd.f32 %v874, %v3843
        %v3845 = vpop.f32.mrf.mxu0
        %v3846 = vadd.f32 %v870, %v3845
        %v3847 = vpop.f32.mrf.mxu0
        %v3848 = vadd.f32 %v874, %v3847
        %3849 = vmatprep.mubr.bf16.mxu0 %v1124
        %3850 = vmatmul.mubr.bf16.gmra.mxu0 %v1123
        %v3851 = vpop.f32.mrf.mxu0
        %v3852 = vadd.f32 %v870, %v3851
        %v3853 = vpop.f32.mrf.mxu0
        %v3854 = vadd.f32 %v874, %v3853
        %v3855 = vpop.f32.mrf.mxu0
        %v3856 = vadd.f32 %v870, %v3855
        %v3857 = vpop.f32.mrf.mxu0
        %v3858 = vadd.f32 %v874, %v3857
        %3859 = vmatprep.mubr.bf16.mxu0 %v1132
        %3860 = vmatmul.mubr.bf16.gmra.mxu0 %v1131
        %v3861 = vpop.f32.mrf.mxu0
        %v3862 = vadd.f32 %v870, %v3861
        %v3863 = vpop.f32.mrf.mxu0
        %v3864 = vadd.f32 %v874, %v3863
        %v3865 = vpop.f32.mrf.mxu0
        %v3866 = vadd.f32 %v870, %v3865
        %v3867 = vpop.f32.mrf.mxu0
        %v3868 = vadd.f32 %v874, %v3867
        %3869 = vmatprep.mubr.bf16.mxu0 %v1140
        %3870 = vmatmul.mubr.bf16.gmra.mxu0 %v1139
        %v3871 = vpop.f32.mrf.mxu0
        %v3872 = vadd.f32 %v870, %v3871
        %v3873 = vpop.f32.mrf.mxu0
        %v3874 = vadd.f32 %v874, %v3873
        %v3875 = vpop.f32.mrf.mxu0
        %v3876 = vadd.f32 %v870, %v3875
        %v3877 = vpop.f32.mrf.mxu0
        %v3878 = vadd.f32 %v874, %v3877
        %3879 = vmatprep.mubr.bf16.mxu0 %v1148
        %3880 = vmatmul.mubr.bf16.gmra.mxu0 %v1147
        %v3881 = vpop.f32.mrf.mxu0
        %v3882 = vadd.f32 %v870, %v3881
        %v3883 = vpop.f32.mrf.mxu0
        %v3884 = vadd.f32 %v874, %v3883
        %v3885 = vpop.f32.mrf.mxu0
        %v3886 = vadd.f32 %v870, %v3885
        %v3887 = vpop.f32.mrf.mxu0
        %v3888 = vadd.f32 %v874, %v3887
        %3889 = vmatprep.mubr.bf16.mxu0 %v1156
        %3890 = vmatmul.mubr.bf16.gmra.mxu0 %v1155
        %v3891 = vpop.f32.mrf.mxu0
        %v3892 = vadd.f32 %v870, %v3891
        %v3893 = vpop.f32.mrf.mxu0
        %v3894 = vadd.f32 %v874, %v3893
        %v3895 = vpop.f32.mrf.mxu0
        %v3896 = vadd.f32 %v870, %v3895
        %v3897 = vpop.f32.mrf.mxu0
        %v3898 = vadd.f32 %v874, %v3897
        %3899 = vdwg.mxu0
        %3900 = vmatprep.subr.bf16.mxu0 %v2948
        %3901 = vmatpush1.bf16.msra.mxu0 %v2947
        %3902 = vmatprep.subr.bf16.mxu0 %v2940
        %3903 = vmatpush1.bf16.msra.mxu0 %v2939
        %3904 = vmatprep.subr.bf16.mxu0 %v2932
        %3905 = vmatpush1.bf16.msra.mxu0 %v2931
        %3906 = vmatprep.subr.bf16.mxu0 %v2924
        %3907 = vmatpush1.bf16.msra.mxu0 %v2923
        %3908 = vmatprep.subr.bf16.mxu0 %v2916
        %3909 = vmatpush1.bf16.msra.mxu0 %v2915
        %3910 = vmatprep.subr.bf16.mxu0 %v2908
        %3911 = vmatpush1.bf16.msra.mxu0 %v2907
        %3912 = vmatprep.subr.bf16.mxu0 %v2900
        %3913 = vmatpush1.bf16.msra.mxu0 %v2899
        %3914 = vmatprep.subr.bf16.mxu0 %v2892
        %3915 = vmatpush1.bf16.msra.mxu0 %v2891
        %3916 = vmatprep.subr.bf16.mxu0 %v3012
        %3917 = vmatpush2.bf16.msra.mxu0 %v3011
        %3918 = vmatprep.subr.bf16.mxu0 %v3004
        %3919 = vmatpush2.bf16.msra.mxu0 %v3003
        %3920 = vmatprep.subr.bf16.mxu0 %v2996
        %3921 = vmatpush2.bf16.msra.mxu0 %v2995
        %3922 = vmatprep.subr.bf16.mxu0 %v2988
        %3923 = vmatpush2.bf16.msra.mxu0 %v2987
        %3924 = vmatprep.subr.bf16.mxu0 %v2980
        %3925 = vmatpush2.bf16.msra.mxu0 %v2979
        %3926 = vmatprep.subr.bf16.mxu0 %v2972
        %3927 = vmatpush2.bf16.msra.mxu0 %v2971
        %3928 = vmatprep.subr.bf16.mxu0 %v2964
        %3929 = vmatpush2.bf16.msra.mxu0 %v2963
        %3930 = vmatprep.subr.bf16.mxu0 %v2956
        %3931 = vmatpush2.bf16.msra.mxu0 %v2955
        %3932 = vmatprep.mubr.bf16.mxu0 %v1102
        %3933 = vmatmul.mubr.bf16.gmra.mxu0 %v1101
        %v3934 = vpop.f32.mrf.mxu0
        %v3935 = vadd.f32 %v3822, %v3934
        %v3936 = vpop.f32.mrf.mxu0
        %v3937 = vadd.f32 %v3824, %v3936
        %v3938 = vpop.f32.mrf.mxu0
        %v3939 = vadd.f32 %v3826, %v3938
        %v3940 = vpop.f32.mrf.mxu0
        %v3941 = vadd.f32 %v3828, %v3940
        %3942 = vmatprep.mubr.bf16.mxu0 %v1110
        %3943 = vmatmul.mubr.bf16.gmra.mxu0 %v1109
        %v3944 = vpop.f32.mrf.mxu0
        %v3945 = vadd.f32 %v3832, %v3944
        %v3946 = vpop.f32.mrf.mxu0
        %v3947 = vadd.f32 %v3834, %v3946
        %v3948 = vpop.f32.mrf.mxu0
        %v3949 = vadd.f32 %v3836, %v3948
        %v3950 = vpop.f32.mrf.mxu0
        %v3951 = vadd.f32 %v3838, %v3950
        %3952 = vmatprep.mubr.bf16.mxu0 %v1118
        %3953 = vmatmul.mubr.bf16.gmra.mxu0 %v1117
        %v3954 = vpop.f32.mrf.mxu0
        %v3955 = vadd.f32 %v3842, %v3954
        %v3956 = vpop.f32.mrf.mxu0
        %v3957 = vadd.f32 %v3844, %v3956
        %v3958 = vpop.f32.mrf.mxu0
        %v3959 = vadd.f32 %v3846, %v3958
        %v3960 = vpop.f32.mrf.mxu0
        %v3961 = vadd.f32 %v3848, %v3960
        %3962 = vmatprep.mubr.bf16.mxu0 %v1126
        %3963 = vmatmul.mubr.bf16.gmra.mxu0 %v1125
        %v3964 = vpop.f32.mrf.mxu0
        %v3965 = vadd.f32 %v3852, %v3964
        %v3966 = vpop.f32.mrf.mxu0
        %v3967 = vadd.f32 %v3854, %v3966
        %v3968 = vpop.f32.mrf.mxu0
        %v3969 = vadd.f32 %v3856, %v3968
        %v3970 = vpop.f32.mrf.mxu0
        %v3971 = vadd.f32 %v3858, %v3970
        %3972 = vmatprep.mubr.bf16.mxu0 %v1134
        %3973 = vmatmul.mubr.bf16.gmra.mxu0 %v1133
        %v3974 = vpop.f32.mrf.mxu0
        %v3975 = vadd.f32 %v3862, %v3974
        %v3976 = vpop.f32.mrf.mxu0
        %v3977 = vadd.f32 %v3864, %v3976
        %v3978 = vpop.f32.mrf.mxu0
        %v3979 = vadd.f32 %v3866, %v3978
        %v3980 = vpop.f32.mrf.mxu0
        %v3981 = vadd.f32 %v3868, %v3980
        %3982 = vmatprep.mubr.bf16.mxu0 %v1142
        %3983 = vmatmul.mubr.bf16.gmra.mxu0 %v1141
        %v3984 = vpop.f32.mrf.mxu0
        %v3985 = vadd.f32 %v3872, %v3984
        %v3986 = vpop.f32.mrf.mxu0
        %v3987 = vadd.f32 %v3874, %v3986
        %v3988 = vpop.f32.mrf.mxu0
        %v3989 = vadd.f32 %v3876, %v3988
        %v3990 = vpop.f32.mrf.mxu0
        %v3991 = vadd.f32 %v3878, %v3990
        %3992 = vmatprep.mubr.bf16.mxu0 %v1150
        %3993 = vmatmul.mubr.bf16.gmra.mxu0 %v1149
        %v3994 = vpop.f32.mrf.mxu0
        %v3995 = vadd.f32 %v3882, %v3994
        %v3996 = vpop.f32.mrf.mxu0
        %v3997 = vadd.f32 %v3884, %v3996
        %v3998 = vpop.f32.mrf.mxu0
        %v3999 = vadd.f32 %v3886, %v3998
        %v4000 = vpop.f32.mrf.mxu0
        %v4001 = vadd.f32 %v3888, %v4000
        %4002 = vmatprep.mubr.bf16.mxu0 %v1158
        %4003 = vmatmul.mubr.bf16.gmra.mxu0 %v1157
        %v4004 = vpop.f32.mrf.mxu0
        %v4005 = vadd.f32 %v3892, %v4004
        %v4006 = vpop.f32.mrf.mxu0
        %v4007 = vadd.f32 %v3894, %v4006
        %v4008 = vpop.f32.mrf.mxu0
        %v4009 = vadd.f32 %v3896, %v4008
        %v4010 = vpop.f32.mrf.mxu0
        %v4011 = vadd.f32 %v3898, %v4010
        %4012 = vdwg.mxu0
        %4013 = vmatprep.subr.bf16.mxu0 %v3076
        %4014 = vmatpush1.bf16.msra.mxu0 %v3075
        %4015 = vmatprep.subr.bf16.mxu0 %v3068
        %4016 = vmatpush1.bf16.msra.mxu0 %v3067
        %4017 = vmatprep.subr.bf16.mxu0 %v3060
        %4018 = vmatpush1.bf16.msra.mxu0 %v3059
        %4019 = vmatprep.subr.bf16.mxu0 %v3052
        %4020 = vmatpush1.bf16.msra.mxu0 %v3051
        %4021 = vmatprep.subr.bf16.mxu0 %v3044
        %4022 = vmatpush1.bf16.msra.mxu0 %v3043
        %4023 = vmatprep.subr.bf16.mxu0 %v3036
        %4024 = vmatpush1.bf16.msra.mxu0 %v3035
        %4025 = vmatprep.subr.bf16.mxu0 %v3028
        %4026 = vmatpush1.bf16.msra.mxu0 %v3027
        %4027 = vmatprep.subr.bf16.mxu0 %v3020
        %4028 = vmatpush1.bf16.msra.mxu0 %v3019
        %4029 = vmatprep.subr.bf16.mxu0 %v3140
        %4030 = vmatpush2.bf16.msra.mxu0 %v3139
        %4031 = vmatprep.subr.bf16.mxu0 %v3132
        %4032 = vmatpush2.bf16.msra.mxu0 %v3131
        %4033 = vmatprep.subr.bf16.mxu0 %v3124
        %4034 = vmatpush2.bf16.msra.mxu0 %v3123
        %4035 = vmatprep.subr.bf16.mxu0 %v3116
        %4036 = vmatpush2.bf16.msra.mxu0 %v3115
        %4037 = vmatprep.subr.bf16.mxu0 %v3108
        %4038 = vmatpush2.bf16.msra.mxu0 %v3107
        %4039 = vmatprep.subr.bf16.mxu0 %v3100
        %4040 = vmatpush2.bf16.msra.mxu0 %v3099
        %4041 = vmatprep.subr.bf16.mxu0 %v3092
        %4042 = vmatpush2.bf16.msra.mxu0 %v3091
        %4043 = vmatprep.subr.bf16.mxu0 %v3084
        %4044 = vmatpush2.bf16.msra.mxu0 %v3083
        %4045 = vmatprep.mubr.bf16.mxu0 %v1104
        %4046 = vmatmul.mubr.bf16.gmra.mxu0 %v1103
        %v4047 = vpop.f32.mrf.mxu0
        %v4048 = vadd.f32 %v3935, %v4047
        %v4049 = vpop.f32.mrf.mxu0
        %v4050 = vadd.f32 %v3937, %v4049
        %v4051 = vpop.f32.mrf.mxu0
        %v4052 = vadd.f32 %v3939, %v4051
        %v4053 = vpop.f32.mrf.mxu0
        %v4054 = vadd.f32 %v3941, %v4053
        %4055 = vmatprep.mubr.bf16.mxu0 %v1112
        %4056 = vmatmul.mubr.bf16.gmra.mxu0 %v1111
        %v4057 = vpop.f32.mrf.mxu0
        %v4058 = vadd.f32 %v3945, %v4057
        %v4059 = vpop.f32.mrf.mxu0
        %v4060 = vadd.f32 %v3947, %v4059
        %v4061 = vpop.f32.mrf.mxu0
        %v4062 = vadd.f32 %v3949, %v4061
        %v4063 = vpop.f32.mrf.mxu0
        %v4064 = vadd.f32 %v3951, %v4063
        %4065 = vmatprep.mubr.bf16.mxu0 %v1120
        %4066 = vmatmul.mubr.bf16.gmra.mxu0 %v1119
        %v4067 = vpop.f32.mrf.mxu0
        %v4068 = vadd.f32 %v3955, %v4067
        %v4069 = vpop.f32.mrf.mxu0
        %v4070 = vadd.f32 %v3957, %v4069
        %v4071 = vpop.f32.mrf.mxu0
        %v4072 = vadd.f32 %v3959, %v4071
        %v4073 = vpop.f32.mrf.mxu0
        %v4074 = vadd.f32 %v3961, %v4073
        %4075 = vmatprep.mubr.bf16.mxu0 %v1128
        %4076 = vmatmul.mubr.bf16.gmra.mxu0 %v1127
        %v4077 = vpop.f32.mrf.mxu0
        %v4078 = vadd.f32 %v3965, %v4077
        %v4079 = vpop.f32.mrf.mxu0
        %v4080 = vadd.f32 %v3967, %v4079
        %v4081 = vpop.f32.mrf.mxu0
        %v4082 = vadd.f32 %v3969, %v4081
        %v4083 = vpop.f32.mrf.mxu0
        %v4084 = vadd.f32 %v3971, %v4083
        %4085 = vmatprep.mubr.bf16.mxu0 %v1136
        %4086 = vmatmul.mubr.bf16.gmra.mxu0 %v1135
        %v4087 = vpop.f32.mrf.mxu0
        %v4088 = vadd.f32 %v3975, %v4087
        %v4089 = vpop.f32.mrf.mxu0
        %v4090 = vadd.f32 %v3977, %v4089
        %v4091 = vpop.f32.mrf.mxu0
        %v4092 = vadd.f32 %v3979, %v4091
        %v4093 = vpop.f32.mrf.mxu0
        %v4094 = vadd.f32 %v3981, %v4093
        %4095 = vmatprep.mubr.bf16.mxu0 %v1144
        %4096 = vmatmul.mubr.bf16.gmra.mxu0 %v1143
        %v4097 = vpop.f32.mrf.mxu0
        %v4098 = vadd.f32 %v3985, %v4097
        %v4099 = vpop.f32.mrf.mxu0
        %v4100 = vadd.f32 %v3987, %v4099
        %v4101 = vpop.f32.mrf.mxu0
        %v4102 = vadd.f32 %v3989, %v4101
        %v4103 = vpop.f32.mrf.mxu0
        %v4104 = vadd.f32 %v3991, %v4103
        %4105 = vmatprep.mubr.bf16.mxu0 %v1152
        %4106 = vmatmul.mubr.bf16.gmra.mxu0 %v1151
        %v4107 = vpop.f32.mrf.mxu0
        %v4108 = vadd.f32 %v3995, %v4107
        %v4109 = vpop.f32.mrf.mxu0
        %v4110 = vadd.f32 %v3997, %v4109
        %v4111 = vpop.f32.mrf.mxu0
        %v4112 = vadd.f32 %v3999, %v4111
        %v4113 = vpop.f32.mrf.mxu0
        %v4114 = vadd.f32 %v4001, %v4113
        %4115 = vmatprep.mubr.bf16.mxu0 %v1160
        %4116 = vmatmul.mubr.bf16.gmra.mxu0 %v1159
        %v4117 = vpop.f32.mrf.mxu0
        %v4118 = vadd.f32 %v4005, %v4117
        %v4119 = vpop.f32.mrf.mxu0
        %v4120 = vadd.f32 %v4007, %v4119
        %v4121 = vpop.f32.mrf.mxu0
        %v4122 = vadd.f32 %v4009, %v4121
        %v4123 = vpop.f32.mrf.mxu0
        %v4124 = vadd.f32 %v4011, %v4123
        %4125 = vdwg.mxu0
        %4126 = vmatprep.subr.bf16.mxu0 %v3204
        %4127 = vmatpush1.bf16.msra.mxu0 %v3203
        %4128 = vmatprep.subr.bf16.mxu0 %v3196
        %4129 = vmatpush1.bf16.msra.mxu0 %v3195
        %4130 = vmatprep.subr.bf16.mxu0 %v3188
        %4131 = vmatpush1.bf16.msra.mxu0 %v3187
        %4132 = vmatprep.subr.bf16.mxu0 %v3180
        %4133 = vmatpush1.bf16.msra.mxu0 %v3179
        %4134 = vmatprep.subr.bf16.mxu0 %v3172
        %4135 = vmatpush1.bf16.msra.mxu0 %v3171
        %4136 = vmatprep.subr.bf16.mxu0 %v3164
        %4137 = vmatpush1.bf16.msra.mxu0 %v3163
        %4138 = vmatprep.subr.bf16.mxu0 %v3156
        %4139 = vmatpush1.bf16.msra.mxu0 %v3155
        %4140 = vmatprep.subr.bf16.mxu0 %v3148
        %4141 = vmatpush1.bf16.msra.mxu0 %v3147
        %4142 = vmatprep.subr.bf16.mxu0 %v3268
        %4143 = vmatpush2.bf16.msra.mxu0 %v3267
        %4144 = vmatprep.subr.bf16.mxu0 %v3260
        %4145 = vmatpush2.bf16.msra.mxu0 %v3259
        %4146 = vmatprep.subr.bf16.mxu0 %v3252
        %4147 = vmatpush2.bf16.msra.mxu0 %v3251
        %4148 = vmatprep.subr.bf16.mxu0 %v3244
        %4149 = vmatpush2.bf16.msra.mxu0 %v3243
        %4150 = vmatprep.subr.bf16.mxu0 %v3236
        %4151 = vmatpush2.bf16.msra.mxu0 %v3235
        %4152 = vmatprep.subr.bf16.mxu0 %v3228
        %4153 = vmatpush2.bf16.msra.mxu0 %v3227
        %4154 = vmatprep.subr.bf16.mxu0 %v3220
        %4155 = vmatpush2.bf16.msra.mxu0 %v3219
        %4156 = vmatprep.subr.bf16.mxu0 %v3212
        %4157 = vmatpush2.bf16.msra.mxu0 %v3211
        %4158 = vmatprep.mubr.bf16.mxu0 %v1106
        %4159 = vmatmul.mubr.bf16.gmra.mxu0 %v1105
        %v4160 = vpop.f32.mrf.mxu0
        %v4161 = vadd.f32 %v4048, %v4160
        %v4162 = vpop.f32.mrf.mxu0
        %v4163 = vadd.f32 %v4050, %v4162
        %v4164 = vpop.f32.mrf.mxu0
        %v4165 = vadd.f32 %v4052, %v4164
        %v4166 = vpop.f32.mrf.mxu0
        %v4167 = vadd.f32 %v4054, %v4166
        %4168 = vmatprep.mubr.bf16.mxu0 %v1114
        %4169 = vmatmul.mubr.bf16.gmra.mxu0 %v1113
        %v4170 = vpop.f32.mrf.mxu0
        %v4171 = vadd.f32 %v4058, %v4170
        %v4172 = vpop.f32.mrf.mxu0
        %v4173 = vadd.f32 %v4060, %v4172
        %v4174 = vpop.f32.mrf.mxu0
        %v4175 = vadd.f32 %v4062, %v4174
        %v4176 = vpop.f32.mrf.mxu0
        %v4177 = vadd.f32 %v4064, %v4176
        %4178 = vmatprep.mubr.bf16.mxu0 %v1122
        %4179 = vmatmul.mubr.bf16.gmra.mxu0 %v1121
        %v4180 = vpop.f32.mrf.mxu0
        %v4181 = vadd.f32 %v4068, %v4180
        %v4182 = vpop.f32.mrf.mxu0
        %v4183 = vadd.f32 %v4070, %v4182
        %v4184 = vpop.f32.mrf.mxu0
        %v4185 = vadd.f32 %v4072, %v4184
        %v4186 = vpop.f32.mrf.mxu0
        %v4187 = vadd.f32 %v4074, %v4186
        %4188 = vmatprep.mubr.bf16.mxu0 %v1130
        %4189 = vmatmul.mubr.bf16.gmra.mxu0 %v1129
        %v4190 = vpop.f32.mrf.mxu0
        %v4191 = vadd.f32 %v4078, %v4190
        %v4192 = vpop.f32.mrf.mxu0
        %v4193 = vadd.f32 %v4080, %v4192
        %v4194 = vpop.f32.mrf.mxu0
        %v4195 = vadd.f32 %v4082, %v4194
        %v4196 = vpop.f32.mrf.mxu0
        %v4197 = vadd.f32 %v4084, %v4196
        %4198 = vmatprep.mubr.bf16.mxu0 %v1138
        %4199 = vmatmul.mubr.bf16.gmra.mxu0 %v1137
        %v4200 = vpop.f32.mrf.mxu0
        %v4201 = vadd.f32 %v4088, %v4200
        %v4202 = vpop.f32.mrf.mxu0
        %v4203 = vadd.f32 %v4090, %v4202
        %v4204 = vpop.f32.mrf.mxu0
        %v4205 = vadd.f32 %v4092, %v4204
        %v4206 = vpop.f32.mrf.mxu0
        %v4207 = vadd.f32 %v4094, %v4206
        %4208 = vmatprep.mubr.bf16.mxu0 %v1146
        %4209 = vmatmul.mubr.bf16.gmra.mxu0 %v1145
        %v4210 = vpop.f32.mrf.mxu0
        %v4211 = vadd.f32 %v4098, %v4210
        %v4212 = vpop.f32.mrf.mxu0
        %v4213 = vadd.f32 %v4100, %v4212
        %v4214 = vpop.f32.mrf.mxu0
        %v4215 = vadd.f32 %v4102, %v4214
        %v4216 = vpop.f32.mrf.mxu0
        %v4217 = vadd.f32 %v4104, %v4216
        %4218 = vmatprep.mubr.bf16.mxu0 %v1154
        %4219 = vmatmul.mubr.bf16.gmra.mxu0 %v1153
        %v4220 = vpop.f32.mrf.mxu0
        %v4221 = vadd.f32 %v4108, %v4220
        %v4222 = vpop.f32.mrf.mxu0
        %v4223 = vadd.f32 %v4110, %v4222
        %v4224 = vpop.f32.mrf.mxu0
        %v4225 = vadd.f32 %v4112, %v4224
        %v4226 = vpop.f32.mrf.mxu0
        %v4227 = vadd.f32 %v4114, %v4226
        %4228 = vmatprep.mubr.bf16.mxu0 %v1162
        %4229 = vmatmul.mubr.bf16.gmra.mxu0 %v1161
        %v4230 = vpop.f32.mrf.mxu0
        %v4231 = vadd.f32 %v4118, %v4230
        %v4232 = vpop.f32.mrf.mxu0
        %v4233 = vadd.f32 %v4120, %v4232
        %v4234 = vpop.f32.mrf.mxu0
        %v4235 = vadd.f32 %v4122, %v4234
        %v4236 = vpop.f32.mrf.mxu0
        %v4237 = vadd.f32 %v4124, %v4236
        %4238 = vdwg.mxu0
        %4239 = vmatprep.subr.bf16.mxu0 %v2822
        %4240 = vmatpush1.bf16.msra.mxu0 %v2821
        %4241 = vmatprep.subr.bf16.mxu0 %v2814
        %4242 = vmatpush1.bf16.msra.mxu0 %v2813
        %4243 = vmatprep.subr.bf16.mxu0 %v2806
        %4244 = vmatpush1.bf16.msra.mxu0 %v2805
        %4245 = vmatprep.subr.bf16.mxu0 %v2798
        %4246 = vmatpush1.bf16.msra.mxu0 %v2797
        %4247 = vmatprep.subr.bf16.mxu0 %v2790
        %4248 = vmatpush1.bf16.msra.mxu0 %v2789
        %4249 = vmatprep.subr.bf16.mxu0 %v2782
        %4250 = vmatpush1.bf16.msra.mxu0 %v2781
        %4251 = vmatprep.subr.bf16.mxu0 %v2774
        %4252 = vmatpush1.bf16.msra.mxu0 %v2773
        %4253 = vmatprep.subr.bf16.mxu0 %v2766
        %4254 = vmatpush1.bf16.msra.mxu0 %v2765
        %4255 = vmatprep.subr.bf16.mxu0 %v2886
        %4256 = vmatpush2.bf16.msra.mxu0 %v2885
        %4257 = vmatprep.subr.bf16.mxu0 %v2878
        %4258 = vmatpush2.bf16.msra.mxu0 %v2877
        %4259 = vmatprep.subr.bf16.mxu0 %v2870
        %4260 = vmatpush2.bf16.msra.mxu0 %v2869
        %4261 = vmatprep.subr.bf16.mxu0 %v2862
        %4262 = vmatpush2.bf16.msra.mxu0 %v2861
        %4263 = vmatprep.subr.bf16.mxu0 %v2854
        %4264 = vmatpush2.bf16.msra.mxu0 %v2853
        %4265 = vmatprep.subr.bf16.mxu0 %v2846
        %4266 = vmatpush2.bf16.msra.mxu0 %v2845
        %4267 = vmatprep.subr.bf16.mxu0 %v2838
        %4268 = vmatpush2.bf16.msra.mxu0 %v2837
        %4269 = vmatprep.subr.bf16.mxu0 %v2830
        %4270 = vmatpush2.bf16.msra.mxu0 %v2829
        %4271 = vmatprep.mubr.bf16.mxu0 %v1100
        %4272 = vmatmul.mubr.bf16.gmra.mxu0 %v1099
        %v4273 = vpop.f32.mrf.mxu0
        %v4274 = vadd.f32 %v878, %v4273
        %v4275 = vpop.f32.mrf.mxu0
        %v4276 = vadd.f32 %v882, %v4275
        %v4277 = vpop.f32.mrf.mxu0
        %v4278 = vadd.f32 %v878, %v4277
        %v4279 = vpop.f32.mrf.mxu0
        %v4280 = vadd.f32 %v882, %v4279
        %4281 = vmatprep.mubr.bf16.mxu0 %v1108
        %4282 = vmatmul.mubr.bf16.gmra.mxu0 %v1107
        %v4283 = vpop.f32.mrf.mxu0
        %v4284 = vadd.f32 %v878, %v4283
        %v4285 = vpop.f32.mrf.mxu0
        %v4286 = vadd.f32 %v882, %v4285
        %v4287 = vpop.f32.mrf.mxu0
        %v4288 = vadd.f32 %v878, %v4287
        %v4289 = vpop.f32.mrf.mxu0
        %v4290 = vadd.f32 %v882, %v4289
        %4291 = vmatprep.mubr.bf16.mxu0 %v1116
        %4292 = vmatmul.mubr.bf16.gmra.mxu0 %v1115
        %v4293 = vpop.f32.mrf.mxu0
        %v4294 = vadd.f32 %v878, %v4293
        %v4295 = vpop.f32.mrf.mxu0
        %v4296 = vadd.f32 %v882, %v4295
        %v4297 = vpop.f32.mrf.mxu0
        %v4298 = vadd.f32 %v878, %v4297
        %v4299 = vpop.f32.mrf.mxu0
        %v4300 = vadd.f32 %v882, %v4299
        %4301 = vmatprep.mubr.bf16.mxu0 %v1124
        %4302 = vmatmul.mubr.bf16.gmra.mxu0 %v1123
        %v4303 = vpop.f32.mrf.mxu0
        %v4304 = vadd.f32 %v878, %v4303
        %v4305 = vpop.f32.mrf.mxu0
        %v4306 = vadd.f32 %v882, %v4305
        %v4307 = vpop.f32.mrf.mxu0
        %v4308 = vadd.f32 %v878, %v4307
        %v4309 = vpop.f32.mrf.mxu0
        %v4310 = vadd.f32 %v882, %v4309
        %4311 = vmatprep.mubr.bf16.mxu0 %v1132
        %4312 = vmatmul.mubr.bf16.gmra.mxu0 %v1131
        %v4313 = vpop.f32.mrf.mxu0
        %v4314 = vadd.f32 %v878, %v4313
        %v4315 = vpop.f32.mrf.mxu0
        %v4316 = vadd.f32 %v882, %v4315
        %v4317 = vpop.f32.mrf.mxu0
        %v4318 = vadd.f32 %v878, %v4317
        %v4319 = vpop.f32.mrf.mxu0
        %v4320 = vadd.f32 %v882, %v4319
        %4321 = vmatprep.mubr.bf16.mxu0 %v1140
        %4322 = vmatmul.mubr.bf16.gmra.mxu0 %v1139
        %v4323 = vpop.f32.mrf.mxu0
        %v4324 = vadd.f32 %v878, %v4323
        %v4325 = vpop.f32.mrf.mxu0
        %v4326 = vadd.f32 %v882, %v4325
        %v4327 = vpop.f32.mrf.mxu0
        %v4328 = vadd.f32 %v878, %v4327
        %v4329 = vpop.f32.mrf.mxu0
        %v4330 = vadd.f32 %v882, %v4329
        %4331 = vmatprep.mubr.bf16.mxu0 %v1148
        %4332 = vmatmul.mubr.bf16.gmra.mxu0 %v1147
        %v4333 = vpop.f32.mrf.mxu0
        %v4334 = vadd.f32 %v878, %v4333
        %v4335 = vpop.f32.mrf.mxu0
        %v4336 = vadd.f32 %v882, %v4335
        %v4337 = vpop.f32.mrf.mxu0
        %v4338 = vadd.f32 %v878, %v4337
        %v4339 = vpop.f32.mrf.mxu0
        %v4340 = vadd.f32 %v882, %v4339
        %4341 = vmatprep.mubr.bf16.mxu0 %v1156
        %4342 = vmatmul.mubr.bf16.gmra.mxu0 %v1155
        %v4343 = vpop.f32.mrf.mxu0
        %v4344 = vadd.f32 %v878, %v4343
        %v4345 = vpop.f32.mrf.mxu0
        %v4346 = vadd.f32 %v882, %v4345
        %v4347 = vpop.f32.mrf.mxu0
        %v4348 = vadd.f32 %v878, %v4347
        %v4349 = vpop.f32.mrf.mxu0
        %v4350 = vadd.f32 %v882, %v4349
        %4351 = vdwg.mxu0
        %4352 = vmatprep.subr.bf16.mxu0 %v2950
        %4353 = vmatpush1.bf16.msra.mxu0 %v2949
        %4354 = vmatprep.subr.bf16.mxu0 %v2942
        %4355 = vmatpush1.bf16.msra.mxu0 %v2941
        %4356 = vmatprep.subr.bf16.mxu0 %v2934
        %4357 = vmatpush1.bf16.msra.mxu0 %v2933
        %4358 = vmatprep.subr.bf16.mxu0 %v2926
        %4359 = vmatpush1.bf16.msra.mxu0 %v2925
        %4360 = vmatprep.subr.bf16.mxu0 %v2918
        %4361 = vmatpush1.bf16.msra.mxu0 %v2917
        %4362 = vmatprep.subr.bf16.mxu0 %v2910
        %4363 = vmatpush1.bf16.msra.mxu0 %v2909
        %4364 = vmatprep.subr.bf16.mxu0 %v2902
        %4365 = vmatpush1.bf16.msra.mxu0 %v2901
        %4366 = vmatprep.subr.bf16.mxu0 %v2894
        %4367 = vmatpush1.bf16.msra.mxu0 %v2893
        %4368 = vmatprep.subr.bf16.mxu0 %v3014
        %4369 = vmatpush2.bf16.msra.mxu0 %v3013
        %4370 = vmatprep.subr.bf16.mxu0 %v3006
        %4371 = vmatpush2.bf16.msra.mxu0 %v3005
        %4372 = vmatprep.subr.bf16.mxu0 %v2998
        %4373 = vmatpush2.bf16.msra.mxu0 %v2997
        %4374 = vmatprep.subr.bf16.mxu0 %v2990
        %4375 = vmatpush2.bf16.msra.mxu0 %v2989
        %4376 = vmatprep.subr.bf16.mxu0 %v2982
        %4377 = vmatpush2.bf16.msra.mxu0 %v2981
        %4378 = vmatprep.subr.bf16.mxu0 %v2974
        %4379 = vmatpush2.bf16.msra.mxu0 %v2973
        %4380 = vmatprep.subr.bf16.mxu0 %v2966
        %4381 = vmatpush2.bf16.msra.mxu0 %v2965
        %4382 = vmatprep.subr.bf16.mxu0 %v2958
        %4383 = vmatpush2.bf16.msra.mxu0 %v2957
        %4384 = vmatprep.mubr.bf16.mxu0 %v1102
        %4385 = vmatmul.mubr.bf16.gmra.mxu0 %v1101
        %v4386 = vpop.f32.mrf.mxu0
        %v4387 = vadd.f32 %v4274, %v4386
        %v4388 = vpop.f32.mrf.mxu0
        %v4389 = vadd.f32 %v4276, %v4388
        %v4390 = vpop.f32.mrf.mxu0
        %v4391 = vadd.f32 %v4278, %v4390
        %v4392 = vpop.f32.mrf.mxu0
        %v4393 = vadd.f32 %v4280, %v4392
        %4394 = vmatprep.mubr.bf16.mxu0 %v1110
        %4395 = vmatmul.mubr.bf16.gmra.mxu0 %v1109
        %v4396 = vpop.f32.mrf.mxu0
        %v4397 = vadd.f32 %v4284, %v4396
        %v4398 = vpop.f32.mrf.mxu0
        %v4399 = vadd.f32 %v4286, %v4398
        %v4400 = vpop.f32.mrf.mxu0
        %v4401 = vadd.f32 %v4288, %v4400
        %v4402 = vpop.f32.mrf.mxu0
        %v4403 = vadd.f32 %v4290, %v4402
        %4404 = vmatprep.mubr.bf16.mxu0 %v1118
        %4405 = vmatmul.mubr.bf16.gmra.mxu0 %v1117
        %v4406 = vpop.f32.mrf.mxu0
        %v4407 = vadd.f32 %v4294, %v4406
        %v4408 = vpop.f32.mrf.mxu0
        %v4409 = vadd.f32 %v4296, %v4408
        %v4410 = vpop.f32.mrf.mxu0
        %v4411 = vadd.f32 %v4298, %v4410
        %v4412 = vpop.f32.mrf.mxu0
        %v4413 = vadd.f32 %v4300, %v4412
        %4414 = vmatprep.mubr.bf16.mxu0 %v1126
        %4415 = vmatmul.mubr.bf16.gmra.mxu0 %v1125
        %v4416 = vpop.f32.mrf.mxu0
        %v4417 = vadd.f32 %v4304, %v4416
        %v4418 = vpop.f32.mrf.mxu0
        %v4419 = vadd.f32 %v4306, %v4418
        %v4420 = vpop.f32.mrf.mxu0
        %v4421 = vadd.f32 %v4308, %v4420
        %v4422 = vpop.f32.mrf.mxu0
        %v4423 = vadd.f32 %v4310, %v4422
        %4424 = vmatprep.mubr.bf16.mxu0 %v1134
        %4425 = vmatmul.mubr.bf16.gmra.mxu0 %v1133
        %v4426 = vpop.f32.mrf.mxu0
        %v4427 = vadd.f32 %v4314, %v4426
        %v4428 = vpop.f32.mrf.mxu0
        %v4429 = vadd.f32 %v4316, %v4428
        %v4430 = vpop.f32.mrf.mxu0
        %v4431 = vadd.f32 %v4318, %v4430
        %v4432 = vpop.f32.mrf.mxu0
        %v4433 = vadd.f32 %v4320, %v4432
        %4434 = vmatprep.mubr.bf16.mxu0 %v1142
        %4435 = vmatmul.mubr.bf16.gmra.mxu0 %v1141
        %v4436 = vpop.f32.mrf.mxu0
        %v4437 = vadd.f32 %v4324, %v4436
        %v4438 = vpop.f32.mrf.mxu0
        %v4439 = vadd.f32 %v4326, %v4438
        %v4440 = vpop.f32.mrf.mxu0
        %v4441 = vadd.f32 %v4328, %v4440
        %v4442 = vpop.f32.mrf.mxu0
        %v4443 = vadd.f32 %v4330, %v4442
        %4444 = vmatprep.mubr.bf16.mxu0 %v1150
        %4445 = vmatmul.mubr.bf16.gmra.mxu0 %v1149
        %v4446 = vpop.f32.mrf.mxu0
        %v4447 = vadd.f32 %v4334, %v4446
        %v4448 = vpop.f32.mrf.mxu0
        %v4449 = vadd.f32 %v4336, %v4448
        %v4450 = vpop.f32.mrf.mxu0
        %v4451 = vadd.f32 %v4338, %v4450
        %v4452 = vpop.f32.mrf.mxu0
        %v4453 = vadd.f32 %v4340, %v4452
        %4454 = vmatprep.mubr.bf16.mxu0 %v1158
        %4455 = vmatmul.mubr.bf16.gmra.mxu0 %v1157
        %v4456 = vpop.f32.mrf.mxu0
        %v4457 = vadd.f32 %v4344, %v4456
        %v4458 = vpop.f32.mrf.mxu0
        %v4459 = vadd.f32 %v4346, %v4458
        %v4460 = vpop.f32.mrf.mxu0
        %v4461 = vadd.f32 %v4348, %v4460
        %v4462 = vpop.f32.mrf.mxu0
        %v4463 = vadd.f32 %v4350, %v4462
        %4464 = vdwg.mxu0
        %4465 = vmatprep.subr.bf16.mxu0 %v3078
        %4466 = vmatpush1.bf16.msra.mxu0 %v3077
        %4467 = vmatprep.subr.bf16.mxu0 %v3070
        %4468 = vmatpush1.bf16.msra.mxu0 %v3069
        %4469 = vmatprep.subr.bf16.mxu0 %v3062
        %4470 = vmatpush1.bf16.msra.mxu0 %v3061
        %4471 = vmatprep.subr.bf16.mxu0 %v3054
        %4472 = vmatpush1.bf16.msra.mxu0 %v3053
        %4473 = vmatprep.subr.bf16.mxu0 %v3046
        %4474 = vmatpush1.bf16.msra.mxu0 %v3045
        %4475 = vmatprep.subr.bf16.mxu0 %v3038
        %4476 = vmatpush1.bf16.msra.mxu0 %v3037
        %4477 = vmatprep.subr.bf16.mxu0 %v3030
        %4478 = vmatpush1.bf16.msra.mxu0 %v3029
        %4479 = vmatprep.subr.bf16.mxu0 %v3022
        %4480 = vmatpush1.bf16.msra.mxu0 %v3021
        %4481 = vmatprep.subr.bf16.mxu0 %v3142
        %4482 = vmatpush2.bf16.msra.mxu0 %v3141
        %4483 = vmatprep.subr.bf16.mxu0 %v3134
        %4484 = vmatpush2.bf16.msra.mxu0 %v3133
        %4485 = vmatprep.subr.bf16.mxu0 %v3126
        %4486 = vmatpush2.bf16.msra.mxu0 %v3125
        %4487 = vmatprep.subr.bf16.mxu0 %v3118
        %4488 = vmatpush2.bf16.msra.mxu0 %v3117
        %4489 = vmatprep.subr.bf16.mxu0 %v3110
        %4490 = vmatpush2.bf16.msra.mxu0 %v3109
        %4491 = vmatprep.subr.bf16.mxu0 %v3102
        %4492 = vmatpush2.bf16.msra.mxu0 %v3101
        %4493 = vmatprep.subr.bf16.mxu0 %v3094
        %4494 = vmatpush2.bf16.msra.mxu0 %v3093
        %4495 = vmatprep.subr.bf16.mxu0 %v3086
        %4496 = vmatpush2.bf16.msra.mxu0 %v3085
        %4497 = vmatprep.mubr.bf16.mxu0 %v1104
        %4498 = vmatmul.mubr.bf16.gmra.mxu0 %v1103
        %v4499 = vpop.f32.mrf.mxu0
        %v4500 = vadd.f32 %v4387, %v4499
        %v4501 = vpop.f32.mrf.mxu0
        %v4502 = vadd.f32 %v4389, %v4501
        %v4503 = vpop.f32.mrf.mxu0
        %v4504 = vadd.f32 %v4391, %v4503
        %v4505 = vpop.f32.mrf.mxu0
        %v4506 = vadd.f32 %v4393, %v4505
        %4507 = vmatprep.mubr.bf16.mxu0 %v1112
        %4508 = vmatmul.mubr.bf16.gmra.mxu0 %v1111
        %v4509 = vpop.f32.mrf.mxu0
        %v4510 = vadd.f32 %v4397, %v4509
        %v4511 = vpop.f32.mrf.mxu0
        %v4512 = vadd.f32 %v4399, %v4511
        %v4513 = vpop.f32.mrf.mxu0
        %v4514 = vadd.f32 %v4401, %v4513
        %v4515 = vpop.f32.mrf.mxu0
        %v4516 = vadd.f32 %v4403, %v4515
        %4517 = vmatprep.mubr.bf16.mxu0 %v1120
        %4518 = vmatmul.mubr.bf16.gmra.mxu0 %v1119
        %v4519 = vpop.f32.mrf.mxu0
        %v4520 = vadd.f32 %v4407, %v4519
        %v4521 = vpop.f32.mrf.mxu0
        %v4522 = vadd.f32 %v4409, %v4521
        %v4523 = vpop.f32.mrf.mxu0
        %v4524 = vadd.f32 %v4411, %v4523
        %v4525 = vpop.f32.mrf.mxu0
        %v4526 = vadd.f32 %v4413, %v4525
        %4527 = vmatprep.mubr.bf16.mxu0 %v1128
        %4528 = vmatmul.mubr.bf16.gmra.mxu0 %v1127
        %v4529 = vpop.f32.mrf.mxu0
        %v4530 = vadd.f32 %v4417, %v4529
        %v4531 = vpop.f32.mrf.mxu0
        %v4532 = vadd.f32 %v4419, %v4531
        %v4533 = vpop.f32.mrf.mxu0
        %v4534 = vadd.f32 %v4421, %v4533
        %v4535 = vpop.f32.mrf.mxu0
        %v4536 = vadd.f32 %v4423, %v4535
        %4537 = vmatprep.mubr.bf16.mxu0 %v1136
        %4538 = vmatmul.mubr.bf16.gmra.mxu0 %v1135
        %v4539 = vpop.f32.mrf.mxu0
        %v4540 = vadd.f32 %v4427, %v4539
        %v4541 = vpop.f32.mrf.mxu0
        %v4542 = vadd.f32 %v4429, %v4541
        %v4543 = vpop.f32.mrf.mxu0
        %v4544 = vadd.f32 %v4431, %v4543
        %v4545 = vpop.f32.mrf.mxu0
        %v4546 = vadd.f32 %v4433, %v4545
        %4547 = vmatprep.mubr.bf16.mxu0 %v1144
        %4548 = vmatmul.mubr.bf16.gmra.mxu0 %v1143
        %v4549 = vpop.f32.mrf.mxu0
        %v4550 = vadd.f32 %v4437, %v4549
        %v4551 = vpop.f32.mrf.mxu0
        %v4552 = vadd.f32 %v4439, %v4551
        %v4553 = vpop.f32.mrf.mxu0
        %v4554 = vadd.f32 %v4441, %v4553
        %v4555 = vpop.f32.mrf.mxu0
        %v4556 = vadd.f32 %v4443, %v4555
        %4557 = vmatprep.mubr.bf16.mxu0 %v1152
        %4558 = vmatmul.mubr.bf16.gmra.mxu0 %v1151
        %v4559 = vpop.f32.mrf.mxu0
        %v4560 = vadd.f32 %v4447, %v4559
        %v4561 = vpop.f32.mrf.mxu0
        %v4562 = vadd.f32 %v4449, %v4561
        %v4563 = vpop.f32.mrf.mxu0
        %v4564 = vadd.f32 %v4451, %v4563
        %v4565 = vpop.f32.mrf.mxu0
        %v4566 = vadd.f32 %v4453, %v4565
        %4567 = vmatprep.mubr.bf16.mxu0 %v1160
        %4568 = vmatmul.mubr.bf16.gmra.mxu0 %v1159
        %v4569 = vpop.f32.mrf.mxu0
        %v4570 = vadd.f32 %v4457, %v4569
        %v4571 = vpop.f32.mrf.mxu0
        %v4572 = vadd.f32 %v4459, %v4571
        %v4573 = vpop.f32.mrf.mxu0
        %v4574 = vadd.f32 %v4461, %v4573
        %v4575 = vpop.f32.mrf.mxu0
        %v4576 = vadd.f32 %v4463, %v4575
        %4577 = vdwg.mxu0
        %4578 = vmatprep.subr.bf16.mxu0 %v3206
        %4579 = vmatpush1.bf16.msra.mxu0 %v3205
        %4580 = vmatprep.subr.bf16.mxu0 %v3198
        %4581 = vmatpush1.bf16.msra.mxu0 %v3197
        %4582 = vmatprep.subr.bf16.mxu0 %v3190
        %4583 = vmatpush1.bf16.msra.mxu0 %v3189
        %4584 = vmatprep.subr.bf16.mxu0 %v3182
        %4585 = vmatpush1.bf16.msra.mxu0 %v3181
        %4586 = vmatprep.subr.bf16.mxu0 %v3174
        %4587 = vmatpush1.bf16.msra.mxu0 %v3173
        %4588 = vmatprep.subr.bf16.mxu0 %v3166
        %4589 = vmatpush1.bf16.msra.mxu0 %v3165
        %4590 = vmatprep.subr.bf16.mxu0 %v3158
        %4591 = vmatpush1.bf16.msra.mxu0 %v3157
        %4592 = vmatprep.subr.bf16.mxu0 %v3150
        %4593 = vmatpush1.bf16.msra.mxu0 %v3149
        %4594 = vmatprep.subr.bf16.mxu0 %v3270
        %4595 = vmatpush2.bf16.msra.mxu0 %v3269
        %4596 = vmatprep.subr.bf16.mxu0 %v3262
        %4597 = vmatpush2.bf16.msra.mxu0 %v3261
        %4598 = vmatprep.subr.bf16.mxu0 %v3254
        %4599 = vmatpush2.bf16.msra.mxu0 %v3253
        %4600 = vmatprep.subr.bf16.mxu0 %v3246
        %4601 = vmatpush2.bf16.msra.mxu0 %v3245
        %4602 = vmatprep.subr.bf16.mxu0 %v3238
        %4603 = vmatpush2.bf16.msra.mxu0 %v3237
        %4604 = vmatprep.subr.bf16.mxu0 %v3230
        %4605 = vmatpush2.bf16.msra.mxu0 %v3229
        %4606 = vmatprep.subr.bf16.mxu0 %v3222
        %4607 = vmatpush2.bf16.msra.mxu0 %v3221
        %4608 = vmatprep.subr.bf16.mxu0 %v3214
        %4609 = vmatpush2.bf16.msra.mxu0 %v3213
        %4610 = vmatprep.mubr.bf16.mxu0 %v1106
        %4611 = vmatmul.mubr.bf16.gmra.mxu0 %v1105
        %v4612 = vpop.f32.mrf.mxu0
        %v4613 = vadd.f32 %v4500, %v4612
        %v4614 = vpop.f32.mrf.mxu0
        %v4615 = vadd.f32 %v4502, %v4614
        %v4616 = vpop.f32.mrf.mxu0
        %v4617 = vadd.f32 %v4504, %v4616
        %v4618 = vpop.f32.mrf.mxu0
        %v4619 = vadd.f32 %v4506, %v4618
        %4620 = vmatprep.mubr.bf16.mxu0 %v1114
        %4621 = vmatmul.mubr.bf16.gmra.mxu0 %v1113
        %v4622 = vpop.f32.mrf.mxu0
        %v4623 = vadd.f32 %v4510, %v4622
        %v4624 = vpop.f32.mrf.mxu0
        %v4625 = vadd.f32 %v4512, %v4624
        %v4626 = vpop.f32.mrf.mxu0
        %v4627 = vadd.f32 %v4514, %v4626
        %v4628 = vpop.f32.mrf.mxu0
        %v4629 = vadd.f32 %v4516, %v4628
        %4630 = vmatprep.mubr.bf16.mxu0 %v1122
        %4631 = vmatmul.mubr.bf16.gmra.mxu0 %v1121
        %v4632 = vpop.f32.mrf.mxu0
        %v4633 = vadd.f32 %v4520, %v4632
        %v4634 = vpop.f32.mrf.mxu0
        %v4635 = vadd.f32 %v4522, %v4634
        %v4636 = vpop.f32.mrf.mxu0
        %v4637 = vadd.f32 %v4524, %v4636
        %v4638 = vpop.f32.mrf.mxu0
        %v4639 = vadd.f32 %v4526, %v4638
        %4640 = vmatprep.mubr.bf16.mxu0 %v1130
        %4641 = vmatmul.mubr.bf16.gmra.mxu0 %v1129
        %v4642 = vpop.f32.mrf.mxu0
        %v4643 = vadd.f32 %v4530, %v4642
        %v4644 = vpop.f32.mrf.mxu0
        %v4645 = vadd.f32 %v4532, %v4644
        %v4646 = vpop.f32.mrf.mxu0
        %v4647 = vadd.f32 %v4534, %v4646
        %v4648 = vpop.f32.mrf.mxu0
        %v4649 = vadd.f32 %v4536, %v4648
        %4650 = vmatprep.mubr.bf16.mxu0 %v1138
        %4651 = vmatmul.mubr.bf16.gmra.mxu0 %v1137
        %v4652 = vpop.f32.mrf.mxu0
        %v4653 = vadd.f32 %v4540, %v4652
        %v4654 = vpop.f32.mrf.mxu0
        %v4655 = vadd.f32 %v4542, %v4654
        %v4656 = vpop.f32.mrf.mxu0
        %v4657 = vadd.f32 %v4544, %v4656
        %v4658 = vpop.f32.mrf.mxu0
        %v4659 = vadd.f32 %v4546, %v4658
        %4660 = vmatprep.mubr.bf16.mxu0 %v1146
        %4661 = vmatmul.mubr.bf16.gmra.mxu0 %v1145
        %v4662 = vpop.f32.mrf.mxu0
        %v4663 = vadd.f32 %v4550, %v4662
        %v4664 = vpop.f32.mrf.mxu0
        %v4665 = vadd.f32 %v4552, %v4664
        %v4666 = vpop.f32.mrf.mxu0
        %v4667 = vadd.f32 %v4554, %v4666
        %v4668 = vpop.f32.mrf.mxu0
        %v4669 = vadd.f32 %v4556, %v4668
        %4670 = vmatprep.mubr.bf16.mxu0 %v1154
        %4671 = vmatmul.mubr.bf16.gmra.mxu0 %v1153
        %v4672 = vpop.f32.mrf.mxu0
        %v4673 = vadd.f32 %v4560, %v4672
        %v4674 = vpop.f32.mrf.mxu0
        %v4675 = vadd.f32 %v4562, %v4674
        %v4676 = vpop.f32.mrf.mxu0
        %v4677 = vadd.f32 %v4564, %v4676
        %v4678 = vpop.f32.mrf.mxu0
        %v4679 = vadd.f32 %v4566, %v4678
        %4680 = vmatprep.mubr.bf16.mxu0 %v1162
        %4681 = vmatmul.mubr.bf16.gmra.mxu0 %v1161
        %v4682 = vpop.f32.mrf.mxu0
        %v4683 = vadd.f32 %v4570, %v4682
        %v4684 = vpop.f32.mrf.mxu0
        %v4685 = vadd.f32 %v4572, %v4684
        %v4686 = vpop.f32.mrf.mxu0
        %v4687 = vadd.f32 %v4574, %v4686
        %v4688 = vpop.f32.mrf.mxu0
        %v4689 = vadd.f32 %v4576, %v4688
        %4690 = vdwg.mxu0
        %4691 = vmatprep.subr.bf16.mxu0 %v2824
        %4692 = vmatpush1.bf16.msra.mxu0 %v2823
        %4693 = vmatprep.subr.bf16.mxu0 %v2816
        %4694 = vmatpush1.bf16.msra.mxu0 %v2815
        %4695 = vmatprep.subr.bf16.mxu0 %v2808
        %4696 = vmatpush1.bf16.msra.mxu0 %v2807
        %4697 = vmatprep.subr.bf16.mxu0 %v2800
        %4698 = vmatpush1.bf16.msra.mxu0 %v2799
        %4699 = vmatprep.subr.bf16.mxu0 %v2792
        %4700 = vmatpush1.bf16.msra.mxu0 %v2791
        %4701 = vmatprep.subr.bf16.mxu0 %v2784
        %4702 = vmatpush1.bf16.msra.mxu0 %v2783
        %4703 = vmatprep.subr.bf16.mxu0 %v2776
        %4704 = vmatpush1.bf16.msra.mxu0 %v2775
        %4705 = vmatprep.subr.bf16.mxu0 %v2768
        %4706 = vmatpush1.bf16.msra.mxu0 %v2767
        %4707 = vmatprep.subr.bf16.mxu0 %v2888
        %4708 = vmatpush2.bf16.msra.mxu0 %v2887
        %4709 = vmatprep.subr.bf16.mxu0 %v2880
        %4710 = vmatpush2.bf16.msra.mxu0 %v2879
        %4711 = vmatprep.subr.bf16.mxu0 %v2872
        %4712 = vmatpush2.bf16.msra.mxu0 %v2871
        %4713 = vmatprep.subr.bf16.mxu0 %v2864
        %4714 = vmatpush2.bf16.msra.mxu0 %v2863
        %4715 = vmatprep.subr.bf16.mxu0 %v2856
        %4716 = vmatpush2.bf16.msra.mxu0 %v2855
        %4717 = vmatprep.subr.bf16.mxu0 %v2848
        %4718 = vmatpush2.bf16.msra.mxu0 %v2847
        %4719 = vmatprep.subr.bf16.mxu0 %v2840
        %4720 = vmatpush2.bf16.msra.mxu0 %v2839
        %4721 = vmatprep.subr.bf16.mxu0 %v2832
        %4722 = vmatpush2.bf16.msra.mxu0 %v2831
        %4723 = vmatprep.mubr.bf16.mxu0 %v1100
        %4724 = vmatmul.mubr.bf16.gmra.mxu0 %v1099
        %v4725 = vpop.f32.mrf.mxu0
        %v4726 = vadd.f32 %v886, %v4725
        %v4727 = vpop.f32.mrf.mxu0
        %v4728 = vadd.f32 %v890, %v4727
        %v4729 = vpop.f32.mrf.mxu0
        %v4730 = vadd.f32 %v886, %v4729
        %v4731 = vpop.f32.mrf.mxu0
        %v4732 = vadd.f32 %v890, %v4731
        %4733 = vmatprep.mubr.bf16.mxu0 %v1108
        %4734 = vmatmul.mubr.bf16.gmra.mxu0 %v1107
        %v4735 = vpop.f32.mrf.mxu0
        %v4736 = vadd.f32 %v886, %v4735
        %v4737 = vpop.f32.mrf.mxu0
        %v4738 = vadd.f32 %v890, %v4737
        %v4739 = vpop.f32.mrf.mxu0
        %v4740 = vadd.f32 %v886, %v4739
        %v4741 = vpop.f32.mrf.mxu0
        %v4742 = vadd.f32 %v890, %v4741
        %4743 = vmatprep.mubr.bf16.mxu0 %v1116
        %4744 = vmatmul.mubr.bf16.gmra.mxu0 %v1115
        %v4745 = vpop.f32.mrf.mxu0
        %v4746 = vadd.f32 %v886, %v4745
        %v4747 = vpop.f32.mrf.mxu0
        %v4748 = vadd.f32 %v890, %v4747
        %v4749 = vpop.f32.mrf.mxu0
        %v4750 = vadd.f32 %v886, %v4749
        %v4751 = vpop.f32.mrf.mxu0
        %v4752 = vadd.f32 %v890, %v4751
        %4753 = vmatprep.mubr.bf16.mxu0 %v1124
        %4754 = vmatmul.mubr.bf16.gmra.mxu0 %v1123
        %v4755 = vpop.f32.mrf.mxu0
        %v4756 = vadd.f32 %v886, %v4755
        %v4757 = vpop.f32.mrf.mxu0
        %v4758 = vadd.f32 %v890, %v4757
        %v4759 = vpop.f32.mrf.mxu0
        %v4760 = vadd.f32 %v886, %v4759
        %v4761 = vpop.f32.mrf.mxu0
        %v4762 = vadd.f32 %v890, %v4761
        %4763 = vmatprep.mubr.bf16.mxu0 %v1132
        %4764 = vmatmul.mubr.bf16.gmra.mxu0 %v1131
        %v4765 = vpop.f32.mrf.mxu0
        %v4766 = vadd.f32 %v886, %v4765
        %v4767 = vpop.f32.mrf.mxu0
        %v4768 = vadd.f32 %v890, %v4767
        %v4769 = vpop.f32.mrf.mxu0
        %v4770 = vadd.f32 %v886, %v4769
        %v4771 = vpop.f32.mrf.mxu0
        %v4772 = vadd.f32 %v890, %v4771
        %4773 = vmatprep.mubr.bf16.mxu0 %v1140
        %4774 = vmatmul.mubr.bf16.gmra.mxu0 %v1139
        %v4775 = vpop.f32.mrf.mxu0
        %v4776 = vadd.f32 %v886, %v4775
        %v4777 = vpop.f32.mrf.mxu0
        %v4778 = vadd.f32 %v890, %v4777
        %v4779 = vpop.f32.mrf.mxu0
        %v4780 = vadd.f32 %v886, %v4779
        %v4781 = vpop.f32.mrf.mxu0
        %v4782 = vadd.f32 %v890, %v4781
        %4783 = vmatprep.mubr.bf16.mxu0 %v1148
        %4784 = vmatmul.mubr.bf16.gmra.mxu0 %v1147
        %v4785 = vpop.f32.mrf.mxu0
        %v4786 = vadd.f32 %v886, %v4785
        %v4787 = vpop.f32.mrf.mxu0
        %v4788 = vadd.f32 %v890, %v4787
        %v4789 = vpop.f32.mrf.mxu0
        %v4790 = vadd.f32 %v886, %v4789
        %v4791 = vpop.f32.mrf.mxu0
        %v4792 = vadd.f32 %v890, %v4791
        %4793 = vmatprep.mubr.bf16.mxu0 %v1156
        %4794 = vmatmul.mubr.bf16.gmra.mxu0 %v1155
        %v4795 = vpop.f32.mrf.mxu0
        %v4796 = vadd.f32 %v886, %v4795
        %v4797 = vpop.f32.mrf.mxu0
        %v4798 = vadd.f32 %v890, %v4797
        %v4799 = vpop.f32.mrf.mxu0
        %v4800 = vadd.f32 %v886, %v4799
        %v4801 = vpop.f32.mrf.mxu0
        %v4802 = vadd.f32 %v890, %v4801
        %4803 = vdwg.mxu0
        %4804 = vmatprep.subr.bf16.mxu0 %v2952
        %4805 = vmatpush1.bf16.msra.mxu0 %v2951
        %4806 = vmatprep.subr.bf16.mxu0 %v2944
        %4807 = vmatpush1.bf16.msra.mxu0 %v2943
        %4808 = vmatprep.subr.bf16.mxu0 %v2936
        %4809 = vmatpush1.bf16.msra.mxu0 %v2935
        %4810 = vmatprep.subr.bf16.mxu0 %v2928
        %4811 = vmatpush1.bf16.msra.mxu0 %v2927
        %4812 = vmatprep.subr.bf16.mxu0 %v2920
        %4813 = vmatpush1.bf16.msra.mxu0 %v2919
        %4814 = vmatprep.subr.bf16.mxu0 %v2912
        %4815 = vmatpush1.bf16.msra.mxu0 %v2911
        %4816 = vmatprep.subr.bf16.mxu0 %v2904
        %4817 = vmatpush1.bf16.msra.mxu0 %v2903
        %4818 = vmatprep.subr.bf16.mxu0 %v2896
        %4819 = vmatpush1.bf16.msra.mxu0 %v2895
        %4820 = vmatprep.subr.bf16.mxu0 %v3016
        %4821 = vmatpush2.bf16.msra.mxu0 %v3015
        %4822 = vmatprep.subr.bf16.mxu0 %v3008
        %4823 = vmatpush2.bf16.msra.mxu0 %v3007
        %4824 = vmatprep.subr.bf16.mxu0 %v3000
        %4825 = vmatpush2.bf16.msra.mxu0 %v2999
        %4826 = vmatprep.subr.bf16.mxu0 %v2992
        %4827 = vmatpush2.bf16.msra.mxu0 %v2991
        %4828 = vmatprep.subr.bf16.mxu0 %v2984
        %4829 = vmatpush2.bf16.msra.mxu0 %v2983
        %4830 = vmatprep.subr.bf16.mxu0 %v2976
        %4831 = vmatpush2.bf16.msra.mxu0 %v2975
        %4832 = vmatprep.subr.bf16.mxu0 %v2968
        %4833 = vmatpush2.bf16.msra.mxu0 %v2967
        %4834 = vmatprep.subr.bf16.mxu0 %v2960
        %4835 = vmatpush2.bf16.msra.mxu0 %v2959
        %4836 = vmatprep.mubr.bf16.mxu0 %v1102
        %4837 = vmatmul.mubr.bf16.gmra.mxu0 %v1101
        %v4838 = vpop.f32.mrf.mxu0
        %v4839 = vadd.f32 %v4726, %v4838
        %v4840 = vpop.f32.mrf.mxu0
        %v4841 = vadd.f32 %v4728, %v4840
        %v4842 = vpop.f32.mrf.mxu0
        %v4843 = vadd.f32 %v4730, %v4842
        %v4844 = vpop.f32.mrf.mxu0
        %v4845 = vadd.f32 %v4732, %v4844
        %4846 = vmatprep.mubr.bf16.mxu0 %v1110
        %4847 = vmatmul.mubr.bf16.gmra.mxu0 %v1109
        %v4848 = vpop.f32.mrf.mxu0
        %v4849 = vadd.f32 %v4736, %v4848
        %v4850 = vpop.f32.mrf.mxu0
        %v4851 = vadd.f32 %v4738, %v4850
        %v4852 = vpop.f32.mrf.mxu0
        %v4853 = vadd.f32 %v4740, %v4852
        %v4854 = vpop.f32.mrf.mxu0
        %v4855 = vadd.f32 %v4742, %v4854
        %4856 = vmatprep.mubr.bf16.mxu0 %v1118
        %4857 = vmatmul.mubr.bf16.gmra.mxu0 %v1117
        %v4858 = vpop.f32.mrf.mxu0
        %v4859 = vadd.f32 %v4746, %v4858
        %v4860 = vpop.f32.mrf.mxu0
        %v4861 = vadd.f32 %v4748, %v4860
        %v4862 = vpop.f32.mrf.mxu0
        %v4863 = vadd.f32 %v4750, %v4862
        %v4864 = vpop.f32.mrf.mxu0
        %v4865 = vadd.f32 %v4752, %v4864
        %4866 = vmatprep.mubr.bf16.mxu0 %v1126
        %4867 = vmatmul.mubr.bf16.gmra.mxu0 %v1125
        %v4868 = vpop.f32.mrf.mxu0
        %v4869 = vadd.f32 %v4756, %v4868
        %v4870 = vpop.f32.mrf.mxu0
        %v4871 = vadd.f32 %v4758, %v4870
        %v4872 = vpop.f32.mrf.mxu0
        %v4873 = vadd.f32 %v4760, %v4872
        %v4874 = vpop.f32.mrf.mxu0
        %v4875 = vadd.f32 %v4762, %v4874
        %4876 = vmatprep.mubr.bf16.mxu0 %v1134
        %4877 = vmatmul.mubr.bf16.gmra.mxu0 %v1133
        %v4878 = vpop.f32.mrf.mxu0
        %v4879 = vadd.f32 %v4766, %v4878
        %v4880 = vpop.f32.mrf.mxu0
        %v4881 = vadd.f32 %v4768, %v4880
        %v4882 = vpop.f32.mrf.mxu0
        %v4883 = vadd.f32 %v4770, %v4882
        %v4884 = vpop.f32.mrf.mxu0
        %v4885 = vadd.f32 %v4772, %v4884
        %4886 = vmatprep.mubr.bf16.mxu0 %v1142
        %4887 = vmatmul.mubr.bf16.gmra.mxu0 %v1141
        %v4888 = vpop.f32.mrf.mxu0
        %v4889 = vadd.f32 %v4776, %v4888
        %v4890 = vpop.f32.mrf.mxu0
        %v4891 = vadd.f32 %v4778, %v4890
        %v4892 = vpop.f32.mrf.mxu0
        %v4893 = vadd.f32 %v4780, %v4892
        %v4894 = vpop.f32.mrf.mxu0
        %v4895 = vadd.f32 %v4782, %v4894
        %4896 = vmatprep.mubr.bf16.mxu0 %v1150
        %4897 = vmatmul.mubr.bf16.gmra.mxu0 %v1149
        %v4898 = vpop.f32.mrf.mxu0
        %v4899 = vadd.f32 %v4786, %v4898
        %v4900 = vpop.f32.mrf.mxu0
        %v4901 = vadd.f32 %v4788, %v4900
        %v4902 = vpop.f32.mrf.mxu0
        %v4903 = vadd.f32 %v4790, %v4902
        %v4904 = vpop.f32.mrf.mxu0
        %v4905 = vadd.f32 %v4792, %v4904
        %4906 = vmatprep.mubr.bf16.mxu0 %v1158
        %4907 = vmatmul.mubr.bf16.gmra.mxu0 %v1157
        %v4908 = vpop.f32.mrf.mxu0
        %v4909 = vadd.f32 %v4796, %v4908
        %v4910 = vpop.f32.mrf.mxu0
        %v4911 = vadd.f32 %v4798, %v4910
        %v4912 = vpop.f32.mrf.mxu0
        %v4913 = vadd.f32 %v4800, %v4912
        %v4914 = vpop.f32.mrf.mxu0
        %v4915 = vadd.f32 %v4802, %v4914
        %4916 = vdwg.mxu0
        %4917 = vmatprep.subr.bf16.mxu0 %v3080
        %4918 = vmatpush1.bf16.msra.mxu0 %v3079
        %4919 = vmatprep.subr.bf16.mxu0 %v3072
        %4920 = vmatpush1.bf16.msra.mxu0 %v3071
        %4921 = vmatprep.subr.bf16.mxu0 %v3064
        %4922 = vmatpush1.bf16.msra.mxu0 %v3063
        %4923 = vmatprep.subr.bf16.mxu0 %v3056
        %4924 = vmatpush1.bf16.msra.mxu0 %v3055
        %4925 = vmatprep.subr.bf16.mxu0 %v3048
        %4926 = vmatpush1.bf16.msra.mxu0 %v3047
        %4927 = vmatprep.subr.bf16.mxu0 %v3040
        %4928 = vmatpush1.bf16.msra.mxu0 %v3039
        %4929 = vmatprep.subr.bf16.mxu0 %v3032
        %4930 = vmatpush1.bf16.msra.mxu0 %v3031
        %4931 = vmatprep.subr.bf16.mxu0 %v3024
        %4932 = vmatpush1.bf16.msra.mxu0 %v3023
        %4933 = vmatprep.subr.bf16.mxu0 %v3144
        %4934 = vmatpush2.bf16.msra.mxu0 %v3143
        %4935 = vmatprep.subr.bf16.mxu0 %v3136
        %4936 = vmatpush2.bf16.msra.mxu0 %v3135
        %4937 = vmatprep.subr.bf16.mxu0 %v3128
        %4938 = vmatpush2.bf16.msra.mxu0 %v3127
        %4939 = vmatprep.subr.bf16.mxu0 %v3120
        %4940 = vmatpush2.bf16.msra.mxu0 %v3119
        %4941 = vmatprep.subr.bf16.mxu0 %v3112
        %4942 = vmatpush2.bf16.msra.mxu0 %v3111
        %4943 = vmatprep.subr.bf16.mxu0 %v3104
        %4944 = vmatpush2.bf16.msra.mxu0 %v3103
        %4945 = vmatprep.subr.bf16.mxu0 %v3096
        %4946 = vmatpush2.bf16.msra.mxu0 %v3095
        %4947 = vmatprep.subr.bf16.mxu0 %v3088
        %4948 = vmatpush2.bf16.msra.mxu0 %v3087
        %4949 = vmatprep.mubr.bf16.mxu0 %v1104
        %4950 = vmatmul.mubr.bf16.gmra.mxu0 %v1103
        %v4951 = vpop.f32.mrf.mxu0
        %v4952 = vadd.f32 %v4839, %v4951
        %v4953 = vpop.f32.mrf.mxu0
        %v4954 = vadd.f32 %v4841, %v4953
        %v4955 = vpop.f32.mrf.mxu0
        %v4956 = vadd.f32 %v4843, %v4955
        %v4957 = vpop.f32.mrf.mxu0
        %v4958 = vadd.f32 %v4845, %v4957
        %4959 = vmatprep.mubr.bf16.mxu0 %v1112
        %4960 = vmatmul.mubr.bf16.gmra.mxu0 %v1111
        %v4961 = vpop.f32.mrf.mxu0
        %v4962 = vadd.f32 %v4849, %v4961
        %v4963 = vpop.f32.mrf.mxu0
        %v4964 = vadd.f32 %v4851, %v4963
        %v4965 = vpop.f32.mrf.mxu0
        %v4966 = vadd.f32 %v4853, %v4965
        %v4967 = vpop.f32.mrf.mxu0
        %v4968 = vadd.f32 %v4855, %v4967
        %4969 = vmatprep.mubr.bf16.mxu0 %v1120
        %4970 = vmatmul.mubr.bf16.gmra.mxu0 %v1119
        %v4971 = vpop.f32.mrf.mxu0
        %v4972 = vadd.f32 %v4859, %v4971
        %v4973 = vpop.f32.mrf.mxu0
        %v4974 = vadd.f32 %v4861, %v4973
        %v4975 = vpop.f32.mrf.mxu0
        %v4976 = vadd.f32 %v4863, %v4975
        %v4977 = vpop.f32.mrf.mxu0
        %v4978 = vadd.f32 %v4865, %v4977
        %4979 = vmatprep.mubr.bf16.mxu0 %v1128
        %4980 = vmatmul.mubr.bf16.gmra.mxu0 %v1127
        %v4981 = vpop.f32.mrf.mxu0
        %v4982 = vadd.f32 %v4869, %v4981
        %v4983 = vpop.f32.mrf.mxu0
        %v4984 = vadd.f32 %v4871, %v4983
        %v4985 = vpop.f32.mrf.mxu0
        %v4986 = vadd.f32 %v4873, %v4985
        %v4987 = vpop.f32.mrf.mxu0
        %v4988 = vadd.f32 %v4875, %v4987
        %4989 = vmatprep.mubr.bf16.mxu0 %v1136
        %4990 = vmatmul.mubr.bf16.gmra.mxu0 %v1135
        %v4991 = vpop.f32.mrf.mxu0
        %v4992 = vadd.f32 %v4879, %v4991
        %v4993 = vpop.f32.mrf.mxu0
        %v4994 = vadd.f32 %v4881, %v4993
        %v4995 = vpop.f32.mrf.mxu0
        %v4996 = vadd.f32 %v4883, %v4995
        %v4997 = vpop.f32.mrf.mxu0
        %v4998 = vadd.f32 %v4885, %v4997
        %4999 = vmatprep.mubr.bf16.mxu0 %v1144
        %5000 = vmatmul.mubr.bf16.gmra.mxu0 %v1143
        %v5001 = vpop.f32.mrf.mxu0
        %v5002 = vadd.f32 %v4889, %v5001
        %v5003 = vpop.f32.mrf.mxu0
        %v5004 = vadd.f32 %v4891, %v5003
        %v5005 = vpop.f32.mrf.mxu0
        %v5006 = vadd.f32 %v4893, %v5005
        %v5007 = vpop.f32.mrf.mxu0
        %v5008 = vadd.f32 %v4895, %v5007
        %5009 = vmatprep.mubr.bf16.mxu0 %v1152
        %5010 = vmatmul.mubr.bf16.gmra.mxu0 %v1151
        %v5011 = vpop.f32.mrf.mxu0
        %v5012 = vadd.f32 %v4899, %v5011
        %v5013 = vpop.f32.mrf.mxu0
        %v5014 = vadd.f32 %v4901, %v5013
        %v5015 = vpop.f32.mrf.mxu0
        %v5016 = vadd.f32 %v4903, %v5015
        %v5017 = vpop.f32.mrf.mxu0
        %v5018 = vadd.f32 %v4905, %v5017
        %5019 = vmatprep.mubr.bf16.mxu0 %v1160
        %5020 = vmatmul.mubr.bf16.gmra.mxu0 %v1159
        %v5021 = vpop.f32.mrf.mxu0
        %v5022 = vadd.f32 %v4909, %v5021
        %v5023 = vpop.f32.mrf.mxu0
        %v5024 = vadd.f32 %v4911, %v5023
        %v5025 = vpop.f32.mrf.mxu0
        %v5026 = vadd.f32 %v4913, %v5025
        %v5027 = vpop.f32.mrf.mxu0
        %v5028 = vadd.f32 %v4915, %v5027
        %5029 = vdwg.mxu0
        %5030 = vmatprep.subr.bf16.mxu0 %v3208
        %5031 = vmatpush1.bf16.msra.mxu0 %v3207
        %5032 = vmatprep.subr.bf16.mxu0 %v3200
        %5033 = vmatpush1.bf16.msra.mxu0 %v3199
        %5034 = vmatprep.subr.bf16.mxu0 %v3192
        %5035 = vmatpush1.bf16.msra.mxu0 %v3191
        %5036 = vmatprep.subr.bf16.mxu0 %v3184
        %5037 = vmatpush1.bf16.msra.mxu0 %v3183
        %5038 = vmatprep.subr.bf16.mxu0 %v3176
        %5039 = vmatpush1.bf16.msra.mxu0 %v3175
        %5040 = vmatprep.subr.bf16.mxu0 %v3168
        %5041 = vmatpush1.bf16.msra.mxu0 %v3167
        %5042 = vmatprep.subr.bf16.mxu0 %v3160
        %5043 = vmatpush1.bf16.msra.mxu0 %v3159
        %5044 = vmatprep.subr.bf16.mxu0 %v3152
        %5045 = vmatpush1.bf16.msra.mxu0 %v3151
        %5046 = vmatprep.subr.bf16.mxu0 %v3272
        %5047 = vmatpush2.bf16.msra.mxu0 %v3271
        %5048 = vmatprep.subr.bf16.mxu0 %v3264
        %5049 = vmatpush2.bf16.msra.mxu0 %v3263
        %5050 = vmatprep.subr.bf16.mxu0 %v3256
        %5051 = vmatpush2.bf16.msra.mxu0 %v3255
        %5052 = vmatprep.subr.bf16.mxu0 %v3248
        %5053 = vmatpush2.bf16.msra.mxu0 %v3247
        %5054 = vmatprep.subr.bf16.mxu0 %v3240
        %5055 = vmatpush2.bf16.msra.mxu0 %v3239
        %5056 = vmatprep.subr.bf16.mxu0 %v3232
        %5057 = vmatpush2.bf16.msra.mxu0 %v3231
        %5058 = vmatprep.subr.bf16.mxu0 %v3224
        %5059 = vmatpush2.bf16.msra.mxu0 %v3223
        %5060 = vmatprep.subr.bf16.mxu0 %v3216
        %5061 = vmatpush2.bf16.msra.mxu0 %v3215
        %5062 = vmatprep.mubr.bf16.mxu0 %v1106
        %5063 = vmatmul.mubr.bf16.gmra.mxu0 %v1105
        %v5064 = vpop.f32.mrf.mxu0
        %v5065 = vadd.f32 %v4952, %v5064
        %v5066 = vpop.f32.mrf.mxu0
        %v5067 = vadd.f32 %v4954, %v5066
        %v5068 = vpop.f32.mrf.mxu0
        %v5069 = vadd.f32 %v4956, %v5068
        %v5070 = vpop.f32.mrf.mxu0
        %v5071 = vadd.f32 %v4958, %v5070
        %5072 = vmatprep.mubr.bf16.mxu0 %v1114
        %5073 = vmatmul.mubr.bf16.gmra.mxu0 %v1113
        %v5074 = vpop.f32.mrf.mxu0
        %v5075 = vadd.f32 %v4962, %v5074
        %v5076 = vpop.f32.mrf.mxu0
        %v5077 = vadd.f32 %v4964, %v5076
        %v5078 = vpop.f32.mrf.mxu0
        %v5079 = vadd.f32 %v4966, %v5078
        %v5080 = vpop.f32.mrf.mxu0
        %v5081 = vadd.f32 %v4968, %v5080
        %5082 = vmatprep.mubr.bf16.mxu0 %v1122
        %5083 = vmatmul.mubr.bf16.gmra.mxu0 %v1121
        %v5084 = vpop.f32.mrf.mxu0
        %v5085 = vadd.f32 %v4972, %v5084
        %v5086 = vpop.f32.mrf.mxu0
        %v5087 = vadd.f32 %v4974, %v5086
        %v5088 = vpop.f32.mrf.mxu0
        %v5089 = vadd.f32 %v4976, %v5088
        %v5090 = vpop.f32.mrf.mxu0
        %v5091 = vadd.f32 %v4978, %v5090
        %5092 = vmatprep.mubr.bf16.mxu0 %v1130
        %5093 = vmatmul.mubr.bf16.gmra.mxu0 %v1129
        %v5094 = vpop.f32.mrf.mxu0
        %v5095 = vadd.f32 %v4982, %v5094
        %v5096 = vpop.f32.mrf.mxu0
        %v5097 = vadd.f32 %v4984, %v5096
        %v5098 = vpop.f32.mrf.mxu0
        %v5099 = vadd.f32 %v4986, %v5098
        %v5100 = vpop.f32.mrf.mxu0
        %v5101 = vadd.f32 %v4988, %v5100
        %5102 = vmatprep.mubr.bf16.mxu0 %v1138
        %5103 = vmatmul.mubr.bf16.gmra.mxu0 %v1137
        %v5104 = vpop.f32.mrf.mxu0
        %v5105 = vadd.f32 %v4992, %v5104
        %v5106 = vpop.f32.mrf.mxu0
        %v5107 = vadd.f32 %v4994, %v5106
        %v5108 = vpop.f32.mrf.mxu0
        %v5109 = vadd.f32 %v4996, %v5108
        %v5110 = vpop.f32.mrf.mxu0
        %v5111 = vadd.f32 %v4998, %v5110
        %5112 = vmatprep.mubr.bf16.mxu0 %v1146
        %5113 = vmatmul.mubr.bf16.gmra.mxu0 %v1145
        %v5114 = vpop.f32.mrf.mxu0
        %v5115 = vadd.f32 %v5002, %v5114
        %v5116 = vpop.f32.mrf.mxu0
        %v5117 = vadd.f32 %v5004, %v5116
        %v5118 = vpop.f32.mrf.mxu0
        %v5119 = vadd.f32 %v5006, %v5118
        %v5120 = vpop.f32.mrf.mxu0
        %v5121 = vadd.f32 %v5008, %v5120
        %5122 = vmatprep.mubr.bf16.mxu0 %v1154
        %5123 = vmatmul.mubr.bf16.gmra.mxu0 %v1153
        %v5124 = vpop.f32.mrf.mxu0
        %v5125 = vadd.f32 %v5012, %v5124
        %v5126 = vpop.f32.mrf.mxu0
        %v5127 = vadd.f32 %v5014, %v5126
        %v5128 = vpop.f32.mrf.mxu0
        %v5129 = vadd.f32 %v5016, %v5128
        %v5130 = vpop.f32.mrf.mxu0
        %v5131 = vadd.f32 %v5018, %v5130
        %5132 = vmatprep.mubr.bf16.mxu0 %v1162
        %5133 = vmatmul.mubr.bf16.gmra.mxu0 %v1161
        %v5134 = vpop.f32.mrf.mxu0
        %v5135 = vadd.f32 %v5022, %v5134
        %v5136 = vpop.f32.mrf.mxu0
        %v5137 = vadd.f32 %v5024, %v5136
        %v5138 = vpop.f32.mrf.mxu0
        %v5139 = vadd.f32 %v5026, %v5138
        %v5140 = vpop.f32.mrf.mxu0
        %v5141 = vadd.f32 %v5028, %v5140
        %5142 = vdwg.mxu0
        %5143 = vmatprep.subr.bf16.mxu0 %v2826
        %5144 = vmatpush1.bf16.msra.mxu0 %v2825
        %5145 = vmatprep.subr.bf16.mxu0 %v2818
        %5146 = vmatpush1.bf16.msra.mxu0 %v2817
        %5147 = vmatprep.subr.bf16.mxu0 %v2810
        %5148 = vmatpush1.bf16.msra.mxu0 %v2809
        %5149 = vmatprep.subr.bf16.mxu0 %v2802
        %5150 = vmatpush1.bf16.msra.mxu0 %v2801
        %5151 = vmatprep.subr.bf16.mxu0 %v2794
        %5152 = vmatpush1.bf16.msra.mxu0 %v2793
        %5153 = vmatprep.subr.bf16.mxu0 %v2786
        %5154 = vmatpush1.bf16.msra.mxu0 %v2785
        %5155 = vmatprep.subr.bf16.mxu0 %v2778
        %5156 = vmatpush1.bf16.msra.mxu0 %v2777
        %5157 = vmatprep.subr.bf16.mxu0 %v2770
        %5158 = vmatpush1.bf16.msra.mxu0 %v2769
        %5159 = vmatprep.subr.bf16.mxu0 %v2890
        %5160 = vmatpush2.bf16.msra.mxu0 %v2889
        %5161 = vmatprep.subr.bf16.mxu0 %v2882
        %5162 = vmatpush2.bf16.msra.mxu0 %v2881
        %5163 = vmatprep.subr.bf16.mxu0 %v2874
        %5164 = vmatpush2.bf16.msra.mxu0 %v2873
        %5165 = vmatprep.subr.bf16.mxu0 %v2866
        %5166 = vmatpush2.bf16.msra.mxu0 %v2865
        %5167 = vmatprep.subr.bf16.mxu0 %v2858
        %5168 = vmatpush2.bf16.msra.mxu0 %v2857
        %5169 = vmatprep.subr.bf16.mxu0 %v2850
        %5170 = vmatpush2.bf16.msra.mxu0 %v2849
        %5171 = vmatprep.subr.bf16.mxu0 %v2842
        %5172 = vmatpush2.bf16.msra.mxu0 %v2841
        %5173 = vmatprep.subr.bf16.mxu0 %v2834
        %5174 = vmatpush2.bf16.msra.mxu0 %v2833
        %5175 = vmatprep.mubr.bf16.mxu0 %v1100
        %5176 = vmatmul.mubr.bf16.gmra.mxu0 %v1099
        %v5177 = vpop.f32.mrf.mxu0
        %v5178 = vadd.f32 %v894, %v5177
        %v5179 = vpop.f32.mrf.mxu0
        %v5180 = vadd.f32 %v898, %v5179
        %v5181 = vpop.f32.mrf.mxu0
        %v5182 = vadd.f32 %v894, %v5181
        %v5183 = vpop.f32.mrf.mxu0
        %v5184 = vadd.f32 %v898, %v5183
        %5185 = vmatprep.mubr.bf16.mxu0 %v1108
        %5186 = vmatmul.mubr.bf16.gmra.mxu0 %v1107
        %v5187 = vpop.f32.mrf.mxu0
        %v5188 = vadd.f32 %v894, %v5187
        %v5189 = vpop.f32.mrf.mxu0
        %v5190 = vadd.f32 %v898, %v5189
        %v5191 = vpop.f32.mrf.mxu0
        %v5192 = vadd.f32 %v894, %v5191
        %v5193 = vpop.f32.mrf.mxu0
        %v5194 = vadd.f32 %v898, %v5193
        %5195 = vmatprep.mubr.bf16.mxu0 %v1116
        %5196 = vmatmul.mubr.bf16.gmra.mxu0 %v1115
        %v5197 = vpop.f32.mrf.mxu0
        %v5198 = vadd.f32 %v894, %v5197
        %v5199 = vpop.f32.mrf.mxu0
        %v5200 = vadd.f32 %v898, %v5199
        %v5201 = vpop.f32.mrf.mxu0
        %v5202 = vadd.f32 %v894, %v5201
        %v5203 = vpop.f32.mrf.mxu0
        %v5204 = vadd.f32 %v898, %v5203
        %5205 = vmatprep.mubr.bf16.mxu0 %v1124
        %5206 = vmatmul.mubr.bf16.gmra.mxu0 %v1123
        %v5207 = vpop.f32.mrf.mxu0
        %v5208 = vadd.f32 %v894, %v5207
        %v5209 = vpop.f32.mrf.mxu0
        %v5210 = vadd.f32 %v898, %v5209
        %v5211 = vpop.f32.mrf.mxu0
        %v5212 = vadd.f32 %v894, %v5211
        %v5213 = vpop.f32.mrf.mxu0
        %v5214 = vadd.f32 %v898, %v5213
        %5215 = vmatprep.mubr.bf16.mxu0 %v1132
        %5216 = vmatmul.mubr.bf16.gmra.mxu0 %v1131
        %v5217 = vpop.f32.mrf.mxu0
        %v5218 = vadd.f32 %v894, %v5217
        %v5219 = vpop.f32.mrf.mxu0
        %v5220 = vadd.f32 %v898, %v5219
        %v5221 = vpop.f32.mrf.mxu0
        %v5222 = vadd.f32 %v894, %v5221
        %v5223 = vpop.f32.mrf.mxu0
        %v5224 = vadd.f32 %v898, %v5223
        %5225 = vmatprep.mubr.bf16.mxu0 %v1140
        %5226 = vmatmul.mubr.bf16.gmra.mxu0 %v1139
        %v5227 = vpop.f32.mrf.mxu0
        %v5228 = vadd.f32 %v894, %v5227
        %v5229 = vpop.f32.mrf.mxu0
        %v5230 = vadd.f32 %v898, %v5229
        %v5231 = vpop.f32.mrf.mxu0
        %v5232 = vadd.f32 %v894, %v5231
        %v5233 = vpop.f32.mrf.mxu0
        %v5234 = vadd.f32 %v898, %v5233
        %5235 = vmatprep.mubr.bf16.mxu0 %v1148
        %5236 = vmatmul.mubr.bf16.gmra.mxu0 %v1147
        %v5237 = vpop.f32.mrf.mxu0
        %v5238 = vadd.f32 %v894, %v5237
        %v5239 = vpop.f32.mrf.mxu0
        %v5240 = vadd.f32 %v898, %v5239
        %v5241 = vpop.f32.mrf.mxu0
        %v5242 = vadd.f32 %v894, %v5241
        %v5243 = vpop.f32.mrf.mxu0
        %v5244 = vadd.f32 %v898, %v5243
        %5245 = vmatprep.mubr.bf16.mxu0 %v1156
        %5246 = vmatmul.mubr.bf16.gmra.mxu0 %v1155
        %v5247 = vpop.f32.mrf.mxu0
        %v5248 = vadd.f32 %v894, %v5247
        %v5249 = vpop.f32.mrf.mxu0
        %v5250 = vadd.f32 %v898, %v5249
        %v5251 = vpop.f32.mrf.mxu0
        %v5252 = vadd.f32 %v894, %v5251
        %v5253 = vpop.f32.mrf.mxu0
        %v5254 = vadd.f32 %v898, %v5253
        %5255 = vdwg.mxu0
        %5256 = vmatprep.subr.bf16.mxu0 %v2954
        %5257 = vmatpush1.bf16.msra.mxu0 %v2953
        %5258 = vmatprep.subr.bf16.mxu0 %v2946
        %5259 = vmatpush1.bf16.msra.mxu0 %v2945
        %5260 = vmatprep.subr.bf16.mxu0 %v2938
        %5261 = vmatpush1.bf16.msra.mxu0 %v2937
        %5262 = vmatprep.subr.bf16.mxu0 %v2930
        %5263 = vmatpush1.bf16.msra.mxu0 %v2929
        %5264 = vmatprep.subr.bf16.mxu0 %v2922
        %5265 = vmatpush1.bf16.msra.mxu0 %v2921
        %5266 = vmatprep.subr.bf16.mxu0 %v2914
        %5267 = vmatpush1.bf16.msra.mxu0 %v2913
        %5268 = vmatprep.subr.bf16.mxu0 %v2906
        %5269 = vmatpush1.bf16.msra.mxu0 %v2905
        %5270 = vmatprep.subr.bf16.mxu0 %v2898
        %5271 = vmatpush1.bf16.msra.mxu0 %v2897
        %5272 = vmatprep.subr.bf16.mxu0 %v3018
        %5273 = vmatpush2.bf16.msra.mxu0 %v3017
        %5274 = vmatprep.subr.bf16.mxu0 %v3010
        %5275 = vmatpush2.bf16.msra.mxu0 %v3009
        %5276 = vmatprep.subr.bf16.mxu0 %v3002
        %5277 = vmatpush2.bf16.msra.mxu0 %v3001
        %5278 = vmatprep.subr.bf16.mxu0 %v2994
        %5279 = vmatpush2.bf16.msra.mxu0 %v2993
        %5280 = vmatprep.subr.bf16.mxu0 %v2986
        %5281 = vmatpush2.bf16.msra.mxu0 %v2985
        %5282 = vmatprep.subr.bf16.mxu0 %v2978
        %5283 = vmatpush2.bf16.msra.mxu0 %v2977
        %5284 = vmatprep.subr.bf16.mxu0 %v2970
        %5285 = vmatpush2.bf16.msra.mxu0 %v2969
        %5286 = vmatprep.subr.bf16.mxu0 %v2962
        %5287 = vmatpush2.bf16.msra.mxu0 %v2961
        %5288 = vmatprep.mubr.bf16.mxu0 %v1102
        %5289 = vmatmul.mubr.bf16.gmra.mxu0 %v1101
        %v5290 = vpop.f32.mrf.mxu0
        %v5291 = vadd.f32 %v5178, %v5290
        %v5292 = vpop.f32.mrf.mxu0
        %v5293 = vadd.f32 %v5180, %v5292
        %v5294 = vpop.f32.mrf.mxu0
        %v5295 = vadd.f32 %v5182, %v5294
        %v5296 = vpop.f32.mrf.mxu0
        %v5297 = vadd.f32 %v5184, %v5296
        %5298 = vmatprep.mubr.bf16.mxu0 %v1110
        %5299 = vmatmul.mubr.bf16.gmra.mxu0 %v1109
        %v5300 = vpop.f32.mrf.mxu0
        %v5301 = vadd.f32 %v5188, %v5300
        %v5302 = vpop.f32.mrf.mxu0
        %v5303 = vadd.f32 %v5190, %v5302
        %v5304 = vpop.f32.mrf.mxu0
        %v5305 = vadd.f32 %v5192, %v5304
        %v5306 = vpop.f32.mrf.mxu0
        %v5307 = vadd.f32 %v5194, %v5306
        %5308 = vmatprep.mubr.bf16.mxu0 %v1118
        %5309 = vmatmul.mubr.bf16.gmra.mxu0 %v1117
        %v5310 = vpop.f32.mrf.mxu0
        %v5311 = vadd.f32 %v5198, %v5310
        %v5312 = vpop.f32.mrf.mxu0
        %v5313 = vadd.f32 %v5200, %v5312
        %v5314 = vpop.f32.mrf.mxu0
        %v5315 = vadd.f32 %v5202, %v5314
        %v5316 = vpop.f32.mrf.mxu0
        %v5317 = vadd.f32 %v5204, %v5316
        %5318 = vmatprep.mubr.bf16.mxu0 %v1126
        %5319 = vmatmul.mubr.bf16.gmra.mxu0 %v1125
        %v5320 = vpop.f32.mrf.mxu0
        %v5321 = vadd.f32 %v5208, %v5320
        %v5322 = vpop.f32.mrf.mxu0
        %v5323 = vadd.f32 %v5210, %v5322
        %v5324 = vpop.f32.mrf.mxu0
        %v5325 = vadd.f32 %v5212, %v5324
        %v5326 = vpop.f32.mrf.mxu0
        %v5327 = vadd.f32 %v5214, %v5326
        %5328 = vmatprep.mubr.bf16.mxu0 %v1134
        %5329 = vmatmul.mubr.bf16.gmra.mxu0 %v1133
        %v5330 = vpop.f32.mrf.mxu0
        %v5331 = vadd.f32 %v5218, %v5330
        %v5332 = vpop.f32.mrf.mxu0
        %v5333 = vadd.f32 %v5220, %v5332
        %v5334 = vpop.f32.mrf.mxu0
        %v5335 = vadd.f32 %v5222, %v5334
        %v5336 = vpop.f32.mrf.mxu0
        %v5337 = vadd.f32 %v5224, %v5336
        %5338 = vmatprep.mubr.bf16.mxu0 %v1142
        %5339 = vmatmul.mubr.bf16.gmra.mxu0 %v1141
        %v5340 = vpop.f32.mrf.mxu0
        %v5341 = vadd.f32 %v5228, %v5340
        %v5342 = vpop.f32.mrf.mxu0
        %v5343 = vadd.f32 %v5230, %v5342
        %v5344 = vpop.f32.mrf.mxu0
        %v5345 = vadd.f32 %v5232, %v5344
        %v5346 = vpop.f32.mrf.mxu0
        %v5347 = vadd.f32 %v5234, %v5346
        %5348 = vmatprep.mubr.bf16.mxu0 %v1150
        %5349 = vmatmul.mubr.bf16.gmra.mxu0 %v1149
        %v5350 = vpop.f32.mrf.mxu0
        %v5351 = vadd.f32 %v5238, %v5350
        %v5352 = vpop.f32.mrf.mxu0
        %v5353 = vadd.f32 %v5240, %v5352
        %v5354 = vpop.f32.mrf.mxu0
        %v5355 = vadd.f32 %v5242, %v5354
        %v5356 = vpop.f32.mrf.mxu0
        %v5357 = vadd.f32 %v5244, %v5356
        %5358 = vmatprep.mubr.bf16.mxu0 %v1158
        %5359 = vmatmul.mubr.bf16.gmra.mxu0 %v1157
        %v5360 = vpop.f32.mrf.mxu0
        %v5361 = vadd.f32 %v5248, %v5360
        %v5362 = vpop.f32.mrf.mxu0
        %v5363 = vadd.f32 %v5250, %v5362
        %v5364 = vpop.f32.mrf.mxu0
        %v5365 = vadd.f32 %v5252, %v5364
        %v5366 = vpop.f32.mrf.mxu0
        %v5367 = vadd.f32 %v5254, %v5366
        %5368 = vdwg.mxu0
        %5369 = vmatprep.subr.bf16.mxu0 %v3082
        %5370 = vmatpush1.bf16.msra.mxu0 %v3081
        %5371 = vmatprep.subr.bf16.mxu0 %v3074
        %5372 = vmatpush1.bf16.msra.mxu0 %v3073
        %5373 = vmatprep.subr.bf16.mxu0 %v3066
        %5374 = vmatpush1.bf16.msra.mxu0 %v3065
        %5375 = vmatprep.subr.bf16.mxu0 %v3058
        %5376 = vmatpush1.bf16.msra.mxu0 %v3057
        %5377 = vmatprep.subr.bf16.mxu0 %v3050
        %5378 = vmatpush1.bf16.msra.mxu0 %v3049
        %5379 = vmatprep.subr.bf16.mxu0 %v3042
        %5380 = vmatpush1.bf16.msra.mxu0 %v3041
        %5381 = vmatprep.subr.bf16.mxu0 %v3034
        %5382 = vmatpush1.bf16.msra.mxu0 %v3033
        %5383 = vmatprep.subr.bf16.mxu0 %v3026
        %5384 = vmatpush1.bf16.msra.mxu0 %v3025
        %5385 = vmatprep.subr.bf16.mxu0 %v3146
        %5386 = vmatpush2.bf16.msra.mxu0 %v3145
        %5387 = vmatprep.subr.bf16.mxu0 %v3138
        %5388 = vmatpush2.bf16.msra.mxu0 %v3137
        %5389 = vmatprep.subr.bf16.mxu0 %v3130
        %5390 = vmatpush2.bf16.msra.mxu0 %v3129
        %5391 = vmatprep.subr.bf16.mxu0 %v3122
        %5392 = vmatpush2.bf16.msra.mxu0 %v3121
        %5393 = vmatprep.subr.bf16.mxu0 %v3114
        %5394 = vmatpush2.bf16.msra.mxu0 %v3113
        %5395 = vmatprep.subr.bf16.mxu0 %v3106
        %5396 = vmatpush2.bf16.msra.mxu0 %v3105
        %5397 = vmatprep.subr.bf16.mxu0 %v3098
        %5398 = vmatpush2.bf16.msra.mxu0 %v3097
        %5399 = vmatprep.subr.bf16.mxu0 %v3090
        %5400 = vmatpush2.bf16.msra.mxu0 %v3089
        %5401 = vmatprep.mubr.bf16.mxu0 %v1104
        %5402 = vmatmul.mubr.bf16.gmra.mxu0 %v1103
        %v5403 = vpop.f32.mrf.mxu0
        %v5404 = vadd.f32 %v5291, %v5403
        %v5405 = vpop.f32.mrf.mxu0
        %v5406 = vadd.f32 %v5293, %v5405
        %v5407 = vpop.f32.mrf.mxu0
        %v5408 = vadd.f32 %v5295, %v5407
        %v5409 = vpop.f32.mrf.mxu0
        %v5410 = vadd.f32 %v5297, %v5409
        %5411 = vmatprep.mubr.bf16.mxu0 %v1112
        %5412 = vmatmul.mubr.bf16.gmra.mxu0 %v1111
        %v5413 = vpop.f32.mrf.mxu0
        %v5414 = vadd.f32 %v5301, %v5413
        %v5415 = vpop.f32.mrf.mxu0
        %v5416 = vadd.f32 %v5303, %v5415
        %v5417 = vpop.f32.mrf.mxu0
        %v5418 = vadd.f32 %v5305, %v5417
        %v5419 = vpop.f32.mrf.mxu0
        %v5420 = vadd.f32 %v5307, %v5419
        %5421 = vmatprep.mubr.bf16.mxu0 %v1120
        %5422 = vmatmul.mubr.bf16.gmra.mxu0 %v1119
        %v5423 = vpop.f32.mrf.mxu0
        %v5424 = vadd.f32 %v5311, %v5423
        %v5425 = vpop.f32.mrf.mxu0
        %v5426 = vadd.f32 %v5313, %v5425
        %v5427 = vpop.f32.mrf.mxu0
        %v5428 = vadd.f32 %v5315, %v5427
        %v5429 = vpop.f32.mrf.mxu0
        %v5430 = vadd.f32 %v5317, %v5429
        %5431 = vmatprep.mubr.bf16.mxu0 %v1128
        %5432 = vmatmul.mubr.bf16.gmra.mxu0 %v1127
        %v5433 = vpop.f32.mrf.mxu0
        %v5434 = vadd.f32 %v5321, %v5433
        %v5435 = vpop.f32.mrf.mxu0
        %v5436 = vadd.f32 %v5323, %v5435
        %v5437 = vpop.f32.mrf.mxu0
        %v5438 = vadd.f32 %v5325, %v5437
        %v5439 = vpop.f32.mrf.mxu0
        %v5440 = vadd.f32 %v5327, %v5439
        %5441 = vmatprep.mubr.bf16.mxu0 %v1136
        %5442 = vmatmul.mubr.bf16.gmra.mxu0 %v1135
        %v5443 = vpop.f32.mrf.mxu0
        %v5444 = vadd.f32 %v5331, %v5443
        %v5445 = vpop.f32.mrf.mxu0
        %v5446 = vadd.f32 %v5333, %v5445
        %v5447 = vpop.f32.mrf.mxu0
        %v5448 = vadd.f32 %v5335, %v5447
        %v5449 = vpop.f32.mrf.mxu0
        %v5450 = vadd.f32 %v5337, %v5449
        %5451 = vmatprep.mubr.bf16.mxu0 %v1144
        %5452 = vmatmul.mubr.bf16.gmra.mxu0 %v1143
        %v5453 = vpop.f32.mrf.mxu0
        %v5454 = vadd.f32 %v5341, %v5453
        %v5455 = vpop.f32.mrf.mxu0
        %v5456 = vadd.f32 %v5343, %v5455
        %v5457 = vpop.f32.mrf.mxu0
        %v5458 = vadd.f32 %v5345, %v5457
        %v5459 = vpop.f32.mrf.mxu0
        %v5460 = vadd.f32 %v5347, %v5459
        %5461 = vmatprep.mubr.bf16.mxu0 %v1152
        %5462 = vmatmul.mubr.bf16.gmra.mxu0 %v1151
        %v5463 = vpop.f32.mrf.mxu0
        %v5464 = vadd.f32 %v5351, %v5463
        %v5465 = vpop.f32.mrf.mxu0
        %v5466 = vadd.f32 %v5353, %v5465
        %v5467 = vpop.f32.mrf.mxu0
        %v5468 = vadd.f32 %v5355, %v5467
        %v5469 = vpop.f32.mrf.mxu0
        %v5470 = vadd.f32 %v5357, %v5469
        %5471 = vmatprep.mubr.bf16.mxu0 %v1160
        %5472 = vmatmul.mubr.bf16.gmra.mxu0 %v1159
        %v5473 = vpop.f32.mrf.mxu0
        %v5474 = vadd.f32 %v5361, %v5473
        %v5475 = vpop.f32.mrf.mxu0
        %v5476 = vadd.f32 %v5363, %v5475
        %v5477 = vpop.f32.mrf.mxu0
        %v5478 = vadd.f32 %v5365, %v5477
        %v5479 = vpop.f32.mrf.mxu0
        %v5480 = vadd.f32 %v5367, %v5479
        %5481 = vdwg.mxu0
        %5482 = vmatprep.subr.bf16.mxu0 %v3210
        %5483 = vmatpush1.bf16.msra.mxu0 %v3209
        %5484 = vmatprep.subr.bf16.mxu0 %v3202
        %5485 = vmatpush1.bf16.msra.mxu0 %v3201
        %5486 = vmatprep.subr.bf16.mxu0 %v3194
        %5487 = vmatpush1.bf16.msra.mxu0 %v3193
        %5488 = vmatprep.subr.bf16.mxu0 %v3186
        %5489 = vmatpush1.bf16.msra.mxu0 %v3185
        %5490 = vmatprep.subr.bf16.mxu0 %v3178
        %5491 = vmatpush1.bf16.msra.mxu0 %v3177
        %5492 = vmatprep.subr.bf16.mxu0 %v3170
        %5493 = vmatpush1.bf16.msra.mxu0 %v3169
        %5494 = vmatprep.subr.bf16.mxu0 %v3162
        %5495 = vmatpush1.bf16.msra.mxu0 %v3161
        %5496 = vmatprep.subr.bf16.mxu0 %v3154
        %5497 = vmatpush1.bf16.msra.mxu0 %v3153
        %5498 = vmatprep.subr.bf16.mxu0 %v3274
        %5499 = vmatpush2.bf16.msra.mxu0 %v3273
        %5500 = vmatprep.subr.bf16.mxu0 %v3266
        %5501 = vmatpush2.bf16.msra.mxu0 %v3265
        %5502 = vmatprep.subr.bf16.mxu0 %v3258
        %5503 = vmatpush2.bf16.msra.mxu0 %v3257
        %5504 = vmatprep.subr.bf16.mxu0 %v3250
        %5505 = vmatpush2.bf16.msra.mxu0 %v3249
        %5506 = vmatprep.subr.bf16.mxu0 %v3242
        %5507 = vmatpush2.bf16.msra.mxu0 %v3241
        %5508 = vmatprep.subr.bf16.mxu0 %v3234
        %5509 = vmatpush2.bf16.msra.mxu0 %v3233
        %5510 = vmatprep.subr.bf16.mxu0 %v3226
        %5511 = vmatpush2.bf16.msra.mxu0 %v3225
        %5512 = vmatprep.subr.bf16.mxu0 %v3218
        %5513 = vmatpush2.bf16.msra.mxu0 %v3217
        %5514 = vmatprep.mubr.bf16.mxu0 %v1106
        %5515 = vmatmul.mubr.bf16.gmra.mxu0 %v1105
        %v5516 = vpop.f32.mrf.mxu0
        %v5517 = vadd.f32 %v5404, %v5516
        %v5518 = vpop.f32.mrf.mxu0
        %v5519 = vadd.f32 %v5406, %v5518
        %v5520 = vpop.f32.mrf.mxu0
        %v5521 = vadd.f32 %v5408, %v5520
        %v5522 = vpop.f32.mrf.mxu0
        %v5523 = vadd.f32 %v5410, %v5522
        %5524 = vmatprep.mubr.bf16.mxu0 %v1114
        %5525 = vmatmul.mubr.bf16.gmra.mxu0 %v1113
        %v5526 = vpop.f32.mrf.mxu0
        %v5527 = vadd.f32 %v5414, %v5526
        %v5528 = vpop.f32.mrf.mxu0
        %v5529 = vadd.f32 %v5416, %v5528
        %v5530 = vpop.f32.mrf.mxu0
        %v5531 = vadd.f32 %v5418, %v5530
        %v5532 = vpop.f32.mrf.mxu0
        %v5533 = vadd.f32 %v5420, %v5532
        %5534 = vmatprep.mubr.bf16.mxu0 %v1122
        %5535 = vmatmul.mubr.bf16.gmra.mxu0 %v1121
        %v5536 = vpop.f32.mrf.mxu0
        %v5537 = vadd.f32 %v5424, %v5536
        %v5538 = vpop.f32.mrf.mxu0
        %v5539 = vadd.f32 %v5426, %v5538
        %v5540 = vpop.f32.mrf.mxu0
        %v5541 = vadd.f32 %v5428, %v5540
        %v5542 = vpop.f32.mrf.mxu0
        %v5543 = vadd.f32 %v5430, %v5542
        %5544 = vmatprep.mubr.bf16.mxu0 %v1130
        %5545 = vmatmul.mubr.bf16.gmra.mxu0 %v1129
        %v5546 = vpop.f32.mrf.mxu0
        %v5547 = vadd.f32 %v5434, %v5546
        %v5548 = vpop.f32.mrf.mxu0
        %v5549 = vadd.f32 %v5436, %v5548
        %v5550 = vpop.f32.mrf.mxu0
        %v5551 = vadd.f32 %v5438, %v5550
        %v5552 = vpop.f32.mrf.mxu0
        %v5553 = vadd.f32 %v5440, %v5552
        %5554 = vmatprep.mubr.bf16.mxu0 %v1138
        %5555 = vmatmul.mubr.bf16.gmra.mxu0 %v1137
        %v5556 = vpop.f32.mrf.mxu0
        %v5557 = vadd.f32 %v5444, %v5556
        %v5558 = vpop.f32.mrf.mxu0
        %v5559 = vadd.f32 %v5446, %v5558
        %v5560 = vpop.f32.mrf.mxu0
        %v5561 = vadd.f32 %v5448, %v5560
        %v5562 = vpop.f32.mrf.mxu0
        %v5563 = vadd.f32 %v5450, %v5562
        %5564 = vmatprep.mubr.bf16.mxu0 %v1146
        %5565 = vmatmul.mubr.bf16.gmra.mxu0 %v1145
        %v5566 = vpop.f32.mrf.mxu0
        %v5567 = vadd.f32 %v5454, %v5566
        %v5568 = vpop.f32.mrf.mxu0
        %v5569 = vadd.f32 %v5456, %v5568
        %v5570 = vpop.f32.mrf.mxu0
        %v5571 = vadd.f32 %v5458, %v5570
        %v5572 = vpop.f32.mrf.mxu0
        %v5573 = vadd.f32 %v5460, %v5572
        %5574 = vmatprep.mubr.bf16.mxu0 %v1154
        %5575 = vmatmul.mubr.bf16.gmra.mxu0 %v1153
        %v5576 = vpop.f32.mrf.mxu0
        %v5577 = vadd.f32 %v5464, %v5576
        %v5578 = vpop.f32.mrf.mxu0
        %v5579 = vadd.f32 %v5466, %v5578
        %v5580 = vpop.f32.mrf.mxu0
        %v5581 = vadd.f32 %v5468, %v5580
        %v5582 = vpop.f32.mrf.mxu0
        %v5583 = vadd.f32 %v5470, %v5582
        %5584 = vmatprep.mubr.bf16.mxu0 %v1162
        %5585 = vmatmul.mubr.bf16.gmra.mxu0 %v1161
        %v5586 = vpop.f32.mrf.mxu0
        %v5587 = vadd.f32 %v5474, %v5586
        %v5588 = vpop.f32.mrf.mxu0
        %v5589 = vadd.f32 %v5476, %v5588
        %v5590 = vpop.f32.mrf.mxu0
        %v5591 = vadd.f32 %v5478, %v5590
        %v5592 = vpop.f32.mrf.mxu0
        %v5593 = vadd.f32 %v5480, %v5592
        %5594 = vdwg.mxu0
        %v5595 = vmul.f32 %v4161, 0.5
        %v5596 = vmul.f32 %v4163, 0.5
        %v5597 = vmul.f32 %v4613, 0.5
        %v5598 = vmul.f32 %v4615, 0.5
        %v5599 = vmul.f32 %v5065, 0.5
        %v5600 = vmul.f32 %v5067, 0.5
        %v5601 = vmul.f32 %v5517, 0.5
        %v5602 = vmul.f32 %v5519, 0.5
        %v5603 = vmul.f32 %v4165, 0.5
        %v5604 = vmul.f32 %v4167, 0.5
        %v5605 = vmul.f32 %v4617, 0.5
        %v5606 = vmul.f32 %v4619, 0.5
        %v5607 = vmul.f32 %v5069, 0.5
        %v5608 = vmul.f32 %v5071, 0.5
        %v5609 = vmul.f32 %v5521, 0.5
        %v5610 = vmul.f32 %v5523, 0.5
        %v5611 = vmul.f32 %v4171, 0.5
        %v5612 = vmul.f32 %v4173, 0.5
        %v5613 = vmul.f32 %v4623, 0.5
        %v5614 = vmul.f32 %v4625, 0.5
        %v5615 = vmul.f32 %v5075, 0.5
        %v5616 = vmul.f32 %v5077, 0.5
        %v5617 = vmul.f32 %v5527, 0.5
        %v5618 = vmul.f32 %v5529, 0.5
        %v5619 = vmul.f32 %v4175, 0.5
        %v5620 = vmul.f32 %v4177, 0.5
        %v5621 = vmul.f32 %v4627, 0.5
        %v5622 = vmul.f32 %v4629, 0.5
        %v5623 = vmul.f32 %v5079, 0.5
        %v5624 = vmul.f32 %v5081, 0.5
        %v5625 = vmul.f32 %v5531, 0.5
        %v5626 = vmul.f32 %v5533, 0.5
        %v5627 = vmul.f32 %v4181, 0.5
        %v5628 = vmul.f32 %v4183, 0.5
        %v5629 = vmul.f32 %v4633, 0.5
        %v5630 = vmul.f32 %v4635, 0.5
        %v5631 = vmul.f32 %v5085, 0.5
        %v5632 = vmul.f32 %v5087, 0.5
        %v5633 = vmul.f32 %v5537, 0.5
        %v5634 = vmul.f32 %v5539, 0.5
        %v5635 = vmul.f32 %v4185, 0.5
        %v5636 = vmul.f32 %v4187, 0.5
        %v5637 = vmul.f32 %v4637, 0.5
        %v5638 = vmul.f32 %v4639, 0.5
        %v5639 = vmul.f32 %v5089, 0.5
        %v5640 = vmul.f32 %v5091, 0.5
        %v5641 = vmul.f32 %v5541, 0.5
        %v5642 = vmul.f32 %v5543, 0.5
        %v5643 = vmul.f32 %v4191, 0.5
        %v5644 = vmul.f32 %v4193, 0.5
        %v5645 = vmul.f32 %v4643, 0.5
        %v5646 = vmul.f32 %v4645, 0.5
        %v5647 = vmul.f32 %v5095, 0.5
        %v5648 = vmul.f32 %v5097, 0.5
        %v5649 = vmul.f32 %v5547, 0.5
        %v5650 = vmul.f32 %v5549, 0.5
        %v5651 = vmul.f32 %v4195, 0.5
        %v5652 = vmul.f32 %v4197, 0.5
        %v5653 = vmul.f32 %v4647, 0.5
        %v5654 = vmul.f32 %v4649, 0.5
        %v5655 = vmul.f32 %v5099, 0.5
        %v5656 = vmul.f32 %v5101, 0.5
        %v5657 = vmul.f32 %v5551, 0.5
        %v5658 = vmul.f32 %v5553, 0.5
        %v5659 = vmul.f32 %v4201, 0.5
        %v5660 = vmul.f32 %v4203, 0.5
        %v5661 = vmul.f32 %v4653, 0.5
        %v5662 = vmul.f32 %v4655, 0.5
        %v5663 = vmul.f32 %v5105, 0.5
        %v5664 = vmul.f32 %v5107, 0.5
        %v5665 = vmul.f32 %v5557, 0.5
        %v5666 = vmul.f32 %v5559, 0.5
        %v5667 = vmul.f32 %v4205, 0.5
        %v5668 = vmul.f32 %v4207, 0.5
        %v5669 = vmul.f32 %v4657, 0.5
        %v5670 = vmul.f32 %v4659, 0.5
        %v5671 = vmul.f32 %v5109, 0.5
        %v5672 = vmul.f32 %v5111, 0.5
        %v5673 = vmul.f32 %v5561, 0.5
        %v5674 = vmul.f32 %v5563, 0.5
        %v5675 = vmul.f32 %v4211, 0.5
        %v5676 = vmul.f32 %v4213, 0.5
        %v5677 = vmul.f32 %v4663, 0.5
        %v5678 = vmul.f32 %v4665, 0.5
        %v5679 = vmul.f32 %v5115, 0.5
        %v5680 = vmul.f32 %v5117, 0.5
        %v5681 = vmul.f32 %v5567, 0.5
        %v5682 = vmul.f32 %v5569, 0.5
        %v5683 = vmul.f32 %v4215, 0.5
        %v5684 = vmul.f32 %v4217, 0.5
        %v5685 = vmul.f32 %v4667, 0.5
        %v5686 = vmul.f32 %v4669, 0.5
        %v5687 = vmul.f32 %v5119, 0.5
        %v5688 = vmul.f32 %v5121, 0.5
        %v5689 = vmul.f32 %v5571, 0.5
        %v5690 = vmul.f32 %v5573, 0.5
        %v5691 = vmul.f32 %v4221, 0.5
        %v5692 = vmul.f32 %v4223, 0.5
        %v5693 = vmul.f32 %v4673, 0.5
        %v5694 = vmul.f32 %v4675, 0.5
        %v5695 = vmul.f32 %v5125, 0.5
        %v5696 = vmul.f32 %v5127, 0.5
        %v5697 = vmul.f32 %v5577, 0.5
        %v5698 = vmul.f32 %v5579, 0.5
        %v5699 = vmul.f32 %v4225, 0.5
        %v5700 = vmul.f32 %v4227, 0.5
        %v5701 = vmul.f32 %v4677, 0.5
        %v5702 = vmul.f32 %v4679, 0.5
        %v5703 = vmul.f32 %v5129, 0.5
        %v5704 = vmul.f32 %v5131, 0.5
        %v5705 = vmul.f32 %v5581, 0.5
        %v5706 = vmul.f32 %v5583, 0.5
        %v5707 = vmul.f32 %v4231, 0.5
        %v5708 = vmul.f32 %v4233, 0.5
        %v5709 = vmul.f32 %v4683, 0.5
        %v5710 = vmul.f32 %v4685, 0.5
        %v5711 = vmul.f32 %v5135, 0.5
        %v5712 = vmul.f32 %v5137, 0.5
        %v5713 = vmul.f32 %v5587, 0.5
        %v5714 = vmul.f32 %v5589, 0.5
        %v5715 = vmul.f32 %v4235, 0.5
        %v5716 = vmul.f32 %v4237, 0.5
        %v5717 = vmul.f32 %v4687, 0.5
        %v5718 = vmul.f32 %v4689, 0.5
        %v5719 = vmul.f32 %v5139, 0.5
        %v5720 = vmul.f32 %v5141, 0.5
        %v5721 = vmul.f32 %v5591, 0.5
        %v5722 = vmul.f32 %v5593, 0.5
        %v5723 = vmul.f32 %v4161, 0.70710677
        %v5724 = vmul.f32 %v4163, 0.70710677
        %v5725 = vmul.f32 %v4613, 0.70710677
        %v5726 = vmul.f32 %v4615, 0.70710677
        %v5727 = vmul.f32 %v5065, 0.70710677
        %v5728 = vmul.f32 %v5067, 0.70710677
        %v5729 = vmul.f32 %v5517, 0.70710677
        %v5730 = vmul.f32 %v5519, 0.70710677
        %v5731 = vmul.f32 %v4165, 0.70710677
        %v5732 = vmul.f32 %v4167, 0.70710677
        %v5733 = vmul.f32 %v4617, 0.70710677
        %v5734 = vmul.f32 %v4619, 0.70710677
        %v5735 = vmul.f32 %v5069, 0.70710677
        %v5736 = vmul.f32 %v5071, 0.70710677
        %v5737 = vmul.f32 %v5521, 0.70710677
        %v5738 = vmul.f32 %v5523, 0.70710677
        %v5739 = vmul.f32 %v4171, 0.70710677
        %v5740 = vmul.f32 %v4173, 0.70710677
        %v5741 = vmul.f32 %v4623, 0.70710677
        %v5742 = vmul.f32 %v4625, 0.70710677
        %v5743 = vmul.f32 %v5075, 0.70710677
        %v5744 = vmul.f32 %v5077, 0.70710677
        %v5745 = vmul.f32 %v5527, 0.70710677
        %v5746 = vmul.f32 %v5529, 0.70710677
        %v5747 = vmul.f32 %v4175, 0.70710677
        %v5748 = vmul.f32 %v4177, 0.70710677
        %v5749 = vmul.f32 %v4627, 0.70710677
        %v5750 = vmul.f32 %v4629, 0.70710677
        %v5751 = vmul.f32 %v5079, 0.70710677
        %v5752 = vmul.f32 %v5081, 0.70710677
        %v5753 = vmul.f32 %v5531, 0.70710677
        %v5754 = vmul.f32 %v5533, 0.70710677
        %v5755 = vmul.f32 %v4181, 0.70710677
        %v5756 = vmul.f32 %v4183, 0.70710677
        %v5757 = vmul.f32 %v4633, 0.70710677
        %v5758 = vmul.f32 %v4635, 0.70710677
        %v5759 = vmul.f32 %v5085, 0.70710677
        %v5760 = vmul.f32 %v5087, 0.70710677
        %v5761 = vmul.f32 %v5537, 0.70710677
        %v5762 = vmul.f32 %v5539, 0.70710677
        %v5763 = vmul.f32 %v4185, 0.70710677
        %v5764 = vmul.f32 %v4187, 0.70710677
        %v5765 = vmul.f32 %v4637, 0.70710677
        %v5766 = vmul.f32 %v4639, 0.70710677
        %v5767 = vmul.f32 %v5089, 0.70710677
        %v5768 = vmul.f32 %v5091, 0.70710677
        %v5769 = vmul.f32 %v5541, 0.70710677
        %v5770 = vmul.f32 %v5543, 0.70710677
        %v5771 = vmul.f32 %v4191, 0.70710677
        %v5772 = vmul.f32 %v4193, 0.70710677
        %v5773 = vmul.f32 %v4643, 0.70710677
        %v5774 = vmul.f32 %v4645, 0.70710677
        %v5775 = vmul.f32 %v5095, 0.70710677
        %v5776 = vmul.f32 %v5097, 0.70710677
        %v5777 = vmul.f32 %v5547, 0.70710677
        %v5778 = vmul.f32 %v5549, 0.70710677
        %v5779 = vmul.f32 %v4195, 0.70710677
        %v5780 = vmul.f32 %v4197, 0.70710677
        %v5781 = vmul.f32 %v4647, 0.70710677
        %v5782 = vmul.f32 %v4649, 0.70710677
        %v5783 = vmul.f32 %v5099, 0.70710677
        %v5784 = vmul.f32 %v5101, 0.70710677
        %v5785 = vmul.f32 %v5551, 0.70710677
        %v5786 = vmul.f32 %v5553, 0.70710677
        %v5787 = vmul.f32 %v4201, 0.70710677
        %v5788 = vmul.f32 %v4203, 0.70710677
        %v5789 = vmul.f32 %v4653, 0.70710677
        %v5790 = vmul.f32 %v4655, 0.70710677
        %v5791 = vmul.f32 %v5105, 0.70710677
        %v5792 = vmul.f32 %v5107, 0.70710677
        %v5793 = vmul.f32 %v5557, 0.70710677
        %v5794 = vmul.f32 %v5559, 0.70710677
        %v5795 = vmul.f32 %v4205, 0.70710677
        %v5796 = vmul.f32 %v4207, 0.70710677
        %v5797 = vmul.f32 %v4657, 0.70710677
        %v5798 = vmul.f32 %v4659, 0.70710677
        %v5799 = vmul.f32 %v5109, 0.70710677
        %v5800 = vmul.f32 %v5111, 0.70710677
        %v5801 = vmul.f32 %v5561, 0.70710677
        %v5802 = vmul.f32 %v5563, 0.70710677
        %v5803 = vmul.f32 %v4211, 0.70710677
        %v5804 = vmul.f32 %v4213, 0.70710677
        %v5805 = vmul.f32 %v4663, 0.70710677
        %v5806 = vmul.f32 %v4665, 0.70710677
        %v5807 = vmul.f32 %v5115, 0.70710677
        %v5808 = vmul.f32 %v5117, 0.70710677
        %v5809 = vmul.f32 %v5567, 0.70710677
        %v5810 = vmul.f32 %v5569, 0.70710677
        %v5811 = vmul.f32 %v4215, 0.70710677
        %v5812 = vmul.f32 %v4217, 0.70710677
        %v5813 = vmul.f32 %v4667, 0.70710677
        %v5814 = vmul.f32 %v4669, 0.70710677
        %v5815 = vmul.f32 %v5119, 0.70710677
        %v5816 = vmul.f32 %v5121, 0.70710677
        %v5817 = vmul.f32 %v5571, 0.70710677
        %v5818 = vmul.f32 %v5573, 0.70710677
        %v5819 = vmul.f32 %v4221, 0.70710677
        %v5820 = vmul.f32 %v4223, 0.70710677
        %v5821 = vmul.f32 %v4673, 0.70710677
        %v5822 = vmul.f32 %v4675, 0.70710677
        %v5823 = vmul.f32 %v5125, 0.70710677
        %v5824 = vmul.f32 %v5127, 0.70710677
        %v5825 = vmul.f32 %v5577, 0.70710677
        %v5826 = vmul.f32 %v5579, 0.70710677
        %v5827 = vmul.f32 %v4225, 0.70710677
        %v5828 = vmul.f32 %v4227, 0.70710677
        %v5829 = vmul.f32 %v4677, 0.70710677
        %v5830 = vmul.f32 %v4679, 0.70710677
        %v5831 = vmul.f32 %v5129, 0.70710677
        %v5832 = vmul.f32 %v5131, 0.70710677
        %v5833 = vmul.f32 %v5581, 0.70710677
        %v5834 = vmul.f32 %v5583, 0.70710677
        %v5835 = vmul.f32 %v4231, 0.70710677
        %v5836 = vmul.f32 %v4233, 0.70710677
        %v5837 = vmul.f32 %v4683, 0.70710677
        %v5838 = vmul.f32 %v4685, 0.70710677
        %v5839 = vmul.f32 %v5135, 0.70710677
        %v5840 = vmul.f32 %v5137, 0.70710677
        %v5841 = vmul.f32 %v5587, 0.70710677
        %v5842 = vmul.f32 %v5589, 0.70710677
        %v5843 = vmul.f32 %v4235, 0.70710677
        %v5844 = vmul.f32 %v4237, 0.70710677
        %v5845 = vmul.f32 %v4687, 0.70710677
        %v5846 = vmul.f32 %v4689, 0.70710677
        %v5847 = vmul.f32 %v5139, 0.70710677
        %v5848 = vmul.f32 %v5141, 0.70710677
        %v5849 = vmul.f32 %v5591, 0.70710677
        %v5850 = vmul.f32 %v5593, 0.70710677
        %v5851 = verf.f32.pop %v5723
        %v5852 = verf.f32.pop %v5724
        %v5853 = verf.f32.pop %v5725
        %v5854 = verf.f32.pop %v5726
        %v5855 = verf.f32.pop %v5727
        %v5856 = verf.f32.pop %v5728
        %v5857 = verf.f32.pop %v5729
        %v5858 = verf.f32.pop %v5730
        %v5859 = verf.f32.pop %v5731
        %v5860 = verf.f32.pop %v5732
        %v5861 = verf.f32.pop %v5733
        %v5862 = verf.f32.pop %v5734
        %v5863 = verf.f32.pop %v5735
        %v5864 = verf.f32.pop %v5736
        %v5865 = verf.f32.pop %v5737
        %v5866 = verf.f32.pop %v5738
        %v5867 = verf.f32.pop %v5739
        %v5868 = verf.f32.pop %v5740
        %v5869 = verf.f32.pop %v5741
        %v5870 = verf.f32.pop %v5742
        %v5871 = verf.f32.pop %v5743
        %v5872 = verf.f32.pop %v5744
        %v5873 = verf.f32.pop %v5745
        %v5874 = verf.f32.pop %v5746
        %v5875 = verf.f32.pop %v5747
        %v5876 = verf.f32.pop %v5748
        %v5877 = verf.f32.pop %v5749
        %v5878 = verf.f32.pop %v5750
        %v5879 = verf.f32.pop %v5751
        %v5880 = verf.f32.pop %v5752
        %v5881 = verf.f32.pop %v5753
        %v5882 = verf.f32.pop %v5754
        %v5883 = verf.f32.pop %v5755
        %v5884 = verf.f32.pop %v5756
        %v5885 = verf.f32.pop %v5757
        %v5886 = verf.f32.pop %v5758
        %v5887 = verf.f32.pop %v5759
        %v5888 = verf.f32.pop %v5760
        %v5889 = verf.f32.pop %v5761
        %v5890 = verf.f32.pop %v5762
        %v5891 = verf.f32.pop %v5763
        %v5892 = verf.f32.pop %v5764
        %v5893 = verf.f32.pop %v5765
        %v5894 = verf.f32.pop %v5766
        %v5895 = verf.f32.pop %v5767
        %v5896 = verf.f32.pop %v5768
        %v5897 = verf.f32.pop %v5769
        %v5898 = verf.f32.pop %v5770
        %v5899 = verf.f32.pop %v5771
        %v5900 = verf.f32.pop %v5772
        %v5901 = verf.f32.pop %v5773
        %v5902 = verf.f32.pop %v5774
        %v5903 = verf.f32.pop %v5775
        %v5904 = verf.f32.pop %v5776
        %v5905 = verf.f32.pop %v5777
        %v5906 = verf.f32.pop %v5778
        %v5907 = verf.f32.pop %v5779
        %v5908 = verf.f32.pop %v5780
        %v5909 = verf.f32.pop %v5781
        %v5910 = verf.f32.pop %v5782
        %v5911 = verf.f32.pop %v5783
        %v5912 = verf.f32.pop %v5784
        %v5913 = verf.f32.pop %v5785
        %v5914 = verf.f32.pop %v5786
        %v5915 = verf.f32.pop %v5787
        %v5916 = verf.f32.pop %v5788
        %v5917 = verf.f32.pop %v5789
        %v5918 = verf.f32.pop %v5790
        %v5919 = verf.f32.pop %v5791
        %v5920 = verf.f32.pop %v5792
        %v5921 = verf.f32.pop %v5793
        %v5922 = verf.f32.pop %v5794
        %v5923 = verf.f32.pop %v5795
        %v5924 = verf.f32.pop %v5796
        %v5925 = verf.f32.pop %v5797
        %v5926 = verf.f32.pop %v5798
        %v5927 = verf.f32.pop %v5799
        %v5928 = verf.f32.pop %v5800
        %v5929 = verf.f32.pop %v5801
        %v5930 = verf.f32.pop %v5802
        %v5931 = verf.f32.pop %v5803
        %v5932 = verf.f32.pop %v5804
        %v5933 = verf.f32.pop %v5805
        %v5934 = verf.f32.pop %v5806
        %v5935 = verf.f32.pop %v5807
        %v5936 = verf.f32.pop %v5808
        %v5937 = verf.f32.pop %v5809
        %v5938 = verf.f32.pop %v5810
        %v5939 = verf.f32.pop %v5811
        %v5940 = verf.f32.pop %v5812
        %v5941 = verf.f32.pop %v5813
        %v5942 = verf.f32.pop %v5814
        %v5943 = verf.f32.pop %v5815
        %v5944 = verf.f32.pop %v5816
        %v5945 = verf.f32.pop %v5817
        %v5946 = verf.f32.pop %v5818
        %v5947 = verf.f32.pop %v5819
        %v5948 = verf.f32.pop %v5820
        %v5949 = verf.f32.pop %v5821
        %v5950 = verf.f32.pop %v5822
        %v5951 = verf.f32.pop %v5823
        %v5952 = verf.f32.pop %v5824
        %v5953 = verf.f32.pop %v5825
        %v5954 = verf.f32.pop %v5826
        %v5955 = verf.f32.pop %v5827
        %v5956 = verf.f32.pop %v5828
        %v5957 = verf.f32.pop %v5829
        %v5958 = verf.f32.pop %v5830
        %v5959 = verf.f32.pop %v5831
        %v5960 = verf.f32.pop %v5832
        %v5961 = verf.f32.pop %v5833
        %v5962 = verf.f32.pop %v5834
        %v5963 = verf.f32.pop %v5835
        %v5964 = verf.f32.pop %v5836
        %v5965 = verf.f32.pop %v5837
        %v5966 = verf.f32.pop %v5838
        %v5967 = verf.f32.pop %v5839
        %v5968 = verf.f32.pop %v5840
        %v5969 = verf.f32.pop %v5841
        %v5970 = verf.f32.pop %v5842
        %v5971 = verf.f32.pop %v5843
        %v5972 = verf.f32.pop %v5844
        %v5973 = verf.f32.pop %v5845
        %v5974 = verf.f32.pop %v5846
        %v5975 = verf.f32.pop %v5847
        %v5976 = verf.f32.pop %v5848
        %v5977 = verf.f32.pop %v5849
        %v5978 = verf.f32.pop %v5850
        %v5979 = vadd.f32 %v5851, 1.0
        %v5980 = vadd.f32 %v5852, 1.0
        %v5981 = vadd.f32 %v5853, 1.0
        %v5982 = vadd.f32 %v5854, 1.0
        %v5983 = vadd.f32 %v5855, 1.0
        %v5984 = vadd.f32 %v5856, 1.0
        %v5985 = vadd.f32 %v5857, 1.0
        %v5986 = vadd.f32 %v5858, 1.0
        %v5987 = vadd.f32 %v5859, 1.0
        %v5988 = vadd.f32 %v5860, 1.0
        %v5989 = vadd.f32 %v5861, 1.0
        %v5990 = vadd.f32 %v5862, 1.0
        %v5991 = vadd.f32 %v5863, 1.0
        %v5992 = vadd.f32 %v5864, 1.0
        %v5993 = vadd.f32 %v5865, 1.0
        %v5994 = vadd.f32 %v5866, 1.0
        %v5995 = vadd.f32 %v5867, 1.0
        %v5996 = vadd.f32 %v5868, 1.0
        %v5997 = vadd.f32 %v5869, 1.0
        %v5998 = vadd.f32 %v5870, 1.0
        %v5999 = vadd.f32 %v5871, 1.0
        %v6000 = vadd.f32 %v5872, 1.0
        %v6001 = vadd.f32 %v5873, 1.0
        %v6002 = vadd.f32 %v5874, 1.0
        %v6003 = vadd.f32 %v5875, 1.0
        %v6004 = vadd.f32 %v5876, 1.0
        %v6005 = vadd.f32 %v5877, 1.0
        %v6006 = vadd.f32 %v5878, 1.0
        %v6007 = vadd.f32 %v5879, 1.0
        %v6008 = vadd.f32 %v5880, 1.0
        %v6009 = vadd.f32 %v5881, 1.0
        %v6010 = vadd.f32 %v5882, 1.0
        %v6011 = vadd.f32 %v5883, 1.0
        %v6012 = vadd.f32 %v5884, 1.0
        %v6013 = vadd.f32 %v5885, 1.0
        %v6014 = vadd.f32 %v5886, 1.0
        %v6015 = vadd.f32 %v5887, 1.0
        %v6016 = vadd.f32 %v5888, 1.0
        %v6017 = vadd.f32 %v5889, 1.0
        %v6018 = vadd.f32 %v5890, 1.0
        %v6019 = vadd.f32 %v5891, 1.0
        %v6020 = vadd.f32 %v5892, 1.0
        %v6021 = vadd.f32 %v5893, 1.0
        %v6022 = vadd.f32 %v5894, 1.0
        %v6023 = vadd.f32 %v5895, 1.0
        %v6024 = vadd.f32 %v5896, 1.0
        %v6025 = vadd.f32 %v5897, 1.0
        %v6026 = vadd.f32 %v5898, 1.0
        %v6027 = vadd.f32 %v5899, 1.0
        %v6028 = vadd.f32 %v5900, 1.0
        %v6029 = vadd.f32 %v5901, 1.0
        %v6030 = vadd.f32 %v5902, 1.0
        %v6031 = vadd.f32 %v5903, 1.0
        %v6032 = vadd.f32 %v5904, 1.0
        %v6033 = vadd.f32 %v5905, 1.0
        %v6034 = vadd.f32 %v5906, 1.0
        %v6035 = vadd.f32 %v5907, 1.0
        %v6036 = vadd.f32 %v5908, 1.0
        %v6037 = vadd.f32 %v5909, 1.0
        %v6038 = vadd.f32 %v5910, 1.0
        %v6039 = vadd.f32 %v5911, 1.0
        %v6040 = vadd.f32 %v5912, 1.0
        %v6041 = vadd.f32 %v5913, 1.0
        %v6042 = vadd.f32 %v5914, 1.0
        %v6043 = vadd.f32 %v5915, 1.0
        %v6044 = vadd.f32 %v5916, 1.0
        %v6045 = vadd.f32 %v5917, 1.0
        %v6046 = vadd.f32 %v5918, 1.0
        %v6047 = vadd.f32 %v5919, 1.0
        %v6048 = vadd.f32 %v5920, 1.0
        %v6049 = vadd.f32 %v5921, 1.0
        %v6050 = vadd.f32 %v5922, 1.0
        %v6051 = vadd.f32 %v5923, 1.0
        %v6052 = vadd.f32 %v5924, 1.0
        %v6053 = vadd.f32 %v5925, 1.0
        %v6054 = vadd.f32 %v5926, 1.0
        %v6055 = vadd.f32 %v5927, 1.0
        %v6056 = vadd.f32 %v5928, 1.0
        %v6057 = vadd.f32 %v5929, 1.0
        %v6058 = vadd.f32 %v5930, 1.0
        %v6059 = vadd.f32 %v5931, 1.0
        %v6060 = vadd.f32 %v5932, 1.0
        %v6061 = vadd.f32 %v5933, 1.0
        %v6062 = vadd.f32 %v5934, 1.0
        %v6063 = vadd.f32 %v5935, 1.0
        %v6064 = vadd.f32 %v5936, 1.0
        %v6065 = vadd.f32 %v5937, 1.0
        %v6066 = vadd.f32 %v5938, 1.0
        %v6067 = vadd.f32 %v5939, 1.0
        %v6068 = vadd.f32 %v5940, 1.0
        %v6069 = vadd.f32 %v5941, 1.0
        %v6070 = vadd.f32 %v5942, 1.0
        %v6071 = vadd.f32 %v5943, 1.0
        %v6072 = vadd.f32 %v5944, 1.0
        %v6073 = vadd.f32 %v5945, 1.0
        %v6074 = vadd.f32 %v5946, 1.0
        %v6075 = vadd.f32 %v5947, 1.0
        %v6076 = vadd.f32 %v5948, 1.0
        %v6077 = vadd.f32 %v5949, 1.0
        %v6078 = vadd.f32 %v5950, 1.0
        %v6079 = vadd.f32 %v5951, 1.0
        %v6080 = vadd.f32 %v5952, 1.0
        %v6081 = vadd.f32 %v5953, 1.0
        %v6082 = vadd.f32 %v5954, 1.0
        %v6083 = vadd.f32 %v5955, 1.0
        %v6084 = vadd.f32 %v5956, 1.0
        %v6085 = vadd.f32 %v5957, 1.0
        %v6086 = vadd.f32 %v5958, 1.0
        %v6087 = vadd.f32 %v5959, 1.0
        %v6088 = vadd.f32 %v5960, 1.0
        %v6089 = vadd.f32 %v5961, 1.0
        %v6090 = vadd.f32 %v5962, 1.0
        %v6091 = vadd.f32 %v5963, 1.0
        %v6092 = vadd.f32 %v5964, 1.0
        %v6093 = vadd.f32 %v5965, 1.0
        %v6094 = vadd.f32 %v5966, 1.0
        %v6095 = vadd.f32 %v5967, 1.0
        %v6096 = vadd.f32 %v5968, 1.0
        %v6097 = vadd.f32 %v5969, 1.0
        %v6098 = vadd.f32 %v5970, 1.0
        %v6099 = vadd.f32 %v5971, 1.0
        %v6100 = vadd.f32 %v5972, 1.0
        %v6101 = vadd.f32 %v5973, 1.0
        %v6102 = vadd.f32 %v5974, 1.0
        %v6103 = vadd.f32 %v5975, 1.0
        %v6104 = vadd.f32 %v5976, 1.0
        %v6105 = vadd.f32 %v5977, 1.0
        %v6106 = vadd.f32 %v5978, 1.0
        %v6107 = vmul.f32 %v5595, %v5979
        %v6108 = vmul.f32 %v5596, %v5980
        %v6109 = vmul.f32 %v5597, %v5981
        %v6110 = vmul.f32 %v5598, %v5982
        %v6111 = vmul.f32 %v5599, %v5983
        %v6112 = vmul.f32 %v5600, %v5984
        %v6113 = vmul.f32 %v5601, %v5985
        %v6114 = vmul.f32 %v5602, %v5986
        %v6115 = vmul.f32 %v5603, %v5987
        %v6116 = vmul.f32 %v5604, %v5988
        %v6117 = vmul.f32 %v5605, %v5989
        %v6118 = vmul.f32 %v5606, %v5990
        %v6119 = vmul.f32 %v5607, %v5991
        %v6120 = vmul.f32 %v5608, %v5992
        %v6121 = vmul.f32 %v5609, %v5993
        %v6122 = vmul.f32 %v5610, %v5994
        %v6123 = vmul.f32 %v5611, %v5995
        %v6124 = vmul.f32 %v5612, %v5996
        %v6125 = vmul.f32 %v5613, %v5997
        %v6126 = vmul.f32 %v5614, %v5998
        %v6127 = vmul.f32 %v5615, %v5999
        %v6128 = vmul.f32 %v5616, %v6000
        %v6129 = vmul.f32 %v5617, %v6001
        %v6130 = vmul.f32 %v5618, %v6002
        %v6131 = vmul.f32 %v5619, %v6003
        %v6132 = vmul.f32 %v5620, %v6004
        %v6133 = vmul.f32 %v5621, %v6005
        %v6134 = vmul.f32 %v5622, %v6006
        %v6135 = vmul.f32 %v5623, %v6007
        %v6136 = vmul.f32 %v5624, %v6008
        %v6137 = vmul.f32 %v5625, %v6009
        %v6138 = vmul.f32 %v5626, %v6010
        %v6139 = vmul.f32 %v5627, %v6011
        %v6140 = vmul.f32 %v5628, %v6012
        %v6141 = vmul.f32 %v5629, %v6013
        %v6142 = vmul.f32 %v5630, %v6014
        %v6143 = vmul.f32 %v5631, %v6015
        %v6144 = vmul.f32 %v5632, %v6016
        %v6145 = vmul.f32 %v5633, %v6017
        %v6146 = vmul.f32 %v5634, %v6018
        %v6147 = vmul.f32 %v5635, %v6019
        %v6148 = vmul.f32 %v5636, %v6020
        %v6149 = vmul.f32 %v5637, %v6021
        %v6150 = vmul.f32 %v5638, %v6022
        %v6151 = vmul.f32 %v5639, %v6023
        %v6152 = vmul.f32 %v5640, %v6024
        %v6153 = vmul.f32 %v5641, %v6025
        %v6154 = vmul.f32 %v5642, %v6026
        %v6155 = vmul.f32 %v5643, %v6027
        %v6156 = vmul.f32 %v5644, %v6028
        %v6157 = vmul.f32 %v5645, %v6029
        %v6158 = vmul.f32 %v5646, %v6030
        %v6159 = vmul.f32 %v5647, %v6031
        %v6160 = vmul.f32 %v5648, %v6032
        %v6161 = vmul.f32 %v5649, %v6033
        %v6162 = vmul.f32 %v5650, %v6034
        %v6163 = vmul.f32 %v5651, %v6035
        %v6164 = vmul.f32 %v5652, %v6036
        %v6165 = vmul.f32 %v5653, %v6037
        %v6166 = vmul.f32 %v5654, %v6038
        %v6167 = vmul.f32 %v5655, %v6039
        %v6168 = vmul.f32 %v5656, %v6040
        %v6169 = vmul.f32 %v5657, %v6041
        %v6170 = vmul.f32 %v5658, %v6042
        %v6171 = vmul.f32 %v5659, %v6043
        %v6172 = vmul.f32 %v5660, %v6044
        %v6173 = vmul.f32 %v5661, %v6045
        %v6174 = vmul.f32 %v5662, %v6046
        %v6175 = vmul.f32 %v5663, %v6047
        %v6176 = vmul.f32 %v5664, %v6048
        %v6177 = vmul.f32 %v5665, %v6049
        %v6178 = vmul.f32 %v5666, %v6050
        %v6179 = vmul.f32 %v5667, %v6051
        %v6180 = vmul.f32 %v5668, %v6052
        %v6181 = vmul.f32 %v5669, %v6053
        %v6182 = vmul.f32 %v5670, %v6054
        %v6183 = vmul.f32 %v5671, %v6055
        %v6184 = vmul.f32 %v5672, %v6056
        %v6185 = vmul.f32 %v5673, %v6057
        %v6186 = vmul.f32 %v5674, %v6058
        %v6187 = vmul.f32 %v5675, %v6059
        %v6188 = vmul.f32 %v5676, %v6060
        %v6189 = vmul.f32 %v5677, %v6061
        %v6190 = vmul.f32 %v5678, %v6062
        %v6191 = vmul.f32 %v5679, %v6063
        %v6192 = vmul.f32 %v5680, %v6064
        %v6193 = vmul.f32 %v5681, %v6065
        %v6194 = vmul.f32 %v5682, %v6066
        %v6195 = vmul.f32 %v5683, %v6067
        %v6196 = vmul.f32 %v5684, %v6068
        %v6197 = vmul.f32 %v5685, %v6069
        %v6198 = vmul.f32 %v5686, %v6070
        %v6199 = vmul.f32 %v5687, %v6071
        %v6200 = vmul.f32 %v5688, %v6072
        %v6201 = vmul.f32 %v5689, %v6073
        %v6202 = vmul.f32 %v5690, %v6074
        %v6203 = vmul.f32 %v5691, %v6075
        %v6204 = vmul.f32 %v5692, %v6076
        %v6205 = vmul.f32 %v5693, %v6077
        %v6206 = vmul.f32 %v5694, %v6078
        %v6207 = vmul.f32 %v5695, %v6079
        %v6208 = vmul.f32 %v5696, %v6080
        %v6209 = vmul.f32 %v5697, %v6081
        %v6210 = vmul.f32 %v5698, %v6082
        %v6211 = vmul.f32 %v5699, %v6083
        %v6212 = vmul.f32 %v5700, %v6084
        %v6213 = vmul.f32 %v5701, %v6085
        %v6214 = vmul.f32 %v5702, %v6086
        %v6215 = vmul.f32 %v5703, %v6087
        %v6216 = vmul.f32 %v5704, %v6088
        %v6217 = vmul.f32 %v5705, %v6089
        %v6218 = vmul.f32 %v5706, %v6090
        %v6219 = vmul.f32 %v5707, %v6091
        %v6220 = vmul.f32 %v5708, %v6092
        %v6221 = vmul.f32 %v5709, %v6093
        %v6222 = vmul.f32 %v5710, %v6094
        %v6223 = vmul.f32 %v5711, %v6095
        %v6224 = vmul.f32 %v5712, %v6096
        %v6225 = vmul.f32 %v5713, %v6097
        %v6226 = vmul.f32 %v5714, %v6098
        %v6227 = vmul.f32 %v5715, %v6099
        %v6228 = vmul.f32 %v5716, %v6100
        %v6229 = vmul.f32 %v5717, %v6101
        %v6230 = vmul.f32 %v5718, %v6102
        %v6231 = vmul.f32 %v5719, %v6103
        %v6232 = vmul.f32 %v5720, %v6104
        %v6233 = vmul.f32 %v5721, %v6105
        %v6234 = vmul.f32 %v5722, %v6106
        %v6235 = vadd.f32 %v6107, %v6108
        %v6236 = vadd.f32 %v6235, %v6109
        %v6237 = vadd.f32 %v6236, %v6110
        %v6238 = vadd.f32 %v6237, %v6111
        %v6239 = vadd.f32 %v6238, %v6112
        %v6240 = vadd.f32 %v6239, %v6113
        %v6241 = vadd.f32 %v6240, %v6114
        %6242 = vadd.xlane.f32.xlu0 %v6241
        %v6243 = vpop.xlane.xlu0 %6242
        %v6244 = vadd.f32 %v6115, %v6116
        %v6245 = vadd.f32 %v6244, %v6117
        %v6246 = vadd.f32 %v6245, %v6118
        %v6247 = vadd.f32 %v6246, %v6119
        %v6248 = vadd.f32 %v6247, %v6120
        %v6249 = vadd.f32 %v6248, %v6121
        %v6250 = vadd.f32 %v6249, %v6122
        %6251 = vadd.xlane.f32.xlu0 %v6250
        %v6252 = vpop.xlane.xlu0 %6251
        %v6253 = vadd.f32 %v6123, %v6124
        %v6254 = vadd.f32 %v6253, %v6125
        %v6255 = vadd.f32 %v6254, %v6126
        %v6256 = vadd.f32 %v6255, %v6127
        %v6257 = vadd.f32 %v6256, %v6128
        %v6258 = vadd.f32 %v6257, %v6129
        %v6259 = vadd.f32 %v6258, %v6130
        %6260 = vadd.xlane.f32.xlu0 %v6259
        %v6261 = vpop.xlane.xlu0 %6260
        %v6262 = vadd.f32 %v6131, %v6132
        %v6263 = vadd.f32 %v6262, %v6133
        %v6264 = vadd.f32 %v6263, %v6134
        %v6265 = vadd.f32 %v6264, %v6135
        %v6266 = vadd.f32 %v6265, %v6136
        %v6267 = vadd.f32 %v6266, %v6137
        %v6268 = vadd.f32 %v6267, %v6138
        %6269 = vadd.xlane.f32.xlu0 %v6268
        %v6270 = vpop.xlane.xlu0 %6269
        %v6271 = vadd.f32 %v6139, %v6140
        %v6272 = vadd.f32 %v6271, %v6141
        %v6273 = vadd.f32 %v6272, %v6142
        %v6274 = vadd.f32 %v6273, %v6143
        %v6275 = vadd.f32 %v6274, %v6144
        %v6276 = vadd.f32 %v6275, %v6145
        %v6277 = vadd.f32 %v6276, %v6146
        %6278 = vadd.xlane.f32.xlu0 %v6277
        %v6279 = vpop.xlane.xlu0 %6278
        %v6280 = vadd.f32 %v6147, %v6148
        %v6281 = vadd.f32 %v6280, %v6149
        %v6282 = vadd.f32 %v6281, %v6150
        %v6283 = vadd.f32 %v6282, %v6151
        %v6284 = vadd.f32 %v6283, %v6152
        %v6285 = vadd.f32 %v6284, %v6153
        %v6286 = vadd.f32 %v6285, %v6154
        %6287 = vadd.xlane.f32.xlu0 %v6286
        %v6288 = vpop.xlane.xlu0 %6287
        %v6289 = vadd.f32 %v6155, %v6156
        %v6290 = vadd.f32 %v6289, %v6157
        %v6291 = vadd.f32 %v6290, %v6158
        %v6292 = vadd.f32 %v6291, %v6159
        %v6293 = vadd.f32 %v6292, %v6160
        %v6294 = vadd.f32 %v6293, %v6161
        %v6295 = vadd.f32 %v6294, %v6162
        %6296 = vadd.xlane.f32.xlu0 %v6295
        %v6297 = vpop.xlane.xlu0 %6296
        %v6298 = vadd.f32 %v6163, %v6164
        %v6299 = vadd.f32 %v6298, %v6165
        %v6300 = vadd.f32 %v6299, %v6166
        %v6301 = vadd.f32 %v6300, %v6167
        %v6302 = vadd.f32 %v6301, %v6168
        %v6303 = vadd.f32 %v6302, %v6169
        %v6304 = vadd.f32 %v6303, %v6170
        %6305 = vadd.xlane.f32.xlu0 %v6304
        %v6306 = vpop.xlane.xlu0 %6305
        %v6307 = vadd.f32 %v6171, %v6172
        %v6308 = vadd.f32 %v6307, %v6173
        %v6309 = vadd.f32 %v6308, %v6174
        %v6310 = vadd.f32 %v6309, %v6175
        %v6311 = vadd.f32 %v6310, %v6176
        %v6312 = vadd.f32 %v6311, %v6177
        %v6313 = vadd.f32 %v6312, %v6178
        %6314 = vadd.xlane.f32.xlu0 %v6313
        %v6315 = vpop.xlane.xlu0 %6314
        %v6316 = vadd.f32 %v6179, %v6180
        %v6317 = vadd.f32 %v6316, %v6181
        %v6318 = vadd.f32 %v6317, %v6182
        %v6319 = vadd.f32 %v6318, %v6183
        %v6320 = vadd.f32 %v6319, %v6184
        %v6321 = vadd.f32 %v6320, %v6185
        %v6322 = vadd.f32 %v6321, %v6186
        %6323 = vadd.xlane.f32.xlu0 %v6322
        %v6324 = vpop.xlane.xlu0 %6323
        %v6325 = vadd.f32 %v6187, %v6188
        %v6326 = vadd.f32 %v6325, %v6189
        %v6327 = vadd.f32 %v6326, %v6190
        %v6328 = vadd.f32 %v6327, %v6191
        %v6329 = vadd.f32 %v6328, %v6192
        %v6330 = vadd.f32 %v6329, %v6193
        %v6331 = vadd.f32 %v6330, %v6194
        %6332 = vadd.xlane.f32.xlu0 %v6331
        %v6333 = vpop.xlane.xlu0 %6332
        %v6334 = vadd.f32 %v6195, %v6196
        %v6335 = vadd.f32 %v6334, %v6197
        %v6336 = vadd.f32 %v6335, %v6198
        %v6337 = vadd.f32 %v6336, %v6199
        %v6338 = vadd.f32 %v6337, %v6200
        %v6339 = vadd.f32 %v6338, %v6201
        %v6340 = vadd.f32 %v6339, %v6202
        %6341 = vadd.xlane.f32.xlu0 %v6340
        %v6342 = vpop.xlane.xlu0 %6341
        %v6343 = vadd.f32 %v6203, %v6204
        %v6344 = vadd.f32 %v6343, %v6205
        %v6345 = vadd.f32 %v6344, %v6206
        %v6346 = vadd.f32 %v6345, %v6207
        %v6347 = vadd.f32 %v6346, %v6208
        %v6348 = vadd.f32 %v6347, %v6209
        %v6349 = vadd.f32 %v6348, %v6210
        %6350 = vadd.xlane.f32.xlu0 %v6349
        %v6351 = vpop.xlane.xlu0 %6350
        %v6352 = vadd.f32 %v6211, %v6212
        %v6353 = vadd.f32 %v6352, %v6213
        %v6354 = vadd.f32 %v6353, %v6214
        %v6355 = vadd.f32 %v6354, %v6215
        %v6356 = vadd.f32 %v6355, %v6216
        %v6357 = vadd.f32 %v6356, %v6217
        %v6358 = vadd.f32 %v6357, %v6218
        %6359 = vadd.xlane.f32.xlu0 %v6358
        %v6360 = vpop.xlane.xlu0 %6359
        %v6361 = vadd.f32 %v6219, %v6220
        %v6362 = vadd.f32 %v6361, %v6221
        %v6363 = vadd.f32 %v6362, %v6222
        %v6364 = vadd.f32 %v6363, %v6223
        %v6365 = vadd.f32 %v6364, %v6224
        %v6366 = vadd.f32 %v6365, %v6225
        %v6367 = vadd.f32 %v6366, %v6226
        %6368 = vadd.xlane.f32.xlu0 %v6367
        %v6369 = vpop.xlane.xlu0 %6368
        %v6370 = vadd.f32 %v6227, %v6228
        %v6371 = vadd.f32 %v6370, %v6229
        %v6372 = vadd.f32 %v6371, %v6230
        %v6373 = vadd.f32 %v6372, %v6231
        %v6374 = vadd.f32 %v6373, %v6232
        %v6375 = vadd.f32 %v6374, %v6233
        %v6376 = vadd.f32 %v6375, %v6234
        %6377 = vadd.xlane.f32.xlu0 %v6376
        %v6378 = vpop.xlane.xlu0 %6377
        %v6379 = vrcp.pop 1024.0
        %v6380 = vmul.f32 %v6243, %v6379
        %v6381 = vmul.f32 %v6252, %v6379
        %v6382 = vmul.f32 %v6261, %v6379
        %v6383 = vmul.f32 %v6270, %v6379
        %v6384 = vmul.f32 %v6279, %v6379
        %v6385 = vmul.f32 %v6288, %v6379
        %v6386 = vmul.f32 %v6297, %v6379
        %v6387 = vmul.f32 %v6306, %v6379
        %v6388 = vmul.f32 %v6315, %v6379
        %v6389 = vmul.f32 %v6324, %v6379
        %v6390 = vmul.f32 %v6333, %v6379
        %v6391 = vmul.f32 %v6342, %v6379
        %v6392 = vmul.f32 %v6351, %v6379
        %v6393 = vmul.f32 %v6360, %v6379
        %v6394 = vmul.f32 %v6369, %v6379
        %v6395 = vmul.f32 %v6378, %v6379
        %v6396 = vsub.f32 %v6107, %v6380
        %v6397 = vsub.f32 %v6108, %v6380
        %v6398 = vsub.f32 %v6109, %v6380
        %v6399 = vsub.f32 %v6110, %v6380
        %v6400 = vsub.f32 %v6111, %v6380
        %v6401 = vsub.f32 %v6112, %v6380
        %v6402 = vsub.f32 %v6113, %v6380
        %v6403 = vsub.f32 %v6114, %v6380
        %v6404 = vsub.f32 %v6115, %v6381
        %v6405 = vsub.f32 %v6116, %v6381
        %v6406 = vsub.f32 %v6117, %v6381
        %v6407 = vsub.f32 %v6118, %v6381
        %v6408 = vsub.f32 %v6119, %v6381
        %v6409 = vsub.f32 %v6120, %v6381
        %v6410 = vsub.f32 %v6121, %v6381
        %v6411 = vsub.f32 %v6122, %v6381
        %v6412 = vsub.f32 %v6123, %v6382
        %v6413 = vsub.f32 %v6124, %v6382
        %v6414 = vsub.f32 %v6125, %v6382
        %v6415 = vsub.f32 %v6126, %v6382
        %v6416 = vsub.f32 %v6127, %v6382
        %v6417 = vsub.f32 %v6128, %v6382
        %v6418 = vsub.f32 %v6129, %v6382
        %v6419 = vsub.f32 %v6130, %v6382
        %v6420 = vsub.f32 %v6131, %v6383
        %v6421 = vsub.f32 %v6132, %v6383
        %v6422 = vsub.f32 %v6133, %v6383
        %v6423 = vsub.f32 %v6134, %v6383
        %v6424 = vsub.f32 %v6135, %v6383
        %v6425 = vsub.f32 %v6136, %v6383
        %v6426 = vsub.f32 %v6137, %v6383
        %v6427 = vsub.f32 %v6138, %v6383
        %v6428 = vsub.f32 %v6139, %v6384
        %v6429 = vsub.f32 %v6140, %v6384
        %v6430 = vsub.f32 %v6141, %v6384
        %v6431 = vsub.f32 %v6142, %v6384
        %v6432 = vsub.f32 %v6143, %v6384
        %v6433 = vsub.f32 %v6144, %v6384
        %v6434 = vsub.f32 %v6145, %v6384
        %v6435 = vsub.f32 %v6146, %v6384
        %v6436 = vsub.f32 %v6147, %v6385
        %v6437 = vsub.f32 %v6148, %v6385
        %v6438 = vsub.f32 %v6149, %v6385
        %v6439 = vsub.f32 %v6150, %v6385
        %v6440 = vsub.f32 %v6151, %v6385
        %v6441 = vsub.f32 %v6152, %v6385
        %v6442 = vsub.f32 %v6153, %v6385
        %v6443 = vsub.f32 %v6154, %v6385
        %v6444 = vsub.f32 %v6155, %v6386
        %v6445 = vsub.f32 %v6156, %v6386
        %v6446 = vsub.f32 %v6157, %v6386
        %v6447 = vsub.f32 %v6158, %v6386
        %v6448 = vsub.f32 %v6159, %v6386
        %v6449 = vsub.f32 %v6160, %v6386
        %v6450 = vsub.f32 %v6161, %v6386
        %v6451 = vsub.f32 %v6162, %v6386
        %v6452 = vsub.f32 %v6163, %v6387
        %v6453 = vsub.f32 %v6164, %v6387
        %v6454 = vsub.f32 %v6165, %v6387
        %v6455 = vsub.f32 %v6166, %v6387
        %v6456 = vsub.f32 %v6167, %v6387
        %v6457 = vsub.f32 %v6168, %v6387
        %v6458 = vsub.f32 %v6169, %v6387
        %v6459 = vsub.f32 %v6170, %v6387
        %v6460 = vsub.f32 %v6171, %v6388
        %v6461 = vsub.f32 %v6172, %v6388
        %v6462 = vsub.f32 %v6173, %v6388
        %v6463 = vsub.f32 %v6174, %v6388
        %v6464 = vsub.f32 %v6175, %v6388
        %v6465 = vsub.f32 %v6176, %v6388
        %v6466 = vsub.f32 %v6177, %v6388
        %v6467 = vsub.f32 %v6178, %v6388
        %v6468 = vsub.f32 %v6179, %v6389
        %v6469 = vsub.f32 %v6180, %v6389
        %v6470 = vsub.f32 %v6181, %v6389
        %v6471 = vsub.f32 %v6182, %v6389
        %v6472 = vsub.f32 %v6183, %v6389
        %v6473 = vsub.f32 %v6184, %v6389
        %v6474 = vsub.f32 %v6185, %v6389
        %v6475 = vsub.f32 %v6186, %v6389
        %v6476 = vsub.f32 %v6187, %v6390
        %v6477 = vsub.f32 %v6188, %v6390
        %v6478 = vsub.f32 %v6189, %v6390
        %v6479 = vsub.f32 %v6190, %v6390
        %v6480 = vsub.f32 %v6191, %v6390
        %v6481 = vsub.f32 %v6192, %v6390
        %v6482 = vsub.f32 %v6193, %v6390
        %v6483 = vsub.f32 %v6194, %v6390
        %v6484 = vsub.f32 %v6195, %v6391
        %v6485 = vsub.f32 %v6196, %v6391
        %v6486 = vsub.f32 %v6197, %v6391
        %v6487 = vsub.f32 %v6198, %v6391
        %v6488 = vsub.f32 %v6199, %v6391
        %v6489 = vsub.f32 %v6200, %v6391
        %v6490 = vsub.f32 %v6201, %v6391
        %v6491 = vsub.f32 %v6202, %v6391
        %v6492 = vsub.f32 %v6203, %v6392
        %v6493 = vsub.f32 %v6204, %v6392
        %v6494 = vsub.f32 %v6205, %v6392
        %v6495 = vsub.f32 %v6206, %v6392
        %v6496 = vsub.f32 %v6207, %v6392
        %v6497 = vsub.f32 %v6208, %v6392
        %v6498 = vsub.f32 %v6209, %v6392
        %v6499 = vsub.f32 %v6210, %v6392
        %v6500 = vsub.f32 %v6211, %v6393
        %v6501 = vsub.f32 %v6212, %v6393
        %v6502 = vsub.f32 %v6213, %v6393
        %v6503 = vsub.f32 %v6214, %v6393
        %v6504 = vsub.f32 %v6215, %v6393
        %v6505 = vsub.f32 %v6216, %v6393
        %v6506 = vsub.f32 %v6217, %v6393
        %v6507 = vsub.f32 %v6218, %v6393
        %v6508 = vsub.f32 %v6219, %v6394
        %v6509 = vsub.f32 %v6220, %v6394
        %v6510 = vsub.f32 %v6221, %v6394
        %v6511 = vsub.f32 %v6222, %v6394
        %v6512 = vsub.f32 %v6223, %v6394
        %v6513 = vsub.f32 %v6224, %v6394
        %v6514 = vsub.f32 %v6225, %v6394
        %v6515 = vsub.f32 %v6226, %v6394
        %v6516 = vsub.f32 %v6227, %v6395
        %v6517 = vsub.f32 %v6228, %v6395
        %v6518 = vsub.f32 %v6229, %v6395
        %v6519 = vsub.f32 %v6230, %v6395
        %v6520 = vsub.f32 %v6231, %v6395
        %v6521 = vsub.f32 %v6232, %v6395
        %v6522 = vsub.f32 %v6233, %v6395
        %v6523 = vsub.f32 %v6234, %v6395
        %v6524 = vmul.f32 %v6396, %v6396
        %v6525 = vmul.f32 %v6397, %v6397
        %v6526 = vmul.f32 %v6398, %v6398
        %v6527 = vmul.f32 %v6399, %v6399
        %v6528 = vmul.f32 %v6400, %v6400
        %v6529 = vmul.f32 %v6401, %v6401
        %v6530 = vmul.f32 %v6402, %v6402
        %v6531 = vmul.f32 %v6403, %v6403
        %v6532 = vmul.f32 %v6404, %v6404
        %v6533 = vmul.f32 %v6405, %v6405
        %v6534 = vmul.f32 %v6406, %v6406
        %v6535 = vmul.f32 %v6407, %v6407
        %v6536 = vmul.f32 %v6408, %v6408
        %v6537 = vmul.f32 %v6409, %v6409
        %v6538 = vmul.f32 %v6410, %v6410
        %v6539 = vmul.f32 %v6411, %v6411
        %v6540 = vmul.f32 %v6412, %v6412
        %v6541 = vmul.f32 %v6413, %v6413
        %v6542 = vmul.f32 %v6414, %v6414
        %v6543 = vmul.f32 %v6415, %v6415
        %v6544 = vmul.f32 %v6416, %v6416
        %v6545 = vmul.f32 %v6417, %v6417
        %v6546 = vmul.f32 %v6418, %v6418
        %v6547 = vmul.f32 %v6419, %v6419
        %v6548 = vmul.f32 %v6420, %v6420
        %v6549 = vmul.f32 %v6421, %v6421
        %v6550 = vmul.f32 %v6422, %v6422
        %v6551 = vmul.f32 %v6423, %v6423
        %v6552 = vmul.f32 %v6424, %v6424
        %v6553 = vmul.f32 %v6425, %v6425
        %v6554 = vmul.f32 %v6426, %v6426
        %v6555 = vmul.f32 %v6427, %v6427
        %v6556 = vmul.f32 %v6428, %v6428
        %v6557 = vmul.f32 %v6429, %v6429
        %v6558 = vmul.f32 %v6430, %v6430
        %v6559 = vmul.f32 %v6431, %v6431
        %v6560 = vmul.f32 %v6432, %v6432
        %v6561 = vmul.f32 %v6433, %v6433
        %v6562 = vmul.f32 %v6434, %v6434
        %v6563 = vmul.f32 %v6435, %v6435
        %v6564 = vmul.f32 %v6436, %v6436
        %v6565 = vmul.f32 %v6437, %v6437
        %v6566 = vmul.f32 %v6438, %v6438
        %v6567 = vmul.f32 %v6439, %v6439
        %v6568 = vmul.f32 %v6440, %v6440
        %v6569 = vmul.f32 %v6441, %v6441
        %v6570 = vmul.f32 %v6442, %v6442
        %v6571 = vmul.f32 %v6443, %v6443
        %v6572 = vmul.f32 %v6444, %v6444
        %v6573 = vmul.f32 %v6445, %v6445
        %v6574 = vmul.f32 %v6446, %v6446
        %v6575 = vmul.f32 %v6447, %v6447
        %v6576 = vmul.f32 %v6448, %v6448
        %v6577 = vmul.f32 %v6449, %v6449
        %v6578 = vmul.f32 %v6450, %v6450
        %v6579 = vmul.f32 %v6451, %v6451
        %v6580 = vmul.f32 %v6452, %v6452
        %v6581 = vmul.f32 %v6453, %v6453
        %v6582 = vmul.f32 %v6454, %v6454
        %v6583 = vmul.f32 %v6455, %v6455
        %v6584 = vmul.f32 %v6456, %v6456
        %v6585 = vmul.f32 %v6457, %v6457
        %v6586 = vmul.f32 %v6458, %v6458
        %v6587 = vmul.f32 %v6459, %v6459
        %v6588 = vmul.f32 %v6460, %v6460
        %v6589 = vmul.f32 %v6461, %v6461
        %v6590 = vmul.f32 %v6462, %v6462
        %v6591 = vmul.f32 %v6463, %v6463
        %v6592 = vmul.f32 %v6464, %v6464
        %v6593 = vmul.f32 %v6465, %v6465
        %v6594 = vmul.f32 %v6466, %v6466
        %v6595 = vmul.f32 %v6467, %v6467
        %v6596 = vmul.f32 %v6468, %v6468
        %v6597 = vmul.f32 %v6469, %v6469
        %v6598 = vmul.f32 %v6470, %v6470
        %v6599 = vmul.f32 %v6471, %v6471
        %v6600 = vmul.f32 %v6472, %v6472
        %v6601 = vmul.f32 %v6473, %v6473
        %v6602 = vmul.f32 %v6474, %v6474
        %v6603 = vmul.f32 %v6475, %v6475
        %v6604 = vmul.f32 %v6476, %v6476
        %v6605 = vmul.f32 %v6477, %v6477
        %v6606 = vmul.f32 %v6478, %v6478
        %v6607 = vmul.f32 %v6479, %v6479
        %v6608 = vmul.f32 %v6480, %v6480
        %v6609 = vmul.f32 %v6481, %v6481
        %v6610 = vmul.f32 %v6482, %v6482
        %v6611 = vmul.f32 %v6483, %v6483
        %v6612 = vmul.f32 %v6484, %v6484
        %v6613 = vmul.f32 %v6485, %v6485
        %v6614 = vmul.f32 %v6486, %v6486
        %v6615 = vmul.f32 %v6487, %v6487
        %v6616 = vmul.f32 %v6488, %v6488
        %v6617 = vmul.f32 %v6489, %v6489
        %v6618 = vmul.f32 %v6490, %v6490
        %v6619 = vmul.f32 %v6491, %v6491
        %v6620 = vmul.f32 %v6492, %v6492
        %v6621 = vmul.f32 %v6493, %v6493
        %v6622 = vmul.f32 %v6494, %v6494
        %v6623 = vmul.f32 %v6495, %v6495
        %v6624 = vmul.f32 %v6496, %v6496
        %v6625 = vmul.f32 %v6497, %v6497
        %v6626 = vmul.f32 %v6498, %v6498
        %v6627 = vmul.f32 %v6499, %v6499
        %v6628 = vmul.f32 %v6500, %v6500
        %v6629 = vmul.f32 %v6501, %v6501
        %v6630 = vmul.f32 %v6502, %v6502
        %v6631 = vmul.f32 %v6503, %v6503
        %v6632 = vmul.f32 %v6504, %v6504
        %v6633 = vmul.f32 %v6505, %v6505
        %v6634 = vmul.f32 %v6506, %v6506
        %v6635 = vmul.f32 %v6507, %v6507
        %v6636 = vmul.f32 %v6508, %v6508
        %v6637 = vmul.f32 %v6509, %v6509
        %v6638 = vmul.f32 %v6510, %v6510
        %v6639 = vmul.f32 %v6511, %v6511
        %v6640 = vmul.f32 %v6512, %v6512
        %v6641 = vmul.f32 %v6513, %v6513
        %v6642 = vmul.f32 %v6514, %v6514
        %v6643 = vmul.f32 %v6515, %v6515
        %v6644 = vmul.f32 %v6516, %v6516
        %v6645 = vmul.f32 %v6517, %v6517
        %v6646 = vmul.f32 %v6518, %v6518
        %v6647 = vmul.f32 %v6519, %v6519
        %v6648 = vmul.f32 %v6520, %v6520
        %v6649 = vmul.f32 %v6521, %v6521
        %v6650 = vmul.f32 %v6522, %v6522
        %v6651 = vmul.f32 %v6523, %v6523
        %v6652 = vadd.f32 %v6524, %v6525
        %v6653 = vadd.f32 %v6652, %v6526
        %v6654 = vadd.f32 %v6653, %v6527
        %v6655 = vadd.f32 %v6654, %v6528
        %v6656 = vadd.f32 %v6655, %v6529
        %v6657 = vadd.f32 %v6656, %v6530
        %v6658 = vadd.f32 %v6657, %v6531
        %6659 = vadd.xlane.f32.xlu0 %v6658
        %v6660 = vpop.xlane.xlu0 %6659
        %v6661 = vadd.f32 %v6532, %v6533
        %v6662 = vadd.f32 %v6661, %v6534
        %v6663 = vadd.f32 %v6662, %v6535
        %v6664 = vadd.f32 %v6663, %v6536
        %v6665 = vadd.f32 %v6664, %v6537
        %v6666 = vadd.f32 %v6665, %v6538
        %v6667 = vadd.f32 %v6666, %v6539
        %6668 = vadd.xlane.f32.xlu0 %v6667
        %v6669 = vpop.xlane.xlu0 %6668
        %v6670 = vadd.f32 %v6540, %v6541
        %v6671 = vadd.f32 %v6670, %v6542
        %v6672 = vadd.f32 %v6671, %v6543
        %v6673 = vadd.f32 %v6672, %v6544
        %v6674 = vadd.f32 %v6673, %v6545
        %v6675 = vadd.f32 %v6674, %v6546
        %v6676 = vadd.f32 %v6675, %v6547
        %6677 = vadd.xlane.f32.xlu0 %v6676
        %v6678 = vpop.xlane.xlu0 %6677
        %v6679 = vadd.f32 %v6548, %v6549
        %v6680 = vadd.f32 %v6679, %v6550
        %v6681 = vadd.f32 %v6680, %v6551
        %v6682 = vadd.f32 %v6681, %v6552
        %v6683 = vadd.f32 %v6682, %v6553
        %v6684 = vadd.f32 %v6683, %v6554
        %v6685 = vadd.f32 %v6684, %v6555
        %6686 = vadd.xlane.f32.xlu0 %v6685
        %v6687 = vpop.xlane.xlu0 %6686
        %v6688 = vadd.f32 %v6556, %v6557
        %v6689 = vadd.f32 %v6688, %v6558
        %v6690 = vadd.f32 %v6689, %v6559
        %v6691 = vadd.f32 %v6690, %v6560
        %v6692 = vadd.f32 %v6691, %v6561
        %v6693 = vadd.f32 %v6692, %v6562
        %v6694 = vadd.f32 %v6693, %v6563
        %6695 = vadd.xlane.f32.xlu0 %v6694
        %v6696 = vpop.xlane.xlu0 %6695
        %v6697 = vadd.f32 %v6564, %v6565
        %v6698 = vadd.f32 %v6697, %v6566
        %v6699 = vadd.f32 %v6698, %v6567
        %v6700 = vadd.f32 %v6699, %v6568
        %v6701 = vadd.f32 %v6700, %v6569
        %v6702 = vadd.f32 %v6701, %v6570
        %v6703 = vadd.f32 %v6702, %v6571
        %6704 = vadd.xlane.f32.xlu0 %v6703
        %v6705 = vpop.xlane.xlu0 %6704
        %v6706 = vadd.f32 %v6572, %v6573
        %v6707 = vadd.f32 %v6706, %v6574
        %v6708 = vadd.f32 %v6707, %v6575
        %v6709 = vadd.f32 %v6708, %v6576
        %v6710 = vadd.f32 %v6709, %v6577
        %v6711 = vadd.f32 %v6710, %v6578
        %v6712 = vadd.f32 %v6711, %v6579
        %6713 = vadd.xlane.f32.xlu0 %v6712
        %v6714 = vpop.xlane.xlu0 %6713
        %v6715 = vadd.f32 %v6580, %v6581
        %v6716 = vadd.f32 %v6715, %v6582
        %v6717 = vadd.f32 %v6716, %v6583
        %v6718 = vadd.f32 %v6717, %v6584
        %v6719 = vadd.f32 %v6718, %v6585
        %v6720 = vadd.f32 %v6719, %v6586
        %v6721 = vadd.f32 %v6720, %v6587
        %6722 = vadd.xlane.f32.xlu0 %v6721
        %v6723 = vpop.xlane.xlu0 %6722
        %v6724 = vadd.f32 %v6588, %v6589
        %v6725 = vadd.f32 %v6724, %v6590
        %v6726 = vadd.f32 %v6725, %v6591
        %v6727 = vadd.f32 %v6726, %v6592
        %v6728 = vadd.f32 %v6727, %v6593
        %v6729 = vadd.f32 %v6728, %v6594
        %v6730 = vadd.f32 %v6729, %v6595
        %6731 = vadd.xlane.f32.xlu0 %v6730
        %v6732 = vpop.xlane.xlu0 %6731
        %v6733 = vadd.f32 %v6596, %v6597
        %v6734 = vadd.f32 %v6733, %v6598
        %v6735 = vadd.f32 %v6734, %v6599
        %v6736 = vadd.f32 %v6735, %v6600
        %v6737 = vadd.f32 %v6736, %v6601
        %v6738 = vadd.f32 %v6737, %v6602
        %v6739 = vadd.f32 %v6738, %v6603
        %6740 = vadd.xlane.f32.xlu0 %v6739
        %v6741 = vpop.xlane.xlu0 %6740
        %v6742 = vadd.f32 %v6604, %v6605
        %v6743 = vadd.f32 %v6742, %v6606
        %v6744 = vadd.f32 %v6743, %v6607
        %v6745 = vadd.f32 %v6744, %v6608
        %v6746 = vadd.f32 %v6745, %v6609
        %v6747 = vadd.f32 %v6746, %v6610
        %v6748 = vadd.f32 %v6747, %v6611
        %6749 = vadd.xlane.f32.xlu0 %v6748
        %v6750 = vpop.xlane.xlu0 %6749
        %v6751 = vadd.f32 %v6612, %v6613
        %v6752 = vadd.f32 %v6751, %v6614
        %v6753 = vadd.f32 %v6752, %v6615
        %v6754 = vadd.f32 %v6753, %v6616
        %v6755 = vadd.f32 %v6754, %v6617
        %v6756 = vadd.f32 %v6755, %v6618
        %v6757 = vadd.f32 %v6756, %v6619
        %6758 = vadd.xlane.f32.xlu0 %v6757
        %v6759 = vpop.xlane.xlu0 %6758
        %v6760 = vadd.f32 %v6620, %v6621
        %v6761 = vadd.f32 %v6760, %v6622
        %v6762 = vadd.f32 %v6761, %v6623
        %v6763 = vadd.f32 %v6762, %v6624
        %v6764 = vadd.f32 %v6763, %v6625
        %v6765 = vadd.f32 %v6764, %v6626
        %v6766 = vadd.f32 %v6765, %v6627
        %6767 = vadd.xlane.f32.xlu0 %v6766
        %v6768 = vpop.xlane.xlu0 %6767
        %v6769 = vadd.f32 %v6628, %v6629
        %v6770 = vadd.f32 %v6769, %v6630
        %v6771 = vadd.f32 %v6770, %v6631
        %v6772 = vadd.f32 %v6771, %v6632
        %v6773 = vadd.f32 %v6772, %v6633
        %v6774 = vadd.f32 %v6773, %v6634
        %v6775 = vadd.f32 %v6774, %v6635
        %6776 = vadd.xlane.f32.xlu0 %v6775
        %v6777 = vpop.xlane.xlu0 %6776
        %v6778 = vadd.f32 %v6636, %v6637
        %v6779 = vadd.f32 %v6778, %v6638
        %v6780 = vadd.f32 %v6779, %v6639
        %v6781 = vadd.f32 %v6780, %v6640
        %v6782 = vadd.f32 %v6781, %v6641
        %v6783 = vadd.f32 %v6782, %v6642
        %v6784 = vadd.f32 %v6783, %v6643
        %6785 = vadd.xlane.f32.xlu0 %v6784
        %v6786 = vpop.xlane.xlu0 %6785
        %v6787 = vadd.f32 %v6644, %v6645
        %v6788 = vadd.f32 %v6787, %v6646
        %v6789 = vadd.f32 %v6788, %v6647
        %v6790 = vadd.f32 %v6789, %v6648
        %v6791 = vadd.f32 %v6790, %v6649
        %v6792 = vadd.f32 %v6791, %v6650
        %v6793 = vadd.f32 %v6792, %v6651
        %6794 = vadd.xlane.f32.xlu0 %v6793
        %v6795 = vpop.xlane.xlu0 %6794
        %v6796 = vmul.f32 %v6660, %v6379
        %v6797 = vmul.f32 %v6669, %v6379
        %v6798 = vmul.f32 %v6678, %v6379
        %v6799 = vmul.f32 %v6687, %v6379
        %v6800 = vmul.f32 %v6696, %v6379
        %v6801 = vmul.f32 %v6705, %v6379
        %v6802 = vmul.f32 %v6714, %v6379
        %v6803 = vmul.f32 %v6723, %v6379
        %v6804 = vmul.f32 %v6732, %v6379
        %v6805 = vmul.f32 %v6741, %v6379
        %v6806 = vmul.f32 %v6750, %v6379
        %v6807 = vmul.f32 %v6759, %v6379
        %v6808 = vmul.f32 %v6768, %v6379
        %v6809 = vmul.f32 %v6777, %v6379
        %v6810 = vmul.f32 %v6786, %v6379
        %v6811 = vmul.f32 %v6795, %v6379
        %v6812 = vadd.f32 %v6796, 1e-05
        %v6813 = vadd.f32 %v6797, 1e-05
        %v6814 = vadd.f32 %v6798, 1e-05
        %v6815 = vadd.f32 %v6799, 1e-05
        %v6816 = vadd.f32 %v6800, 1e-05
        %v6817 = vadd.f32 %v6801, 1e-05
        %v6818 = vadd.f32 %v6802, 1e-05
        %v6819 = vadd.f32 %v6803, 1e-05
        %v6820 = vadd.f32 %v6804, 1e-05
        %v6821 = vadd.f32 %v6805, 1e-05
        %v6822 = vadd.f32 %v6806, 1e-05
        %v6823 = vadd.f32 %v6807, 1e-05
        %v6824 = vadd.f32 %v6808, 1e-05
        %v6825 = vadd.f32 %v6809, 1e-05
        %v6826 = vadd.f32 %v6810, 1e-05
        %v6827 = vadd.f32 %v6811, 1e-05
        %v6828 = vrsqrt.pop %v6812
        %v6829 = vrsqrt.pop %v6813
        %v6830 = vrsqrt.pop %v6814
        %v6831 = vrsqrt.pop %v6815
        %v6832 = vrsqrt.pop %v6816
        %v6833 = vrsqrt.pop %v6817
        %v6834 = vrsqrt.pop %v6818
        %v6835 = vrsqrt.pop %v6819
        %v6836 = vrsqrt.pop %v6820
        %v6837 = vrsqrt.pop %v6821
        %v6838 = vrsqrt.pop %v6822
        %v6839 = vrsqrt.pop %v6823
        %v6840 = vrsqrt.pop %v6824
        %v6841 = vrsqrt.pop %v6825
        %v6842 = vrsqrt.pop %v6826
        %v6843 = vrsqrt.pop %v6827
        %v6844 = vld [vmem:[#allocation8] sm:$0xff]
        %v6846 = vlaneseq
        %v6847 = vshrl.u32 %v6846, 7
        %v6848 = vsub.s32 0, %v6847
        %v6849 = vrot.slane %v6844, %v6848
        %v6850 = vlaneseq
        %v6851 = vshrl.u32 %v6850, 7
        %v6852 = vsub.s32 1, %v6851
        %v6853 = vrot.slane %v6844, %v6852
        %v6854 = vlaneseq
        %v6855 = vshrl.u32 %v6854, 7
        %v6856 = vsub.s32 2, %v6855
        %v6857 = vrot.slane %v6844, %v6856
        %v6858 = vlaneseq
        %v6859 = vshrl.u32 %v6858, 7
        %v6860 = vsub.s32 3, %v6859
        %v6861 = vrot.slane %v6844, %v6860
        %v6862 = vlaneseq
        %v6863 = vshrl.u32 %v6862, 7
        %v6864 = vsub.s32 4, %v6863
        %v6865 = vrot.slane %v6844, %v6864
        %v6866 = vlaneseq
        %v6867 = vshrl.u32 %v6866, 7
        %v6868 = vsub.s32 5, %v6867
        %v6869 = vrot.slane %v6844, %v6868
        %v6870 = vlaneseq
        %v6871 = vshrl.u32 %v6870, 7
        %v6872 = vsub.s32 6, %v6871
        %v6873 = vrot.slane %v6844, %v6872
        %v6874 = vlaneseq
        %v6875 = vshrl.u32 %v6874, 7
        %v6876 = vsub.s32 7, %v6875
        %v6877 = vrot.slane %v6844, %v6876
        %v6886 = vmul.f32 %v6396, %v6849
        %v6887 = vmul.f32 %v6397, %v6853
        %v6888 = vmul.f32 %v6398, %v6857
        %v6889 = vmul.f32 %v6399, %v6861
        %v6890 = vmul.f32 %v6400, %v6865
        %v6891 = vmul.f32 %v6401, %v6869
        %v6892 = vmul.f32 %v6402, %v6873
        %v6893 = vmul.f32 %v6403, %v6877
        %v6894 = vmul.f32 %v6404, %v6849
        %v6895 = vmul.f32 %v6405, %v6853
        %v6896 = vmul.f32 %v6406, %v6857
        %v6897 = vmul.f32 %v6407, %v6861
        %v6898 = vmul.f32 %v6408, %v6865
        %v6899 = vmul.f32 %v6409, %v6869
        %v6900 = vmul.f32 %v6410, %v6873
        %v6901 = vmul.f32 %v6411, %v6877
        %v6902 = vmul.f32 %v6412, %v6849
        %v6903 = vmul.f32 %v6413, %v6853
        %v6904 = vmul.f32 %v6414, %v6857
        %v6905 = vmul.f32 %v6415, %v6861
        %v6906 = vmul.f32 %v6416, %v6865
        %v6907 = vmul.f32 %v6417, %v6869
        %v6908 = vmul.f32 %v6418, %v6873
        %v6909 = vmul.f32 %v6419, %v6877
        %v6910 = vmul.f32 %v6420, %v6849
        %v6911 = vmul.f32 %v6421, %v6853
        %v6912 = vmul.f32 %v6422, %v6857
        %v6913 = vmul.f32 %v6423, %v6861
        %v6914 = vmul.f32 %v6424, %v6865
        %v6915 = vmul.f32 %v6425, %v6869
        %v6916 = vmul.f32 %v6426, %v6873
        %v6917 = vmul.f32 %v6427, %v6877
        %v6918 = vmul.f32 %v6428, %v6849
        %v6919 = vmul.f32 %v6429, %v6853
        %v6920 = vmul.f32 %v6430, %v6857
        %v6921 = vmul.f32 %v6431, %v6861
        %v6922 = vmul.f32 %v6432, %v6865
        %v6923 = vmul.f32 %v6433, %v6869
        %v6924 = vmul.f32 %v6434, %v6873
        %v6925 = vmul.f32 %v6435, %v6877
        %v6926 = vmul.f32 %v6436, %v6849
        %v6927 = vmul.f32 %v6437, %v6853
        %v6928 = vmul.f32 %v6438, %v6857
        %v6929 = vmul.f32 %v6439, %v6861
        %v6930 = vmul.f32 %v6440, %v6865
        %v6931 = vmul.f32 %v6441, %v6869
        %v6932 = vmul.f32 %v6442, %v6873
        %v6933 = vmul.f32 %v6443, %v6877
        %v6934 = vmul.f32 %v6444, %v6849
        %v6935 = vmul.f32 %v6445, %v6853
        %v6936 = vmul.f32 %v6446, %v6857
        %v6937 = vmul.f32 %v6447, %v6861
        %v6938 = vmul.f32 %v6448, %v6865
        %v6939 = vmul.f32 %v6449, %v6869
        %v6940 = vmul.f32 %v6450, %v6873
        %v6941 = vmul.f32 %v6451, %v6877
        %v6942 = vmul.f32 %v6452, %v6849
        %v6943 = vmul.f32 %v6453, %v6853
        %v6944 = vmul.f32 %v6454, %v6857
        %v6945 = vmul.f32 %v6455, %v6861
        %v6946 = vmul.f32 %v6456, %v6865
        %v6947 = vmul.f32 %v6457, %v6869
        %v6948 = vmul.f32 %v6458, %v6873
        %v6949 = vmul.f32 %v6459, %v6877
        %v6950 = vmul.f32 %v6460, %v6849
        %v6951 = vmul.f32 %v6461, %v6853
        %v6952 = vmul.f32 %v6462, %v6857
        %v6953 = vmul.f32 %v6463, %v6861
        %v6954 = vmul.f32 %v6464, %v6865
        %v6955 = vmul.f32 %v6465, %v6869
        %v6956 = vmul.f32 %v6466, %v6873
        %v6957 = vmul.f32 %v6467, %v6877
        %v6958 = vmul.f32 %v6468, %v6849
        %v6959 = vmul.f32 %v6469, %v6853
        %v6960 = vmul.f32 %v6470, %v6857
        %v6961 = vmul.f32 %v6471, %v6861
        %v6962 = vmul.f32 %v6472, %v6865
        %v6963 = vmul.f32 %v6473, %v6869
        %v6964 = vmul.f32 %v6474, %v6873
        %v6965 = vmul.f32 %v6475, %v6877
        %v6966 = vmul.f32 %v6476, %v6849
        %v6967 = vmul.f32 %v6477, %v6853
        %v6968 = vmul.f32 %v6478, %v6857
        %v6969 = vmul.f32 %v6479, %v6861
        %v6970 = vmul.f32 %v6480, %v6865
        %v6971 = vmul.f32 %v6481, %v6869
        %v6972 = vmul.f32 %v6482, %v6873
        %v6973 = vmul.f32 %v6483, %v6877
        %v6974 = vmul.f32 %v6484, %v6849
        %v6975 = vmul.f32 %v6485, %v6853
        %v6976 = vmul.f32 %v6486, %v6857
        %v6977 = vmul.f32 %v6487, %v6861
        %v6978 = vmul.f32 %v6488, %v6865
        %v6979 = vmul.f32 %v6489, %v6869
        %v6980 = vmul.f32 %v6490, %v6873
        %v6981 = vmul.f32 %v6491, %v6877
        %v6982 = vmul.f32 %v6492, %v6849
        %v6983 = vmul.f32 %v6493, %v6853
        %v6984 = vmul.f32 %v6494, %v6857
        %v6985 = vmul.f32 %v6495, %v6861
        %v6986 = vmul.f32 %v6496, %v6865
        %v6987 = vmul.f32 %v6497, %v6869
        %v6988 = vmul.f32 %v6498, %v6873
        %v6989 = vmul.f32 %v6499, %v6877
        %v6990 = vmul.f32 %v6500, %v6849
        %v6991 = vmul.f32 %v6501, %v6853
        %v6992 = vmul.f32 %v6502, %v6857
        %v6993 = vmul.f32 %v6503, %v6861
        %v6994 = vmul.f32 %v6504, %v6865
        %v6995 = vmul.f32 %v6505, %v6869
        %v6996 = vmul.f32 %v6506, %v6873
        %v6997 = vmul.f32 %v6507, %v6877
        %v6998 = vmul.f32 %v6508, %v6849
        %v6999 = vmul.f32 %v6509, %v6853
        %v7000 = vmul.f32 %v6510, %v6857
        %v7001 = vmul.f32 %v6511, %v6861
        %v7002 = vmul.f32 %v6512, %v6865
        %v7003 = vmul.f32 %v6513, %v6869
        %v7004 = vmul.f32 %v6514, %v6873
        %v7005 = vmul.f32 %v6515, %v6877
        %v7006 = vmul.f32 %v6516, %v6849
        %v7007 = vmul.f32 %v6517, %v6853
        %v7008 = vmul.f32 %v6518, %v6857
        %v7009 = vmul.f32 %v6519, %v6861
        %v7010 = vmul.f32 %v6520, %v6865
        %v7011 = vmul.f32 %v6521, %v6869
        %v7012 = vmul.f32 %v6522, %v6873
        %v7013 = vmul.f32 %v6523, %v6877
        %v7014 = vadd.f32 %v6886, %v6887
        %v7015 = vadd.f32 %v7014, %v6888
        %v7016 = vadd.f32 %v7015, %v6889
        %v7017 = vadd.f32 %v7016, %v6890
        %v7018 = vadd.f32 %v7017, %v6891
        %v7019 = vadd.f32 %v7018, %v6892
        %v7020 = vadd.f32 %v7019, %v6893
        %7021 = vadd.xlane.f32.xlu0 %v7020
        %v7022 = vpop.xlane.xlu0 %7021
        %v7023 = vadd.f32 %v6894, %v6895
        %v7024 = vadd.f32 %v7023, %v6896
        %v7025 = vadd.f32 %v7024, %v6897
        %v7026 = vadd.f32 %v7025, %v6898
        %v7027 = vadd.f32 %v7026, %v6899
        %v7028 = vadd.f32 %v7027, %v6900
        %v7029 = vadd.f32 %v7028, %v6901
        %7030 = vadd.xlane.f32.xlu0 %v7029
        %v7031 = vpop.xlane.xlu0 %7030
        %v7032 = vadd.f32 %v6902, %v6903
        %v7033 = vadd.f32 %v7032, %v6904
        %v7034 = vadd.f32 %v7033, %v6905
        %v7035 = vadd.f32 %v7034, %v6906
        %v7036 = vadd.f32 %v7035, %v6907
        %v7037 = vadd.f32 %v7036, %v6908
        %v7038 = vadd.f32 %v7037, %v6909
        %7039 = vadd.xlane.f32.xlu0 %v7038
        %v7040 = vpop.xlane.xlu0 %7039
        %v7041 = vadd.f32 %v6910, %v6911
        %v7042 = vadd.f32 %v7041, %v6912
        %v7043 = vadd.f32 %v7042, %v6913
        %v7044 = vadd.f32 %v7043, %v6914
        %v7045 = vadd.f32 %v7044, %v6915
        %v7046 = vadd.f32 %v7045, %v6916
        %v7047 = vadd.f32 %v7046, %v6917
        %7048 = vadd.xlane.f32.xlu0 %v7047
        %v7049 = vpop.xlane.xlu0 %7048
        %v7050 = vadd.f32 %v6918, %v6919
        %v7051 = vadd.f32 %v7050, %v6920
        %v7052 = vadd.f32 %v7051, %v6921
        %v7053 = vadd.f32 %v7052, %v6922
        %v7054 = vadd.f32 %v7053, %v6923
        %v7055 = vadd.f32 %v7054, %v6924
        %v7056 = vadd.f32 %v7055, %v6925
        %7057 = vadd.xlane.f32.xlu0 %v7056
        %v7058 = vpop.xlane.xlu0 %7057
        %v7059 = vadd.f32 %v6926, %v6927
        %v7060 = vadd.f32 %v7059, %v6928
        %v7061 = vadd.f32 %v7060, %v6929
        %v7062 = vadd.f32 %v7061, %v6930
        %v7063 = vadd.f32 %v7062, %v6931
        %v7064 = vadd.f32 %v7063, %v6932
        %v7065 = vadd.f32 %v7064, %v6933
        %7066 = vadd.xlane.f32.xlu0 %v7065
        %v7067 = vpop.xlane.xlu0 %7066
        %v7068 = vadd.f32 %v6934, %v6935
        %v7069 = vadd.f32 %v7068, %v6936
        %v7070 = vadd.f32 %v7069, %v6937
        %v7071 = vadd.f32 %v7070, %v6938
        %v7072 = vadd.f32 %v7071, %v6939
        %v7073 = vadd.f32 %v7072, %v6940
        %v7074 = vadd.f32 %v7073, %v6941
        %7075 = vadd.xlane.f32.xlu0 %v7074
        %v7076 = vpop.xlane.xlu0 %7075
        %v7077 = vadd.f32 %v6942, %v6943
        %v7078 = vadd.f32 %v7077, %v6944
        %v7079 = vadd.f32 %v7078, %v6945
        %v7080 = vadd.f32 %v7079, %v6946
        %v7081 = vadd.f32 %v7080, %v6947
        %v7082 = vadd.f32 %v7081, %v6948
        %v7083 = vadd.f32 %v7082, %v6949
        %7084 = vadd.xlane.f32.xlu0 %v7083
        %v7085 = vpop.xlane.xlu0 %7084
        %v7086 = vadd.f32 %v6950, %v6951
        %v7087 = vadd.f32 %v7086, %v6952
        %v7088 = vadd.f32 %v7087, %v6953
        %v7089 = vadd.f32 %v7088, %v6954
        %v7090 = vadd.f32 %v7089, %v6955
        %v7091 = vadd.f32 %v7090, %v6956
        %v7092 = vadd.f32 %v7091, %v6957
        %7093 = vadd.xlane.f32.xlu0 %v7092
        %v7094 = vpop.xlane.xlu0 %7093
        %v7095 = vadd.f32 %v6958, %v6959
        %v7096 = vadd.f32 %v7095, %v6960
        %v7097 = vadd.f32 %v7096, %v6961
        %v7098 = vadd.f32 %v7097, %v6962
        %v7099 = vadd.f32 %v7098, %v6963
        %v7100 = vadd.f32 %v7099, %v6964
        %v7101 = vadd.f32 %v7100, %v6965
        %7102 = vadd.xlane.f32.xlu0 %v7101
        %v7103 = vpop.xlane.xlu0 %7102
        %v7104 = vadd.f32 %v6966, %v6967
        %v7105 = vadd.f32 %v7104, %v6968
        %v7106 = vadd.f32 %v7105, %v6969
        %v7107 = vadd.f32 %v7106, %v6970
        %v7108 = vadd.f32 %v7107, %v6971
        %v7109 = vadd.f32 %v7108, %v6972
        %v7110 = vadd.f32 %v7109, %v6973
        %7111 = vadd.xlane.f32.xlu0 %v7110
        %v7112 = vpop.xlane.xlu0 %7111
        %v7113 = vadd.f32 %v6974, %v6975
        %v7114 = vadd.f32 %v7113, %v6976
        %v7115 = vadd.f32 %v7114, %v6977
        %v7116 = vadd.f32 %v7115, %v6978
        %v7117 = vadd.f32 %v7116, %v6979
        %v7118 = vadd.f32 %v7117, %v6980
        %v7119 = vadd.f32 %v7118, %v6981
        %7120 = vadd.xlane.f32.xlu0 %v7119
        %v7121 = vpop.xlane.xlu0 %7120
        %v7122 = vadd.f32 %v6982, %v6983
        %v7123 = vadd.f32 %v7122, %v6984
        %v7124 = vadd.f32 %v7123, %v6985
        %v7125 = vadd.f32 %v7124, %v6986
        %v7126 = vadd.f32 %v7125, %v6987
        %v7127 = vadd.f32 %v7126, %v6988
        %v7128 = vadd.f32 %v7127, %v6989
        %7129 = vadd.xlane.f32.xlu0 %v7128
        %v7130 = vpop.xlane.xlu0 %7129
        %v7131 = vadd.f32 %v6990, %v6991
        %v7132 = vadd.f32 %v7131, %v6992
        %v7133 = vadd.f32 %v7132, %v6993
        %v7134 = vadd.f32 %v7133, %v6994
        %v7135 = vadd.f32 %v7134, %v6995
        %v7136 = vadd.f32 %v7135, %v6996
        %v7137 = vadd.f32 %v7136, %v6997
        %7138 = vadd.xlane.f32.xlu0 %v7137
        %v7139 = vpop.xlane.xlu0 %7138
        %v7140 = vadd.f32 %v6998, %v6999
        %v7141 = vadd.f32 %v7140, %v7000
        %v7142 = vadd.f32 %v7141, %v7001
        %v7143 = vadd.f32 %v7142, %v7002
        %v7144 = vadd.f32 %v7143, %v7003
        %v7145 = vadd.f32 %v7144, %v7004
        %v7146 = vadd.f32 %v7145, %v7005
        %7147 = vadd.xlane.f32.xlu0 %v7146
        %v7148 = vpop.xlane.xlu0 %7147
        %v7149 = vadd.f32 %v7006, %v7007
        %v7150 = vadd.f32 %v7149, %v7008
        %v7151 = vadd.f32 %v7150, %v7009
        %v7152 = vadd.f32 %v7151, %v7010
        %v7153 = vadd.f32 %v7152, %v7011
        %v7154 = vadd.f32 %v7153, %v7012
        %v7155 = vadd.f32 %v7154, %v7013
        %7156 = vadd.xlane.f32.xlu0 %v7155
        %v7157 = vpop.xlane.xlu0 %7156
        %v7158 = vmul.f32 %v7022, %v6828
        %v7159 = vmul.f32 %v7031, %v6829
        %v7160 = vmul.f32 %v7040, %v6830
        %v7161 = vmul.f32 %v7049, %v6831
        %v7162 = vmul.f32 %v7058, %v6832
        %v7163 = vmul.f32 %v7067, %v6833
        %v7164 = vmul.f32 %v7076, %v6834
        %v7165 = vmul.f32 %v7085, %v6835
        %v7166 = vmul.f32 %v7094, %v6836
        %v7167 = vmul.f32 %v7103, %v6837
        %v7168 = vmul.f32 %v7112, %v6838
        %v7169 = vmul.f32 %v7121, %v6839
        %v7170 = vmul.f32 %v7130, %v6840
        %v7171 = vmul.f32 %v7139, %v6841
        %v7172 = vmul.f32 %v7148, %v6842
        %v7173 = vmul.f32 %v7157, %v6843
        %s7174 = sld [smem:[#allocation2]]
        %v7175 = vstv %s7174
        %v7176 = vadd.f32 %v7158, %v7175
        %v7177 = vadd.f32 %v7159, %v7175
        %v7178 = vadd.f32 %v7160, %v7175
        %v7179 = vadd.f32 %v7161, %v7175
        %v7180 = vadd.f32 %v7162, %v7175
        %v7181 = vadd.f32 %v7163, %v7175
        %v7182 = vadd.f32 %v7164, %v7175
        %v7183 = vadd.f32 %v7165, %v7175
        %v7184 = vadd.f32 %v7166, %v7175
        %v7185 = vadd.f32 %v7167, %v7175
        %v7186 = vadd.f32 %v7168, %v7175
        %v7187 = vadd.f32 %v7169, %v7175
        %v7188 = vadd.f32 %v7170, %v7175
        %v7189 = vadd.f32 %v7171, %v7175
        %v7190 = vadd.f32 %v7172, %v7175
        %v7191 = vadd.f32 %v7173, %v7175
        %vm7192 = vcmask 7168
        %7193 = vst.msk [vmem:[%s287] sm:$0xff] %vm7192, %v7176
        %7194 = vst.msk [vmem:[%s287 + $0x8] sm:$0xff] %vm7192, %v7177
        %7195 = vst.msk [vmem:[%s287 + $0x10] sm:$0xff] %vm7192, %v7178
        %7196 = vst.msk [vmem:[%s287 + $0x18] sm:$0xff] %vm7192, %v7179
        %7197 = vst.msk [vmem:[%s287 + $0x20] sm:$0xff] %vm7192, %v7180
        %7198 = vst.msk [vmem:[%s287 + $0x28] sm:$0xff] %vm7192, %v7181
        %7199 = vst.msk [vmem:[%s287 + $0x30] sm:$0xff] %vm7192, %v7182
        %7200 = vst.msk [vmem:[%s287 + $0x38] sm:$0xff] %vm7192, %v7183
        %7201 = vst.msk [vmem:[%s287 + $0x40] sm:$0xff] %vm7192, %v7184
        %7202 = vst.msk [vmem:[%s287 + $0x48] sm:$0xff] %vm7192, %v7185
        %7203 = vst.msk [vmem:[%s287 + $0x50] sm:$0xff] %vm7192, %v7186
        %7204 = vst.msk [vmem:[%s287 + $0x58] sm:$0xff] %vm7192, %v7187
        %7205 = vst.msk [vmem:[%s287 + $0x60] sm:$0xff] %vm7192, %v7188
        %7206 = vst.msk [vmem:[%s287 + $0x68] sm:$0xff] %vm7192, %v7189
        %7207 = vst.msk [vmem:[%s287 + $0x70] sm:$0xff] %vm7192, %v7190
        %7208 = vst.msk [vmem:[%s287 + $0x78] sm:$0xff] %vm7192, %v7191
        %s7209 = smul.u32 16, %s22
        %p7210 = scmp.lt.s32.totalorder %s7209, 31
        %s7211 = scalar_select %p7210, %s7209, 31
        %s7212 = smul.addr %s7211, 8
        %s7213 = scalar_lea.vmem %s5, %s7212
        // Predicated region
        $region57: #{tpu_custom_call.1} parent=39 // pred_check
          %p7214 = pneg %p150
        $region58: #{tpu_custom_call.1} parent=39 // pred_check_branch
          %7216 = sbr.rel (%p7214) target = $region60
        $region59: #{tpu_custom_call.1} parent=39 // pred_region
          %s7217 = smul.u32 16, %s22
        $region60: #{tpu_custom_call.1} parent=39 // pred_fallthru
          _
      $region40: #{tpu_custom_call.1} parent=5 // pred_fallthru
        _
      %p7218 = scmp.le.s32.totalorder 2, %s17
      // Predicated region
      $region61: #{tpu_custom_call.1} parent=5 // pred_check
        %p7219 = pneg %p7218
      $region62: #{tpu_custom_call.1} parent=5 // pred_check_branch
        %7221 = sbr.rel (%p7219) target = $region64
      $region63: #{tpu_custom_call.1} parent=5 // pred_region
        %s7222 = ssub.s32 %s17, 2
        // Predicated region
        $region65: #{tpu_custom_call.1} parent=63 // pred_check
          %p7223 = pneg %p156
        $region66: #{tpu_custom_call.1} parent=63 // pred_check_branch
          %7225 = sbr.rel (%p7223) target = $region68
        $region67: #{tpu_custom_call.1} parent=63 // pred_region
          %s7226 = smul.u32 16, %s23
          %p7227 = scmp.lt.s32.totalorder %s7226, 31
          %s7228 = scalar_select %p7227, %s7226, 31
          %s7229 = smul.addr %s7228, 8
          %s7230 = scalar_lea.vmem %s5, %s7229
        $region68: #{tpu_custom_call.1} parent=63 // pred_fallthru
          _
      $region64: #{tpu_custom_call.1} parent=5 // pred_fallthru
        _
    $region6: #{tpu_custom_call.1} parent=1 // loop_footer
      %s21 = sadd.s32 1, %s17
    $region7: #{tpu_custom_call.1} parent=1 // loop_footer_branch
      %16 = sbr.rel target = $region3
    $region8: #{tpu_custom_call.1} parent=1 // loop_exit
      _
    %7231 = vsyncpa [#allocation4], 1
    %s7232 = scalar_lea.sflag [#allocation4], 1
    %7233 = vsyncpa %s7232, 1
    %7234 = vsyncpa [#allocation6], 1
    %7235 = vsyncpa [#allocation9], 1

</llo_original>
